<compile_context>
chip_gen: v7x
topology: tpu7x:2x2x1
jax: 0.10.0
libtpu: 0.0.40
codegen_flags: <defaults>
</compile_context>

<pallas_src>
import functools

import numpy as np
import jax
import jax.numpy as jnp
from jax.experimental import pallas as pl
from jax.experimental.pallas import tpu as pltpu


# ------------------------------ fused kernel ------------------------------- #

def _encoder_kernel(*refs, layer_shapes, ksize, pad, latent_dim):
    """Fused encoder forward for one batch block.

    refs = [x,
            conv0_T, conv0_b, ..., conv{L-1}_T, conv{L-1}_b,
            lin1_w, lin1_b, lin2_w, lin2_b, mu_logvar_w, mu_logvar_b,   # inputs
            out,                                                        # output
            pad_scratch_1, ..., pad_scratch_{L-1}]                      # VMEM scratch

    Activation layout everywhere: (B, 2, Hpad/2, Wpad*C) with dims
    (batch, row_phase, row_block, padded_col*channels) -- padded row = 2*block+phase.
    """
    num_layers = len(layer_shapes)
    n_in = 1 + 2 * num_layers + 6
    in_refs = refs[:n_in]
    out_ref = refs[n_in]
    scratch_refs = refs[n_in + 1:]

    x_ref = in_refs[0]
    conv_t = [in_refs[1 + 2 * l] for l in range(num_layers)]
    conv_b = [in_refs[2 + 2 * l] for l in range(num_layers)]
    w1_ref, b1_ref, w2_ref, b2_ref, wm_ref, bm_ref = in_refs[1 + 2 * num_layers:]

    f32 = jnp.float32
    bb = x_ref.shape[0]

    # Zero only the padding halo of the intermediate scratches.  The interior is
    # fully overwritten every grid step, the halo is never written by any store.
    for s_ref, (c_in, h_in, w_in, _, _, _) in zip(scratch_refs, layer_shapes[1:]):
        hp, wp = h_in + 2 * pad, w_in + 2 * pad
        s_ref[:, 0, 0, :] = jnp.zeros((bb, wp * c_in), f32)                 # top pad row
        s_ref[:, 1, hp // 2 - 1, :] = jnp.zeros((bb, wp * c_in), f32)       # bottom pad row
        s_ref[:, :, :, pl.ds(0, pad * c_in)] = jnp.zeros(
            (bb, 2, hp // 2, pad * c_in), f32)                              # left pad cols
        s_ref[:, :, :, pl.ds((wp - pad) * c_in, pad * c_in)] = jnp.zeros(
            (bb, 2, hp // 2, pad * c_in), f32)                              # right pad cols

    # ----------------------------- conv stack ------------------------------ #
    src = x_ref
    act = None
    for l, (c_in, h_in, w_in, c_out, h_out, w_out) in enumerate(layer_shapes):
        k_dim = (w_in + 2 * pad) * c_in          # contraction dim = padded_cols * C_in
        n_dim = w_out * c_out                    # output dim      = out_cols * C_out
        acc = jnp.zeros((bb * h_out, n_dim), f32)
        for i in range(ksize):                   # kernel-row taps; stride 2 => phase i%2
            rows = src[:, i % 2, pl.ds(i // 2, h_out), :]      # (bb, h_out, k_dim), contiguous
            acc = acc + jnp.dot(rows.reshape(bb * h_out, k_dim), conv_t[l][i],
                                preferred_element_type=f32)
        act = jnp.maximum(acc + conv_b[l][...], 0.0).reshape(bb, h_out, n_dim)
        if l + 1 < num_layers:
            dst = scratch_refs[l]
            # Scatter output rows into the next layer's phase-split padded scratch.
            for r in range(h_out):
                dst[:, (r + pad) % 2, (r + pad) // 2,
                    pl.ds(pad * c_out, n_dim)] = act[:, r, :]
            src = dst

    # -------------------------------- head --------------------------------- #
    _, _, _, c_last, h_l, w_l = layer_shapes[-1]
    hidden = w1_ref.shape[-1]
    acc1 = jnp.zeros((bb, hidden), f32)
    for h in range(h_l):                          # NCHW flatten order folded into w1
        acc1 = acc1 + jnp.dot(act[:, h, :], w1_ref[h], preferred_element_type=f32)
    h1 = jnp.maximum(acc1 + b1_ref[...], 0.0)
    h2 = jnp.maximum(jnp.dot(h1, w2_ref[...], preferred_element_type=f32)
                     + b2_ref[...], 0.0)
    out = jnp.dot(h2, wm_ref[...], preferred_element_type=f32) + bm_ref[...]
    # mu_logvar columns were permuted at init: [mu_0..mu_{L-1}, logvar_0..logvar_{L-1}].
    out_ref[...] = out.reshape(bb, 1, 2 * latent_dim).astype(out_ref.dtype)


# -------------------------------- wrapper ----------------------------------- #

def encoder_forward(packed, x, *, latent_dim, kernel_size=4, stride=2, padding=1,
                    num_batch_blocks=1):
    """x: (B, C, H, W) float32 (PyTorch NCHW). Returns (mu, logvar), each (B, latent_dim)."""
    assert stride == 2, "kernel assumes stride-2 convolutions (row-phase-split layout)"
    assert padding == 1, "kernel assumes padding=1 (module default)"
    b_sz, c0, h0, w0 = x.shape
    assert b_sz % num_batch_blocks == 0
    bb = b_sz // num_batch_blocks

    conv_params = packed["conv"]
    num_layers = len(conv_params)

    # Static per-layer shapes from the exact conv formula.
    layer_shapes = []
    hc, wc, cc = h0, w0, c0
    for (_, bias) in conv_params:
        assert (hc + 2 * padding) % 2 == 0 and (wc + 2 * padding) % 2 == 0
        h_out = (hc + 2 * padding - kernel_size) // stride + 1
        w_out = (wc + 2 * padding - kernel_size) // stride + 1
        c_out = bias.shape[1] // w_out
        layer_shapes.append((cc, hc, wc, c_out, h_out, w_out))
        hc, wc, cc = h_out, w_out, c_out

    # NCHW -> phase-split padded layout (B, 2, (H+2p)/2, (W+2p)*C).  Tiny (8 KiB),
    # fused by XLA into a single relayout op feeding the pallas_call.
    hp0, wp0 = h0 + 2 * padding, w0 + 2 * padding
    xp = jnp.transpose(x.astype(jnp.float32), (0, 2, 3, 1))
    xp = jnp.pad(xp, ((0, 0), (padding, padding), (padding, padding), (0, 0)))
    xp = xp.reshape(b_sz, hp0 // 2, 2, wp0, c0)
    xp = jnp.transpose(xp, (0, 2, 1, 3, 4)).reshape(b_sz, 2, hp0 // 2, wp0 * c0)

    kernel = functools.partial(
        _encoder_kernel, layer_shapes=tuple(layer_shapes), ksize=kernel_size,
        pad=padding, latent_dim=latent_dim)

    def const_spec(arr):
        nd = arr.ndim
        return pl.BlockSpec(arr.shape, lambda n, _nd=nd: (0,) * _nd)

    inputs = [xp]
    in_specs = [pl.BlockSpec((bb, 2, hp0 // 2, wp0 * c0), lambda n: (n, 0, 0, 0))]
    for (t, bias) in conv_params:
        inputs += [t, bias]
        in_specs += [const_spec(t), const_spec(bias)]
    for name in ("lin1", "lin2", "mu_logvar"):
        w, bias = packed[name]
        inputs += [w, bias]
        in_specs += [const_spec(w), const_spec(bias)]

    out_shape = jax.ShapeDtypeStruct((b_sz, 1, 2 * latent_dim), x.dtype)
    out_specs = pl.BlockSpec((bb, 1, 2 * latent_dim), lambda n: (n, 0, 0))

    # Phase-split padded activation scratch for layers 1..L-1 (inputs of those layers).
    scratch_shapes = [
        pltpu.VMEM((bb, 2, (h_in + 2 * padding) // 2, (w_in + 2 * padding) * c_in),
                   jnp.float32)
        for (c_in, h_in, w_in, _, _, _) in layer_shapes[1:]
    ]

    out = pl.pallas_call(
        kernel,
        out_shape=out_shape,
        grid=(num_batch_blocks,),
        in_specs=in_specs,
        out_specs=out_specs,
        scratch_shapes=scratch_shapes,
        compiler_params=pltpu.CompilerParams(
            dimension_semantics=("arbitrary",) if num_batch_blocks == 1
            else ("parallel",)),
    )(*inputs)

    ml = out.reshape(b_sz, 2 * latent_dim)
    return ml[:, :latent_dim], ml[:, latent_dim:]


# ------------------------------- parameters --------------------------------- #

def init_params(key, img_size, num_layers, hidden_channels, kernel_size,
                hidden_dim, latent_dim):
    """Raw parameters in PyTorch nn.Module layout (Conv2d OIHW, Linear (out, in))."""
    n_chan = img_size[0]
    keys = jax.random.split(key, 2 * num_layers + 6)
    ki = 0
    conv = []
    in_ch = n_chan
    for _ in range(num_layers):
        fan_in = in_ch * kernel_size * kernel_size
        w = jax.random.normal(keys[ki], (hidden_channels, in_ch, kernel_size,
                                         kernel_size), jnp.float32) / np.sqrt(fan_in)
        ki += 1
        b = 0.1 * jax.random.normal(keys[ki], (hidden_channels,), jnp.float32)
        ki += 1
        conv.append((w, b))
        in_ch = hidden_channels

    h_l = img_size[1] // 2 ** num_layers
    w_l = img_size[2] // 2 ** num_layers
    flat = hidden_channels * h_l * w_l

    def lin(k1, k2, n_out, n_in):
        return (jax.random.normal(k1, (n_out, n_in), jnp.float32) / np.sqrt(n_in),
                0.1 * jax.random.normal(k2, (n_out,), jnp.float32))

    lin1 = lin(keys[ki], keys[ki + 1], hidden_dim, flat); ki += 2
    lin2 = lin(keys[ki], keys[ki + 1], hidden_dim, hidden_dim); ki += 2
    mlg = lin(keys[ki], keys[ki + 1], 2 * latent_dim, hidden_dim); ki += 2
    return {"conv": conv, "lin1": lin1, "lin2": lin2, "mu_logvar": mlg}


def pack_params(raw, *, img_size, kernel_size, stride, padding, latent_dim):
    """One-time repack of PyTorch-layout weights into kernel-friendly layouts."""
    k = kernel_size
    c_in, h_in, w_in = img_size
    conv_packed = []
    for (W, b) in raw["conv"]:
        W = np.asarray(W)
        b = np.asarray(b, np.float32)
        c_out = W.shape[0]
        h_out = (h_in + 2 * padding - k) // stride + 1
        w_out = (w_in + 2 * padding - k) // stride + 1
        wp = w_in + 2 * padding
        # Block-Toeplitz repack: for kernel row i, T[i] maps the full padded input row
        # (wp*c_in lanes) to the full output row (w_out*c_out lanes), folding the 4
        # column taps and the channel mixing into one matrix.
        T = np.zeros((k, wp * c_in, w_out * c_out), np.float32)
        for i in range(k):
            for j in range(k):
                wt = W[:, :, i, j].T.astype(np.float32)          # (c_in, c_out)
                for wo in range(w_out):
                    pc = stride * wo + j                         # padded input column
                    T[i, pc * c_in:(pc + 1) * c_in,
                      wo * c_out:(wo + 1) * c_out] = wt
        bias_t = np.tile(b, w_out).reshape(1, w_out * c_out)
        conv_packed.append((jnp.asarray(T), jnp.asarray(bias_t)))
        c_in, h_in, w_in = c_out, h_out, w_out

    c_last, h_l, w_l = c_in, h_in, w_in
    W1, b1 = raw["lin1"]
    W1 = np.asarray(W1)
    hidden = W1.shape[0]
    # PyTorch flatten is NCHW (c*H*W + h*W + w); kernel rows are (w*c_last + c) per h,
    # so fold the permutation into the weight: (h_l, w_l*c_last, hidden).
    W1p = np.transpose(W1.reshape(hidden, c_last, h_l, w_l), (2, 3, 1, 0))
    W1p = np.ascontiguousarray(W1p).reshape(h_l, w_l * c_last, hidden)

    W2, b2 = raw["lin2"]
    Wm, bm = raw["mu_logvar"]
    # PyTorch interleaves: out[:, 2l] = mu_l, out[:, 2l+1] = logvar_l.  Permute columns
    # so mu / logvar are contiguous halves of the final matmul output.
    perm = np.concatenate([np.arange(0, 2 * latent_dim, 2),
                           np.arange(1, 2 * latent_dim, 2)])
    return {
        "conv": conv_packed,
        "lin1": (jnp.asarray(W1p),
                 jnp.asarray(np.asarray(b1, np.float32).reshape(1, hidden))),
        "lin2": (jnp.asarray(np.asarray(W2, np.float32).T),
                 jnp.asarray(np.asarray(b2, np.float32).reshape(1, hidden))),
        "mu_logvar": (jnp.asarray(np.asarray(Wm, np.float32).T[:, perm]),
                      jnp.asarray(np.asarray(bm, np.float32)[perm].reshape(
                          1, 2 * latent_dim))),
    }


# --------------------------- pure-JAX reference ------------------------------ #

def encoder_reference(raw, x, *, latent_dim, stride=2, padding=1):
    hi = jax.lax.Precision.HIGHEST
    h = x
    for (w, b) in raw["conv"]:
        h = jax.lax.conv_general_dilated(
            h, w, window_strides=(stride, stride),
            padding=((padding, padding), (padding, padding)),
            dimension_numbers=("NCHW", "OIHW", "NCHW"), precision=hi)
        h = jax.nn.relu(h + b.reshape(1, -1, 1, 1))
    b_sz = h.shape[0]
    h = h.reshape(b_sz, -1)
    w1, b1 = raw["lin1"]
    h = jax.nn.relu(jnp.dot(h, w1.T, precision=hi) + b1)
    w2, b2 = raw["lin2"]
    h = jax.nn.relu(jnp.dot(h, w2.T, precision=hi) + b2)
    wm, bm = raw["mu_logvar"]
    ml = (jnp.dot(h, wm.T, precision=hi) + bm).reshape(b_sz, latent_dim, 2)
    return ml[..., 0], ml[..., 1]


# ---------------------------------- main ------------------------------------- #

if __name__ == "__main__":
    # Small but consistent config: 3 conv layers halve 16x16 -> 2x2.
    img_size = (4, 16, 16)
    num_layers = 3
    hidden_channels = 32
    kernel_size = 4
    stride = 2
    padding = 1
    hidden_dim = 32
    latent_dim = 10
    batch = 2

    key = jax.random.PRNGKey(0)
    k_params, k_x = jax.random.split(key)
    raw = init_params(k_params, img_size, num_layers, hidden_channels,
                      kernel_size, hidden_dim, latent_dim)
    packed = pack_params(raw, img_size=img_size, kernel_size=kernel_size,
                         stride=stride, padding=padding, latent_dim=latent_dim)
    x = jax.random.normal(k_x, (batch,) + img_size, jnp.float32)

    fwd = jax.jit(functools.partial(encoder_forward, latent_dim=latent_dim,
                                    kernel_size=kernel_size, stride=stride,
                                    padding=padding))
    mu, logvar = fwd(packed, x)
    jax.block_until_ready((mu, logvar))
    assert mu.shape == (batch, latent_dim) and logvar.shape == (batch, latent_dim)

    # Cross-check against a pure-JAX reference built from the raw PyTorch-layout weights.
    ref_mu, ref_logvar = encoder_reference(raw, x, latent_dim=latent_dim,
                                           stride=stride, padding=padding)
    assert bool(jnp.allclose(mu, ref_mu, atol=1e-3, rtol=1e-3)), "mu mismatch"
    assert bool(jnp.allclose(logvar, ref_logvar, atol=1e-3, rtol=1e-3)), "logvar mismatch"
    print("KERNEL_OK")
</pallas_src>

<mosaic_0001>
module attributes {stable_mosaic.version = 11 : i64} {
  func.func @_encoder_kernel(%arg0: i32, %arg1: memref<2x2x9x72xf32, #tpu.memory_space<vmem>>, %arg2: memref<4x72x256xf32, #tpu.memory_space<vmem>>, %arg3: memref<1x256xf32, #tpu.memory_space<vmem>>, %arg4: memref<4x320x128xf32, #tpu.memory_space<vmem>>, %arg5: memref<1x128xf32, #tpu.memory_space<vmem>>, %arg6: memref<4x192x64xf32, #tpu.memory_space<vmem>>, %arg7: memref<1x64xf32, #tpu.memory_space<vmem>>, %arg8: memref<2x64x32xf32, #tpu.memory_space<vmem>>, %arg9: memref<1x32xf32, #tpu.memory_space<vmem>>, %arg10: memref<32x32xf32, #tpu.memory_space<vmem>>, %arg11: memref<1x32xf32, #tpu.memory_space<vmem>>, %arg12: memref<32x20xf32, #tpu.memory_space<vmem>>, %arg13: memref<1x20xf32, #tpu.memory_space<vmem>>, %arg14: memref<2x1x20xf32, #tpu.memory_space<vmem>>, %arg15: memref<2x2x5x320xf32, #tpu.memory_space<vmem>>, %arg16: memref<2x2x3x192xf32, #tpu.memory_space<vmem>>) attributes {dimension_semantics = [#tpu.dimension_semantics<arbitrary>], iteration_bounds = array<i64: 1>, scalar_prefetch = 0 : i64, scratch_operands = 2 : i64, tpu.core_type = #tpu.core_type<tc>, window_params = [{transform_indices = @transform_0, window_bounds = array<i64: 2, 2, 9, 72>}, {pipeline_mode = #tpu.pipeline_mode<synchronous>, transform_indices = @transform_1, window_bounds = array<i64: 4, 72, 256>}, {pipeline_mode = #tpu.pipeline_mode<synchronous>, transform_indices = @transform_2, window_bounds = array<i64: 1, 256>}, {pipeline_mode = #tpu.pipeline_mode<synchronous>, transform_indices = @transform_3, window_bounds = array<i64: 4, 320, 128>}, {pipeline_mode = #tpu.pipeline_mode<synchronous>, transform_indices = @transform_4, window_bounds = array<i64: 1, 128>}, {pipeline_mode = #tpu.pipeline_mode<synchronous>, transform_indices = @transform_5, window_bounds = array<i64: 4, 192, 64>}, {pipeline_mode = #tpu.pipeline_mode<synchronous>, transform_indices = @transform_6, window_bounds = array<i64: 1, 64>}, {pipeline_mode = #tpu.pipeline_mode<synchronous>, transform_indices = @transform_7, window_bounds = array<i64: 2, 64, 32>}, {pipeline_mode = #tpu.pipeline_mode<synchronous>, transform_indices = @transform_8, window_bounds = array<i64: 1, 32>}, {pipeline_mode = #tpu.pipeline_mode<synchronous>, transform_indices = @transform_9, window_bounds = array<i64: 32, 32>}, {pipeline_mode = #tpu.pipeline_mode<synchronous>, transform_indices = @transform_10, window_bounds = array<i64: 1, 32>}, {pipeline_mode = #tpu.pipeline_mode<synchronous>, transform_indices = @transform_11, window_bounds = array<i64: 32, 20>}, {pipeline_mode = #tpu.pipeline_mode<synchronous>, transform_indices = @transform_12, window_bounds = array<i64: 1, 20>}, {transform_indices = @transform_13, window_bounds = array<i64: 2, 1, 20>}]} {
    %cst = arith.constant 0.000000e+00 : f32
    %0 = vector.broadcast %cst : f32 to vector<2x320xf32>
    %c0 = arith.constant 0 : index
    %c0_0 = arith.constant 0 : index
    %c0_1 = arith.constant 0 : index
    %c0_2 = arith.constant 0 : index
    %1 = vector.load %arg15[%c0, %c0_0, %c0_1, %c0_2] : memref<2x2x5x320xf32, #tpu.memory_space<vmem>>, vector<2x1x1x320xf32>
    %2 = vector.shape_cast %1 : vector<2x1x1x320xf32> to vector<2x320xf32>
    %3 = vector.shape_cast %0 : vector<2x320xf32> to vector<2x1x1x320xf32>
    tpu.vector_store %arg15[%c0, %c0_0, %c0_1, %c0_2], %3 {strides = array<i32>} : memref<2x2x5x320xf32, #tpu.memory_space<vmem>>, vector<2x1x1x320xf32>,
    %cst_3 = arith.constant 0.000000e+00 : f32
    %4 = vector.broadcast %cst_3 : f32 to vector<2x320xf32>
    %c0_4 = arith.constant 0 : index
    %c1 = arith.constant 1 : index
    %c4 = arith.constant 4 : index
    %c0_5 = arith.constant 0 : index
    %5 = vector.load %arg15[%c0_4, %c1, %c4, %c0_5] : memref<2x2x5x320xf32, #tpu.memory_space<vmem>>, vector<2x1x1x320xf32>
    %6 = vector.shape_cast %5 : vector<2x1x1x320xf32> to vector<2x320xf32>
    %7 = vector.shape_cast %4 : vector<2x320xf32> to vector<2x1x1x320xf32>
    tpu.vector_store %arg15[%c0_4, %c1, %c4, %c0_5], %7 {strides = array<i32>} : memref<2x2x5x320xf32, #tpu.memory_space<vmem>>, vector<2x1x1x320xf32>,
    %cst_6 = arith.constant 0.000000e+00 : f32
    %8 = vector.broadcast %cst_6 : f32 to vector<2x2x5x32xf32>
    %c0_7 = arith.constant 0 : index
    %c0_8 = arith.constant 0 : index
    %c0_9 = arith.constant 0 : index
    %c0_10 = arith.constant 0 : index
    %9 = vector.load %arg15[%c0_7, %c0_8, %c0_9, %c0_10] : memref<2x2x5x320xf32, #tpu.memory_space<vmem>>, vector<2x2x5x32xf32>
    tpu.vector_store %arg15[%c0_7, %c0_8, %c0_9, %c0_10], %8 {strides = array<i32>} : memref<2x2x5x320xf32, #tpu.memory_space<vmem>>, vector<2x2x5x32xf32>,
    %cst_11 = arith.constant 0.000000e+00 : f32
    %10 = vector.broadcast %cst_11 : f32 to vector<2x2x5x32xf32>
    %c0_12 = arith.constant 0 : index
    %c0_13 = arith.constant 0 : index
    %c0_14 = arith.constant 0 : index
    %c288 = arith.constant 288 : index
    %11 = vector.load %arg15[%c0_12, %c0_13, %c0_14, %c288] : memref<2x2x5x320xf32, #tpu.memory_space<vmem>>, vector<2x2x5x32xf32>
    tpu.vector_store %arg15[%c0_12, %c0_13, %c0_14, %c288], %10 {strides = array<i32>} : memref<2x2x5x320xf32, #tpu.memory_space<vmem>>, vector<2x2x5x32xf32>,
    %cst_15 = arith.constant 0.000000e+00 : f32
    %12 = vector.broadcast %cst_15 : f32 to vector<2x192xf32>
    %c0_16 = arith.constant 0 : index
    %c0_17 = arith.constant 0 : index
    %c0_18 = arith.constant 0 : index
    %c0_19 = arith.constant 0 : index
    %13 = vector.load %arg16[%c0_16, %c0_17, %c0_18, %c0_19] : memref<2x2x3x192xf32, #tpu.memory_space<vmem>>, vector<2x1x1x192xf32>
    %14 = vector.shape_cast %13 : vector<2x1x1x192xf32> to vector<2x192xf32>
    %15 = vector.shape_cast %12 : vector<2x192xf32> to vector<2x1x1x192xf32>
    tpu.vector_store %arg16[%c0_16, %c0_17, %c0_18, %c0_19], %15 {strides = array<i32>} : memref<2x2x3x192xf32, #tpu.memory_space<vmem>>, vector<2x1x1x192xf32>,
    %cst_20 = arith.constant 0.000000e+00 : f32
    %16 = vector.broadcast %cst_20 : f32 to vector<2x192xf32>
    %c0_21 = arith.constant 0 : index
    %c1_22 = arith.constant 1 : index
    %c2 = arith.constant 2 : index
    %c0_23 = arith.constant 0 : index
    %17 = vector.load %arg16[%c0_21, %c1_22, %c2, %c0_23] : memref<2x2x3x192xf32, #tpu.memory_space<vmem>>, vector<2x1x1x192xf32>
    %18 = vector.shape_cast %17 : vector<2x1x1x192xf32> to vector<2x192xf32>
    %19 = vector.shape_cast %16 : vector<2x192xf32> to vector<2x1x1x192xf32>
    tpu.vector_store %arg16[%c0_21, %c1_22, %c2, %c0_23], %19 {strides = array<i32>} : memref<2x2x3x192xf32, #tpu.memory_space<vmem>>, vector<2x1x1x192xf32>,
    %cst_24 = arith.constant 0.000000e+00 : f32
    %20 = vector.broadcast %cst_24 : f32 to vector<2x2x3x32xf32>
    %c0_25 = arith.constant 0 : index
    %c0_26 = arith.constant 0 : index
    %c0_27 = arith.constant 0 : index
    %c0_28 = arith.constant 0 : index
    %21 = vector.load %arg16[%c0_25, %c0_26, %c0_27, %c0_28] : memref<2x2x3x192xf32, #tpu.memory_space<vmem>>, vector<2x2x3x32xf32>
    tpu.vector_store %arg16[%c0_25, %c0_26, %c0_27, %c0_28], %20 {strides = array<i32>} : memref<2x2x3x192xf32, #tpu.memory_space<vmem>>, vector<2x2x3x32xf32>,
    %cst_29 = arith.constant 0.000000e+00 : f32
    %22 = vector.broadcast %cst_29 : f32 to vector<2x2x3x32xf32>
    %c0_30 = arith.constant 0 : index
    %c0_31 = arith.constant 0 : index
    %c0_32 = arith.constant 0 : index
    %c160 = arith.constant 160 : index
    %23 = vector.load %arg16[%c0_30, %c0_31, %c0_32, %c160] : memref<2x2x3x192xf32, #tpu.memory_space<vmem>>, vector<2x2x3x32xf32>
    tpu.vector_store %arg16[%c0_30, %c0_31, %c0_32, %c160], %22 {strides = array<i32>} : memref<2x2x3x192xf32, #tpu.memory_space<vmem>>, vector<2x2x3x32xf32>,
    %cst_33 = arith.constant 0.000000e+00 : f32
    %24 = vector.broadcast %cst_33 : f32 to vector<16x256xf32>
    %c0_34 = arith.constant 0 : index
    %c0_35 = arith.constant 0 : index
    %c0_36 = arith.constant 0 : index
    %c0_37 = arith.constant 0 : index
    %25 = vector.load %arg1[%c0_34, %c0_35, %c0_36, %c0_37] : memref<2x2x9x72xf32, #tpu.memory_space<vmem>>, vector<2x1x8x72xf32>
    %26 = vector.shape_cast %25 : vector<2x1x8x72xf32> to vector<2x8x72xf32>
    %27 = vector.shape_cast %26 : vector<2x8x72xf32> to vector<16x72xf32>
    %c0_38 = arith.constant 0 : index
    %c0_39 = arith.constant 0 : index
    %c0_40 = arith.constant 0 : index
    %28 = vector.load %arg2[%c0_38, %c0_39, %c0_40] : memref<4x72x256xf32, #tpu.memory_space<vmem>>, vector<1x72x256xf32>
    %29 = vector.shape_cast %28 : vector<1x72x256xf32> to vector<72x256xf32>
    %cst_41 = arith.constant dense<0.000000e+00> : vector<16x256xf32>
    %30 = tpu.matmul %27, %29, %cst_41 {dimension_numbers = #tpu.dot_dimension_numbers<[1], [0], [0], [1], [0, 0, 1, 1], [], []>} : vector<16x72xf32>, vector<72x256xf32>, vector<16x256xf32> -> vector<16x256xf32>
    %31 = arith.addf %24, %30 : vector<16x256xf32>
    %c0_42 = arith.constant 0 : index
    %c1_43 = arith.constant 1 : index
    %c0_44 = arith.constant 0 : index
    %c0_45 = arith.constant 0 : index
    %32 = vector.load %arg1[%c0_42, %c1_43, %c0_44, %c0_45] : memref<2x2x9x72xf32, #tpu.memory_space<vmem>>, vector<2x1x8x72xf32>
    %33 = vector.shape_cast %32 : vector<2x1x8x72xf32> to vector<2x8x72xf32>
    %34 = vector.shape_cast %33 : vector<2x8x72xf32> to vector<16x72xf32>
    %c1_46 = arith.constant 1 : index
    %c0_47 = arith.constant 0 : index
    %c0_48 = arith.constant 0 : index
    %35 = vector.load %arg2[%c1_46, %c0_47, %c0_48] : memref<4x72x256xf32, #tpu.memory_space<vmem>>, vector<1x72x256xf32>
    %36 = vector.shape_cast %35 : vector<1x72x256xf32> to vector<72x256xf32>
    %cst_49 = arith.constant dense<0.000000e+00> : vector<16x256xf32>
    %37 = tpu.matmul %34, %36, %cst_49 {dimension_numbers = #tpu.dot_dimension_numbers<[1], [0], [0], [1], [0, 0, 1, 1], [], []>} : vector<16x72xf32>, vector<72x256xf32>, vector<16x256xf32> -> vector<16x256xf32>
    %38 = arith.addf %31, %37 : vector<16x256xf32>
    %c0_50 = arith.constant 0 : index
    %c0_51 = arith.constant 0 : index
    %c1_52 = arith.constant 1 : index
    %c0_53 = arith.constant 0 : index
    %39 = vector.load %arg1[%c0_50, %c0_51, %c1_52, %c0_53] : memref<2x2x9x72xf32, #tpu.memory_space<vmem>>, vector<2x1x8x72xf32>
    %40 = vector.shape_cast %39 : vector<2x1x8x72xf32> to vector<2x8x72xf32>
    %41 = vector.shape_cast %40 : vector<2x8x72xf32> to vector<16x72xf32>
    %c2_54 = arith.constant 2 : index
    %c0_55 = arith.constant 0 : index
    %c0_56 = arith.constant 0 : index
    %42 = vector.load %arg2[%c2_54, %c0_55, %c0_56] : memref<4x72x256xf32, #tpu.memory_space<vmem>>, vector<1x72x256xf32>
    %43 = vector.shape_cast %42 : vector<1x72x256xf32> to vector<72x256xf32>
    %cst_57 = arith.constant dense<0.000000e+00> : vector<16x256xf32>
    %44 = tpu.matmul %41, %43, %cst_57 {dimension_numbers = #tpu.dot_dimension_numbers<[1], [0], [0], [1], [0, 0, 1, 1], [], []>} : vector<16x72xf32>, vector<72x256xf32>, vector<16x256xf32> -> vector<16x256xf32>
    %45 = arith.addf %38, %44 : vector<16x256xf32>
    %c0_58 = arith.constant 0 : index
    %c1_59 = arith.constant 1 : index
    %c1_60 = arith.constant 1 : index
    %c0_61 = arith.constant 0 : index
    %46 = vector.load %arg1[%c0_58, %c1_59, %c1_60, %c0_61] : memref<2x2x9x72xf32, #tpu.memory_space<vmem>>, vector<2x1x8x72xf32>
    %47 = vector.shape_cast %46 : vector<2x1x8x72xf32> to vector<2x8x72xf32>
    %48 = vector.shape_cast %47 : vector<2x8x72xf32> to vector<16x72xf32>
    %c3 = arith.constant 3 : index
    %c0_62 = arith.constant 0 : index
    %c0_63 = arith.constant 0 : index
    %49 = vector.load %arg2[%c3, %c0_62, %c0_63] : memref<4x72x256xf32, #tpu.memory_space<vmem>>, vector<1x72x256xf32>
    %50 = vector.shape_cast %49 : vector<1x72x256xf32> to vector<72x256xf32>
    %cst_64 = arith.constant dense<0.000000e+00> : vector<16x256xf32>
    %51 = tpu.matmul %48, %50, %cst_64 {dimension_numbers = #tpu.dot_dimension_numbers<[1], [0], [0], [1], [0, 0, 1, 1], [], []>} : vector<16x72xf32>, vector<72x256xf32>, vector<16x256xf32> -> vector<16x256xf32>
    %52 = arith.addf %45, %51 : vector<16x256xf32>
    %c0_65 = arith.constant 0 : index
    %c0_66 = arith.constant 0 : index
    %53 = vector.load %arg3[%c0_65, %c0_66] : memref<1x256xf32, #tpu.memory_space<vmem>>, vector<1x256xf32>
    %54 = vector.broadcast %53 : vector<1x256xf32> to vector<16x256xf32>
    %55 = arith.addf %52, %54 : vector<16x256xf32>
    %cst_67 = arith.constant 0.000000e+00 : f32
    %56 = vector.broadcast %cst_67 : f32 to vector<16x256xf32>
    %57 = arith.maximumf %55, %56 : vector<16x256xf32>
    %58 = vector.shape_cast %57 : vector<16x256xf32> to vector<2x8x256xf32>
    %59 = vector.extract_strided_slice %58 {offsets = [0, 0, 0], sizes = [2, 1, 256], strides = [1, 1, 1]} : vector<2x8x256xf32> to vector<2x1x256xf32>
    %60 = vector.shape_cast %59 : vector<2x1x256xf32> to vector<2x256xf32>
    %c0_68 = arith.constant 0 : index
    %c1_69 = arith.constant 1 : index
    %c0_70 = arith.constant 0 : index
    %c32 = arith.constant 32 : index
    %61 = vector.load %arg15[%c0_68, %c1_69, %c0_70, %c32] : memref<2x2x5x320xf32, #tpu.memory_space<vmem>>, vector<2x1x1x256xf32>
    %62 = vector.shape_cast %61 : vector<2x1x1x256xf32> to vector<2x256xf32>
    %63 = vector.shape_cast %60 : vector<2x256xf32> to vector<2x1x1x256xf32>
    tpu.vector_store %arg15[%c0_68, %c1_69, %c0_70, %c32], %63 {strides = array<i32>} : memref<2x2x5x320xf32, #tpu.memory_space<vmem>>, vector<2x1x1x256xf32>,
    %64 = vector.extract_strided_slice %58 {offsets = [0, 1, 0], sizes = [2, 1, 256], strides = [1, 1, 1]} : vector<2x8x256xf32> to vector<2x1x256xf32>
    %65 = vector.shape_cast %64 : vector<2x1x256xf32> to vector<2x256xf32>
    %c0_71 = arith.constant 0 : index
    %c0_72 = arith.constant 0 : index
    %c1_73 = arith.constant 1 : index
    %c32_74 = arith.constant 32 : index
    %66 = vector.load %arg15[%c0_71, %c0_72, %c1_73, %c32_74] : memref<2x2x5x320xf32, #tpu.memory_space<vmem>>, vector<2x1x1x256xf32>
    %67 = vector.shape_cast %66 : vector<2x1x1x256xf32> to vector<2x256xf32>
    %68 = vector.shape_cast %65 : vector<2x256xf32> to vector<2x1x1x256xf32>
    tpu.vector_store %arg15[%c0_71, %c0_72, %c1_73, %c32_74], %68 {strides = array<i32>} : memref<2x2x5x320xf32, #tpu.memory_space<vmem>>, vector<2x1x1x256xf32>,
    %69 = vector.extract_strided_slice %58 {offsets = [0, 2, 0], sizes = [2, 1, 256], strides = [1, 1, 1]} : vector<2x8x256xf32> to vector<2x1x256xf32>
    %70 = vector.shape_cast %69 : vector<2x1x256xf32> to vector<2x256xf32>
    %c0_75 = arith.constant 0 : index
    %c1_76 = arith.constant 1 : index
    %c1_77 = arith.constant 1 : index
    %c32_78 = arith.constant 32 : index
    %71 = vector.load %arg15[%c0_75, %c1_76, %c1_77, %c32_78] : memref<2x2x5x320xf32, #tpu.memory_space<vmem>>, vector<2x1x1x256xf32>
    %72 = vector.shape_cast %71 : vector<2x1x1x256xf32> to vector<2x256xf32>
    %73 = vector.shape_cast %70 : vector<2x256xf32> to vector<2x1x1x256xf32>
    tpu.vector_store %arg15[%c0_75, %c1_76, %c1_77, %c32_78], %73 {strides = array<i32>} : memref<2x2x5x320xf32, #tpu.memory_space<vmem>>, vector<2x1x1x256xf32>,
    %74 = vector.extract_strided_slice %58 {offsets = [0, 3, 0], sizes = [2, 1, 256], strides = [1, 1, 1]} : vector<2x8x256xf32> to vector<2x1x256xf32>
    %75 = vector.shape_cast %74 : vector<2x1x256xf32> to vector<2x256xf32>
    %c0_79 = arith.constant 0 : index
    %c0_80 = arith.constant 0 : index
    %c2_81 = arith.constant 2 : index
    %c32_82 = arith.constant 32 : index
    %76 = vector.load %arg15[%c0_79, %c0_80, %c2_81, %c32_82] : memref<2x2x5x320xf32, #tpu.memory_space<vmem>>, vector<2x1x1x256xf32>
    %77 = vector.shape_cast %76 : vector<2x1x1x256xf32> to vector<2x256xf32>
    %78 = vector.shape_cast %75 : vector<2x256xf32> to vector<2x1x1x256xf32>
    tpu.vector_store %arg15[%c0_79, %c0_80, %c2_81, %c32_82], %78 {strides = array<i32>} : memref<2x2x5x320xf32, #tpu.memory_space<vmem>>, vector<2x1x1x256xf32>,
    %79 = vector.extract_strided_slice %58 {offsets = [0, 4, 0], sizes = [2, 1, 256], strides = [1, 1, 1]} : vector<2x8x256xf32> to vector<2x1x256xf32>
    %80 = vector.shape_cast %79 : vector<2x1x256xf32> to vector<2x256xf32>
    %c0_83 = arith.constant 0 : index
    %c1_84 = arith.constant 1 : index
    %c2_85 = arith.constant 2 : index
    %c32_86 = arith.constant 32 : index
    %81 = vector.load %arg15[%c0_83, %c1_84, %c2_85, %c32_86] : memref<2x2x5x320xf32, #tpu.memory_space<vmem>>, vector<2x1x1x256xf32>
    %82 = vector.shape_cast %81 : vector<2x1x1x256xf32> to vector<2x256xf32>
    %83 = vector.shape_cast %80 : vector<2x256xf32> to vector<2x1x1x256xf32>
    tpu.vector_store %arg15[%c0_83, %c1_84, %c2_85, %c32_86], %83 {strides = array<i32>} : memref<2x2x5x320xf32, #tpu.memory_space<vmem>>, vector<2x1x1x256xf32>,
    %84 = vector.extract_strided_slice %58 {offsets = [0, 5, 0], sizes = [2, 1, 256], strides = [1, 1, 1]} : vector<2x8x256xf32> to vector<2x1x256xf32>
    %85 = vector.shape_cast %84 : vector<2x1x256xf32> to vector<2x256xf32>
    %c0_87 = arith.constant 0 : index
    %c0_88 = arith.constant 0 : index
    %c3_89 = arith.constant 3 : index
    %c32_90 = arith.constant 32 : index
    %86 = vector.load %arg15[%c0_87, %c0_88, %c3_89, %c32_90] : memref<2x2x5x320xf32, #tpu.memory_space<vmem>>, vector<2x1x1x256xf32>
    %87 = vector.shape_cast %86 : vector<2x1x1x256xf32> to vector<2x256xf32>
    %88 = vector.shape_cast %85 : vector<2x256xf32> to vector<2x1x1x256xf32>
    tpu.vector_store %arg15[%c0_87, %c0_88, %c3_89, %c32_90], %88 {strides = array<i32>} : memref<2x2x5x320xf32, #tpu.memory_space<vmem>>, vector<2x1x1x256xf32>,
    %89 = vector.extract_strided_slice %58 {offsets = [0, 6, 0], sizes = [2, 1, 256], strides = [1, 1, 1]} : vector<2x8x256xf32> to vector<2x1x256xf32>
    %90 = vector.shape_cast %89 : vector<2x1x256xf32> to vector<2x256xf32>
    %c0_91 = arith.constant 0 : index
    %c1_92 = arith.constant 1 : index
    %c3_93 = arith.constant 3 : index
    %c32_94 = arith.constant 32 : index
    %91 = vector.load %arg15[%c0_91, %c1_92, %c3_93, %c32_94] : memref<2x2x5x320xf32, #tpu.memory_space<vmem>>, vector<2x1x1x256xf32>
    %92 = vector.shape_cast %91 : vector<2x1x1x256xf32> to vector<2x256xf32>
    %93 = vector.shape_cast %90 : vector<2x256xf32> to vector<2x1x1x256xf32>
    tpu.vector_store %arg15[%c0_91, %c1_92, %c3_93, %c32_94], %93 {strides = array<i32>} : memref<2x2x5x320xf32, #tpu.memory_space<vmem>>, vector<2x1x1x256xf32>,
    %94 = vector.extract_strided_slice %58 {offsets = [0, 7, 0], sizes = [2, 1, 256], strides = [1, 1, 1]} : vector<2x8x256xf32> to vector<2x1x256xf32>
    %95 = vector.shape_cast %94 : vector<2x1x256xf32> to vector<2x256xf32>
    %c0_95 = arith.constant 0 : index
    %c0_96 = arith.constant 0 : index
    %c4_97 = arith.constant 4 : index
    %c32_98 = arith.constant 32 : index
    %96 = vector.load %arg15[%c0_95, %c0_96, %c4_97, %c32_98] : memref<2x2x5x320xf32, #tpu.memory_space<vmem>>, vector<2x1x1x256xf32>
    %97 = vector.shape_cast %96 : vector<2x1x1x256xf32> to vector<2x256xf32>
    %98 = vector.shape_cast %95 : vector<2x256xf32> to vector<2x1x1x256xf32>
    tpu.vector_store %arg15[%c0_95, %c0_96, %c4_97, %c32_98], %98 {strides = array<i32>} : memref<2x2x5x320xf32, #tpu.memory_space<vmem>>, vector<2x1x1x256xf32>,
    %cst_99 = arith.constant 0.000000e+00 : f32
    %99 = vector.broadcast %cst_99 : f32 to vector<8x128xf32>
    %c0_100 = arith.constant 0 : index
    %c0_101 = arith.constant 0 : index
    %c0_102 = arith.constant 0 : index
    %c0_103 = arith.constant 0 : index
    %100 = vector.load %arg15[%c0_100, %c0_101, %c0_102, %c0_103] : memref<2x2x5x320xf32, #tpu.memory_space<vmem>>, vector<2x1x4x320xf32>
    %101 = vector.shape_cast %100 : vector<2x1x4x320xf32> to vector<2x4x320xf32>
    %102 = vector.shape_cast %101 : vector<2x4x320xf32> to vector<8x320xf32>
    %c0_104 = arith.constant 0 : index
    %c0_105 = arith.constant 0 : index
    %c0_106 = arith.constant 0 : index
    %103 = vector.load %arg4[%c0_104, %c0_105, %c0_106] : memref<4x320x128xf32, #tpu.memory_space<vmem>>, vector<1x320x128xf32>
    %104 = vector.shape_cast %103 : vector<1x320x128xf32> to vector<320x128xf32>
    %cst_107 = arith.constant dense<0.000000e+00> : vector<8x128xf32>
    %105 = tpu.matmul %102, %104, %cst_107 {dimension_numbers = #tpu.dot_dimension_numbers<[1], [0], [0], [1], [0, 0, 1, 1], [], []>} : vector<8x320xf32>, vector<320x128xf32>, vector<8x128xf32> -> vector<8x128xf32>
    %106 = arith.addf %99, %105 : vector<8x128xf32>
    %c0_108 = arith.constant 0 : index
    %c1_109 = arith.constant 1 : index
    %c0_110 = arith.constant 0 : index
    %c0_111 = arith.constant 0 : index
    %107 = vector.load %arg15[%c0_108, %c1_109, %c0_110, %c0_111] : memref<2x2x5x320xf32, #tpu.memory_space<vmem>>, vector<2x1x4x320xf32>
    %108 = vector.shape_cast %107 : vector<2x1x4x320xf32> to vector<2x4x320xf32>
    %109 = vector.shape_cast %108 : vector<2x4x320xf32> to vector<8x320xf32>
    %c1_112 = arith.constant 1 : index
    %c0_113 = arith.constant 0 : index
    %c0_114 = arith.constant 0 : index
    %110 = vector.load %arg4[%c1_112, %c0_113, %c0_114] : memref<4x320x128xf32, #tpu.memory_space<vmem>>, vector<1x320x128xf32>
    %111 = vector.shape_cast %110 : vector<1x320x128xf32> to vector<320x128xf32>
    %cst_115 = arith.constant dense<0.000000e+00> : vector<8x128xf32>
    %112 = tpu.matmul %109, %111, %cst_115 {dimension_numbers = #tpu.dot_dimension_numbers<[1], [0], [0], [1], [0, 0, 1, 1], [], []>} : vector<8x320xf32>, vector<320x128xf32>, vector<8x128xf32> -> vector<8x128xf32>
    %113 = arith.addf %106, %112 : vector<8x128xf32>
    %c0_116 = arith.constant 0 : index
    %c0_117 = arith.constant 0 : index
    %c1_118 = arith.constant 1 : index
    %c0_119 = arith.constant 0 : index
    %114 = vector.load %arg15[%c0_116, %c0_117, %c1_118, %c0_119] : memref<2x2x5x320xf32, #tpu.memory_space<vmem>>, vector<2x1x4x320xf32>
    %115 = vector.shape_cast %114 : vector<2x1x4x320xf32> to vector<2x4x320xf32>
    %116 = vector.shape_cast %115 : vector<2x4x320xf32> to vector<8x320xf32>
    %c2_120 = arith.constant 2 : index
    %c0_121 = arith.constant 0 : index
    %c0_122 = arith.constant 0 : index
    %117 = vector.load %arg4[%c2_120, %c0_121, %c0_122] : memref<4x320x128xf32, #tpu.memory_space<vmem>>, vector<1x320x128xf32>
    %118 = vector.shape_cast %117 : vector<1x320x128xf32> to vector<320x128xf32>
    %cst_123 = arith.constant dense<0.000000e+00> : vector<8x128xf32>
    %119 = tpu.matmul %116, %118, %cst_123 {dimension_numbers = #tpu.dot_dimension_numbers<[1], [0], [0], [1], [0, 0, 1, 1], [], []>} : vector<8x320xf32>, vector<320x128xf32>, vector<8x128xf32> -> vector<8x128xf32>
    %120 = arith.addf %113, %119 : vector<8x128xf32>
    %c0_124 = arith.constant 0 : index
    %c1_125 = arith.constant 1 : index
    %c1_126 = arith.constant 1 : index
    %c0_127 = arith.constant 0 : index
    %121 = vector.load %arg15[%c0_124, %c1_125, %c1_126, %c0_127] : memref<2x2x5x320xf32, #tpu.memory_space<vmem>>, vector<2x1x4x320xf32>
    %122 = vector.shape_cast %121 : vector<2x1x4x320xf32> to vector<2x4x320xf32>
    %123 = vector.shape_cast %122 : vector<2x4x320xf32> to vector<8x320xf32>
    %c3_128 = arith.constant 3 : index
    %c0_129 = arith.constant 0 : index
    %c0_130 = arith.constant 0 : index
    %124 = vector.load %arg4[%c3_128, %c0_129, %c0_130] : memref<4x320x128xf32, #tpu.memory_space<vmem>>, vector<1x320x128xf32>
    %125 = vector.shape_cast %124 : vector<1x320x128xf32> to vector<320x128xf32>
    %cst_131 = arith.constant dense<0.000000e+00> : vector<8x128xf32>
    %126 = tpu.matmul %123, %125, %cst_131 {dimension_numbers = #tpu.dot_dimension_numbers<[1], [0], [0], [1], [0, 0, 1, 1], [], []>} : vector<8x320xf32>, vector<320x128xf32>, vector<8x128xf32> -> vector<8x128xf32>
    %127 = arith.addf %120, %126 : vector<8x128xf32>
    %c0_132 = arith.constant 0 : index
    %c0_133 = arith.constant 0 : index
    %128 = vector.load %arg5[%c0_132, %c0_133] : memref<1x128xf32, #tpu.memory_space<vmem>>, vector<1x128xf32>
    %129 = vector.broadcast %128 : vector<1x128xf32> to vector<8x128xf32>
    %130 = arith.addf %127, %129 : vector<8x128xf32>
    %cst_134 = arith.constant 0.000000e+00 : f32
    %131 = vector.broadcast %cst_134 : f32 to vector<8x128xf32>
    %132 = arith.maximumf %130, %131 : vector<8x128xf32>
    %133 = vector.shape_cast %132 : vector<8x128xf32> to vector<2x4x128xf32>
    %134 = vector.extract_strided_slice %133 {offsets = [0, 0, 0], sizes = [2, 1, 128], strides = [1, 1, 1]} : vector<2x4x128xf32> to vector<2x1x128xf32>
    %135 = vector.shape_cast %134 : vector<2x1x128xf32> to vector<2x128xf32>
    %c0_135 = arith.constant 0 : index
    %c1_136 = arith.constant 1 : index
    %c0_137 = arith.constant 0 : index
    %c32_138 = arith.constant 32 : index
    %136 = vector.load %arg16[%c0_135, %c1_136, %c0_137, %c32_138] : memref<2x2x3x192xf32, #tpu.memory_space<vmem>>, vector<2x1x1x128xf32>
    %137 = vector.shape_cast %136 : vector<2x1x1x128xf32> to vector<2x128xf32>
    %138 = vector.shape_cast %135 : vector<2x128xf32> to vector<2x1x1x128xf32>
    tpu.vector_store %arg16[%c0_135, %c1_136, %c0_137, %c32_138], %138 {strides = array<i32>} : memref<2x2x3x192xf32, #tpu.memory_space<vmem>>, vector<2x1x1x128xf32>,
    %139 = vector.extract_strided_slice %133 {offsets = [0, 1, 0], sizes = [2, 1, 128], strides = [1, 1, 1]} : vector<2x4x128xf32> to vector<2x1x128xf32>
    %140 = vector.shape_cast %139 : vector<2x1x128xf32> to vector<2x128xf32>
    %c0_139 = arith.constant 0 : index
    %c0_140 = arith.constant 0 : index
    %c1_141 = arith.constant 1 : index
    %c32_142 = arith.constant 32 : index
    %141 = vector.load %arg16[%c0_139, %c0_140, %c1_141, %c32_142] : memref<2x2x3x192xf32, #tpu.memory_space<vmem>>, vector<2x1x1x128xf32>
    %142 = vector.shape_cast %141 : vector<2x1x1x128xf32> to vector<2x128xf32>
    %143 = vector.shape_cast %140 : vector<2x128xf32> to vector<2x1x1x128xf32>
    tpu.vector_store %arg16[%c0_139, %c0_140, %c1_141, %c32_142], %143 {strides = array<i32>} : memref<2x2x3x192xf32, #tpu.memory_space<vmem>>, vector<2x1x1x128xf32>,
    %144 = vector.extract_strided_slice %133 {offsets = [0, 2, 0], sizes = [2, 1, 128], strides = [1, 1, 1]} : vector<2x4x128xf32> to vector<2x1x128xf32>
    %145 = vector.shape_cast %144 : vector<2x1x128xf32> to vector<2x128xf32>
    %c0_143 = arith.constant 0 : index
    %c1_144 = arith.constant 1 : index
    %c1_145 = arith.constant 1 : index
    %c32_146 = arith.constant 32 : index
    %146 = vector.load %arg16[%c0_143, %c1_144, %c1_145, %c32_146] : memref<2x2x3x192xf32, #tpu.memory_space<vmem>>, vector<2x1x1x128xf32>
    %147 = vector.shape_cast %146 : vector<2x1x1x128xf32> to vector<2x128xf32>
    %148 = vector.shape_cast %145 : vector<2x128xf32> to vector<2x1x1x128xf32>
    tpu.vector_store %arg16[%c0_143, %c1_144, %c1_145, %c32_146], %148 {strides = array<i32>} : memref<2x2x3x192xf32, #tpu.memory_space<vmem>>, vector<2x1x1x128xf32>,
    %149 = vector.extract_strided_slice %133 {offsets = [0, 3, 0], sizes = [2, 1, 128], strides = [1, 1, 1]} : vector<2x4x128xf32> to vector<2x1x128xf32>
    %150 = vector.shape_cast %149 : vector<2x1x128xf32> to vector<2x128xf32>
    %c0_147 = arith.constant 0 : index
    %c0_148 = arith.constant 0 : index
    %c2_149 = arith.constant 2 : index
    %c32_150 = arith.constant 32 : index
    %151 = vector.load %arg16[%c0_147, %c0_148, %c2_149, %c32_150] : memref<2x2x3x192xf32, #tpu.memory_space<vmem>>, vector<2x1x1x128xf32>
    %152 = vector.shape_cast %151 : vector<2x1x1x128xf32> to vector<2x128xf32>
    %153 = vector.shape_cast %150 : vector<2x128xf32> to vector<2x1x1x128xf32>
    tpu.vector_store %arg16[%c0_147, %c0_148, %c2_149, %c32_150], %153 {strides = array<i32>} : memref<2x2x3x192xf32, #tpu.memory_space<vmem>>, vector<2x1x1x128xf32>,
    %cst_151 = arith.constant 0.000000e+00 : f32
    %154 = vector.broadcast %cst_151 : f32 to vector<4x64xf32>
    %c0_152 = arith.constant 0 : index
    %c0_153 = arith.constant 0 : index
    %c0_154 = arith.constant 0 : index
    %c0_155 = arith.constant 0 : index
    %155 = vector.load %arg16[%c0_152, %c0_153, %c0_154, %c0_155] : memref<2x2x3x192xf32, #tpu.memory_space<vmem>>, vector<2x1x2x192xf32>
    %156 = vector.shape_cast %155 : vector<2x1x2x192xf32> to vector<2x2x192xf32>
    %157 = vector.shape_cast %156 : vector<2x2x192xf32> to vector<4x192xf32>
    %c0_156 = arith.constant 0 : index
    %c0_157 = arith.constant 0 : index
    %c0_158 = arith.constant 0 : index
    %158 = vector.load %arg6[%c0_156, %c0_157, %c0_158] : memref<4x192x64xf32, #tpu.memory_space<vmem>>, vector<1x192x64xf32>
    %159 = vector.shape_cast %158 : vector<1x192x64xf32> to vector<192x64xf32>
    %cst_159 = arith.constant dense<0.000000e+00> : vector<4x64xf32>
    %160 = tpu.matmul %157, %159, %cst_159 {dimension_numbers = #tpu.dot_dimension_numbers<[1], [0], [0], [1], [0, 0, 1, 1], [], []>} : vector<4x192xf32>, vector<192x64xf32>, vector<4x64xf32> -> vector<4x64xf32>
    %161 = arith.addf %154, %160 : vector<4x64xf32>
    %c0_160 = arith.constant 0 : index
    %c1_161 = arith.constant 1 : index
    %c0_162 = arith.constant 0 : index
    %c0_163 = arith.constant 0 : index
    %162 = vector.load %arg16[%c0_160, %c1_161, %c0_162, %c0_163] : memref<2x2x3x192xf32, #tpu.memory_space<vmem>>, vector<2x1x2x192xf32>
    %163 = vector.shape_cast %162 : vector<2x1x2x192xf32> to vector<2x2x192xf32>
    %164 = vector.shape_cast %163 : vector<2x2x192xf32> to vector<4x192xf32>
    %c1_164 = arith.constant 1 : index
    %c0_165 = arith.constant 0 : index
    %c0_166 = arith.constant 0 : index
    %165 = vector.load %arg6[%c1_164, %c0_165, %c0_166] : memref<4x192x64xf32, #tpu.memory_space<vmem>>, vector<1x192x64xf32>
    %166 = vector.shape_cast %165 : vector<1x192x64xf32> to vector<192x64xf32>
    %cst_167 = arith.constant dense<0.000000e+00> : vector<4x64xf32>
    %167 = tpu.matmul %164, %166, %cst_167 {dimension_numbers = #tpu.dot_dimension_numbers<[1], [0], [0], [1], [0, 0, 1, 1], [], []>} : vector<4x192xf32>, vector<192x64xf32>, vector<4x64xf32> -> vector<4x64xf32>
    %168 = arith.addf %161, %167 : vector<4x64xf32>
    %c0_168 = arith.constant 0 : index
    %c0_169 = arith.constant 0 : index
    %c1_170 = arith.constant 1 : index
    %c0_171 = arith.constant 0 : index
    %169 = vector.load %arg16[%c0_168, %c0_169, %c1_170, %c0_171] : memref<2x2x3x192xf32, #tpu.memory_space<vmem>>, vector<2x1x2x192xf32>
    %170 = vector.shape_cast %169 : vector<2x1x2x192xf32> to vector<2x2x192xf32>
    %171 = vector.shape_cast %170 : vector<2x2x192xf32> to vector<4x192xf32>
    %c2_172 = arith.constant 2 : index
    %c0_173 = arith.constant 0 : index
    %c0_174 = arith.constant 0 : index
    %172 = vector.load %arg6[%c2_172, %c0_173, %c0_174] : memref<4x192x64xf32, #tpu.memory_space<vmem>>, vector<1x192x64xf32>
    %173 = vector.shape_cast %172 : vector<1x192x64xf32> to vector<192x64xf32>
    %cst_175 = arith.constant dense<0.000000e+00> : vector<4x64xf32>
    %174 = tpu.matmul %171, %173, %cst_175 {dimension_numbers = #tpu.dot_dimension_numbers<[1], [0], [0], [1], [0, 0, 1, 1], [], []>} : vector<4x192xf32>, vector<192x64xf32>, vector<4x64xf32> -> vector<4x64xf32>
    %175 = arith.addf %168, %174 : vector<4x64xf32>
    %c0_176 = arith.constant 0 : index
    %c1_177 = arith.constant 1 : index
    %c1_178 = arith.constant 1 : index
    %c0_179 = arith.constant 0 : index
    %176 = vector.load %arg16[%c0_176, %c1_177, %c1_178, %c0_179] : memref<2x2x3x192xf32, #tpu.memory_space<vmem>>, vector<2x1x2x192xf32>
    %177 = vector.shape_cast %176 : vector<2x1x2x192xf32> to vector<2x2x192xf32>
    %178 = vector.shape_cast %177 : vector<2x2x192xf32> to vector<4x192xf32>
    %c3_180 = arith.constant 3 : index
    %c0_181 = arith.constant 0 : index
    %c0_182 = arith.constant 0 : index
    %179 = vector.load %arg6[%c3_180, %c0_181, %c0_182] : memref<4x192x64xf32, #tpu.memory_space<vmem>>, vector<1x192x64xf32>
    %180 = vector.shape_cast %179 : vector<1x192x64xf32> to vector<192x64xf32>
    %cst_183 = arith.constant dense<0.000000e+00> : vector<4x64xf32>
    %181 = tpu.matmul %178, %180, %cst_183 {dimension_numbers = #tpu.dot_dimension_numbers<[1], [0], [0], [1], [0, 0, 1, 1], [], []>} : vector<4x192xf32>, vector<192x64xf32>, vector<4x64xf32> -> vector<4x64xf32>
    %182 = arith.addf %175, %181 : vector<4x64xf32>
    %c0_184 = arith.constant 0 : index
    %c0_185 = arith.constant 0 : index
    %183 = vector.load %arg7[%c0_184, %c0_185] : memref<1x64xf32, #tpu.memory_space<vmem>>, vector<1x64xf32>
    %184 = vector.broadcast %183 : vector<1x64xf32> to vector<4x64xf32>
    %185 = arith.addf %182, %184 : vector<4x64xf32>
    %cst_186 = arith.constant 0.000000e+00 : f32
    %186 = vector.broadcast %cst_186 : f32 to vector<4x64xf32>
    %187 = arith.maximumf %185, %186 : vector<4x64xf32>
    %188 = vector.shape_cast %187 : vector<4x64xf32> to vector<2x2x64xf32>
    %cst_187 = arith.constant 0.000000e+00 : f32
    %189 = vector.broadcast %cst_187 : f32 to vector<2x32xf32>
    %190 = vector.extract_strided_slice %188 {offsets = [0, 0, 0], sizes = [2, 1, 64], strides = [1, 1, 1]} : vector<2x2x64xf32> to vector<2x1x64xf32>
    %191 = vector.shape_cast %190 : vector<2x1x64xf32> to vector<2x64xf32>
    %c0_188 = arith.constant 0 : index
    %c0_189 = arith.constant 0 : index
    %c0_190 = arith.constant 0 : index
    %192 = vector.load %arg8[%c0_188, %c0_189, %c0_190] : memref<2x64x32xf32, #tpu.memory_space<vmem>>, vector<1x64x32xf32>
    %193 = vector.shape_cast %192 : vector<1x64x32xf32> to vector<64x32xf32>
    %cst_191 = arith.constant dense<0.000000e+00> : vector<2x32xf32>
    %194 = tpu.matmul %191, %193, %cst_191 {dimension_numbers = #tpu.dot_dimension_numbers<[1], [0], [0], [1], [0, 0, 1, 1], [], []>} : vector<2x64xf32>, vector<64x32xf32>, vector<2x32xf32> -> vector<2x32xf32>
    %195 = arith.addf %189, %194 : vector<2x32xf32>
    %196 = vector.extract_strided_slice %188 {offsets = [0, 1, 0], sizes = [2, 1, 64], strides = [1, 1, 1]} : vector<2x2x64xf32> to vector<2x1x64xf32>
    %197 = vector.shape_cast %196 : vector<2x1x64xf32> to vector<2x64xf32>
    %c1_192 = arith.constant 1 : index
    %c0_193 = arith.constant 0 : index
    %c0_194 = arith.constant 0 : index
    %198 = vector.load %arg8[%c1_192, %c0_193, %c0_194] : memref<2x64x32xf32, #tpu.memory_space<vmem>>, vector<1x64x32xf32>
    %199 = vector.shape_cast %198 : vector<1x64x32xf32> to vector<64x32xf32>
    %cst_195 = arith.constant dense<0.000000e+00> : vector<2x32xf32>
    %200 = tpu.matmul %197, %199, %cst_195 {dimension_numbers = #tpu.dot_dimension_numbers<[1], [0], [0], [1], [0, 0, 1, 1], [], []>} : vector<2x64xf32>, vector<64x32xf32>, vector<2x32xf32> -> vector<2x32xf32>
    %201 = arith.addf %195, %200 : vector<2x32xf32>
    %c0_196 = arith.constant 0 : index
    %c0_197 = arith.constant 0 : index
    %202 = vector.load %arg9[%c0_196, %c0_197] : memref<1x32xf32, #tpu.memory_space<vmem>>, vector<1x32xf32>
    %203 = vector.broadcast %202 : vector<1x32xf32> to vector<2x32xf32>
    %204 = arith.addf %201, %203 : vector<2x32xf32>
    %cst_198 = arith.constant 0.000000e+00 : f32
    %205 = vector.broadcast %cst_198 : f32 to vector<2x32xf32>
    %206 = arith.maximumf %204, %205 : vector<2x32xf32>
    %c0_199 = arith.constant 0 : index
    %c0_200 = arith.constant 0 : index
    %207 = vector.load %arg10[%c0_199, %c0_200] : memref<32x32xf32, #tpu.memory_space<vmem>>, vector<32x32xf32>
    %cst_201 = arith.constant dense<0.000000e+00> : vector<2x32xf32>
    %208 = tpu.matmul %206, %207, %cst_201 {dimension_numbers = #tpu.dot_dimension_numbers<[1], [0], [0], [1], [0, 0, 1, 1], [], []>} : vector<2x32xf32>, vector<32x32xf32>, vector<2x32xf32> -> vector<2x32xf32>
    %c0_202 = arith.constant 0 : index
    %c0_203 = arith.constant 0 : index
    %209 = vector.load %arg11[%c0_202, %c0_203] : memref<1x32xf32, #tpu.memory_space<vmem>>, vector<1x32xf32>
    %210 = vector.broadcast %209 : vector<1x32xf32> to vector<2x32xf32>
    %211 = arith.addf %208, %210 : vector<2x32xf32>
    %cst_204 = arith.constant 0.000000e+00 : f32
    %212 = vector.broadcast %cst_204 : f32 to vector<2x32xf32>
    %213 = arith.maximumf %211, %212 : vector<2x32xf32>
    %c0_205 = arith.constant 0 : index
    %c0_206 = arith.constant 0 : index
    %214 = vector.load %arg12[%c0_205, %c0_206] : memref<32x20xf32, #tpu.memory_space<vmem>>, vector<32x20xf32>
    %cst_207 = arith.constant dense<0.000000e+00> : vector<2x20xf32>
    %215 = tpu.matmul %213, %214, %cst_207 {dimension_numbers = #tpu.dot_dimension_numbers<[1], [0], [0], [1], [0, 0, 1, 1], [], []>} : vector<2x32xf32>, vector<32x20xf32>, vector<2x20xf32> -> vector<2x20xf32>
    %c0_208 = arith.constant 0 : index
    %c0_209 = arith.constant 0 : index
    %216 = vector.load %arg13[%c0_208, %c0_209] : memref<1x20xf32, #tpu.memory_space<vmem>>, vector<1x20xf32>
    %217 = vector.broadcast %216 : vector<1x20xf32> to vector<2x20xf32>
    %218 = arith.addf %215, %217 : vector<2x20xf32>
    %219 = vector.shape_cast %218 : vector<2x20xf32> to vector<2x1x20xf32>
    %c0_210 = arith.constant 0 : index
    %c0_211 = arith.constant 0 : index
    %c0_212 = arith.constant 0 : index
    %220 = vector.load %arg14[%c0_210, %c0_211, %c0_212] : memref<2x1x20xf32, #tpu.memory_space<vmem>>, vector<2x1x20xf32>
    tpu.vector_store %arg14[%c0_210, %c0_211, %c0_212], %219 {strides = array<i32>} : memref<2x1x20xf32, #tpu.memory_space<vmem>>, vector<2x1x20xf32>,
    return
  }
  func.func @transform_0(%arg0: i32) -> (i32, i32, i32, i32) {
    %c0_i32 = arith.constant 0 : i32
    %c0_i32_0 = arith.constant 0 : i32
    %c0_i32_1 = arith.constant 0 : i32
    %c0_i32_2 = arith.constant 0 : i32
    return %arg0, %c0_i32, %c0_i32_0, %c0_i32_1 : i32, i32, i32, i32
  }
  func.func @transform_1(%arg0: i32) -> (i32, i32, i32) {
    %c0_i32 = arith.constant 0 : i32
    %c0_i32_0 = arith.constant 0 : i32
    %c0_i32_1 = arith.constant 0 : i32
    %c0_i32_2 = arith.constant 0 : i32
    return %c0_i32, %c0_i32_0, %c0_i32_1 : i32, i32, i32
  }
  func.func @transform_2(%arg0: i32) -> (i32, i32) {
    %c0_i32 = arith.constant 0 : i32
    %c0_i32_0 = arith.constant 0 : i32
    %c0_i32_1 = arith.constant 0 : i32
    return %c0_i32, %c0_i32_0 : i32, i32
  }
  func.func @transform_3(%arg0: i32) -> (i32, i32, i32) {
    %c0_i32 = arith.constant 0 : i32
    %c0_i32_0 = arith.constant 0 : i32
    %c0_i32_1 = arith.constant 0 : i32
    %c0_i32_2 = arith.constant 0 : i32
    return %c0_i32, %c0_i32_0, %c0_i32_1 : i32, i32, i32
  }
  func.func @transform_4(%arg0: i32) -> (i32, i32) {
    %c0_i32 = arith.constant 0 : i32
    %c0_i32_0 = arith.constant 0 : i32
    %c0_i32_1 = arith.constant 0 : i32
    return %c0_i32, %c0_i32_0 : i32, i32
  }
  func.func @transform_5(%arg0: i32) -> (i32, i32, i32) {
    %c0_i32 = arith.constant 0 : i32
    %c0_i32_0 = arith.constant 0 : i32
    %c0_i32_1 = arith.constant 0 : i32
    %c0_i32_2 = arith.constant 0 : i32
    return %c0_i32, %c0_i32_0, %c0_i32_1 : i32, i32, i32
  }
  func.func @transform_6(%arg0: i32) -> (i32, i32) {
    %c0_i32 = arith.constant 0 : i32
    %c0_i32_0 = arith.constant 0 : i32
    %c0_i32_1 = arith.constant 0 : i32
    return %c0_i32, %c0_i32_0 : i32, i32
  }
  func.func @transform_7(%arg0: i32) -> (i32, i32, i32) {
    %c0_i32 = arith.constant 0 : i32
    %c0_i32_0 = arith.constant 0 : i32
    %c0_i32_1 = arith.constant 0 : i32
    %c0_i32_2 = arith.constant 0 : i32
    return %c0_i32, %c0_i32_0, %c0_i32_1 : i32, i32, i32
  }
  func.func @transform_8(%arg0: i32) -> (i32, i32) {
    %c0_i32 = arith.constant 0 : i32
    %c0_i32_0 = arith.constant 0 : i32
    %c0_i32_1 = arith.constant 0 : i32
    return %c0_i32, %c0_i32_0 : i32, i32
  }
  func.func @transform_9(%arg0: i32) -> (i32, i32) {
    %c0_i32 = arith.constant 0 : i32
    %c0_i32_0 = arith.constant 0 : i32
    %c0_i32_1 = arith.constant 0 : i32
    return %c0_i32, %c0_i32_0 : i32, i32
  }
  func.func @transform_10(%arg0: i32) -> (i32, i32) {
    %c0_i32 = arith.constant 0 : i32
    %c0_i32_0 = arith.constant 0 : i32
    %c0_i32_1 = arith.constant 0 : i32
    return %c0_i32, %c0_i32_0 : i32, i32
  }
  func.func @transform_11(%arg0: i32) -> (i32, i32) {
    %c0_i32 = arith.constant 0 : i32
    %c0_i32_0 = arith.constant 0 : i32
    %c0_i32_1 = arith.constant 0 : i32
    return %c0_i32, %c0_i32_0 : i32, i32
  }
  func.func @transform_12(%arg0: i32) -> (i32, i32) {
    %c0_i32 = arith.constant 0 : i32
    %c0_i32_0 = arith.constant 0 : i32
    %c0_i32_1 = arith.constant 0 : i32
    return %c0_i32, %c0_i32_0 : i32, i32
  }
  func.func @transform_13(%arg0: i32) -> (i32, i32, i32) {
    %c0_i32 = arith.constant 0 : i32
    %c0_i32_0 = arith.constant 0 : i32
    %c0_i32_1 = arith.constant 0 : i32
    return %arg0, %c0_i32, %c0_i32_0 : i32, i32, i32
  }
}

</mosaic_0001>

<llo_original>
// kernel: encoder_forward.1
$region0: #{encoder_forward.1}
  #allocation0 [shape = 'u32[]', space=smem, size = 0x4, offset = 0x4, fixed_abs, tag = 'smem constant byte address 0x4 - core index']
  #allocation1 [shape = 'u32[144,128]{1,0:T(1,128)}', space=vmem, size = 0x12000, scoped, tag = 'internal scratch']
  #allocation2 [shape = 'f32[2,2,5,320]{3,2,1,0:T(8,128)}', space=vmem, size = 0xc000, scoped, tag = 'scratch operand']
  #allocation3 [shape = 'f32[2,2,3,192]{3,2,1,0:T(4,128)}', space=vmem, size = 0x4000, scoped, tag = 'scratch operand']
  %s0 = inlined_call_operand.vmem [shape: f32[2,2,9,72], index: 0, kind: input, shape index: {}]
  %s1 = inlined_call_operand.vmem [shape: f32[4,72,256], index: 1, kind: input, shape index: {}]
  %s2 = inlined_call_operand.vmem [shape: f32[1,256], index: 2, kind: input, shape index: {}]
  %s3 = inlined_call_operand.vmem [shape: f32[4,320,128], index: 3, kind: input, shape index: {}]
  %s4 = inlined_call_operand.vmem [shape: f32[1,128], index: 4, kind: input, shape index: {}]
  %s5 = inlined_call_operand.vmem [shape: f32[4,192,64], index: 5, kind: input, shape index: {}]
  %s6 = inlined_call_operand.vmem [shape: f32[1,64], index: 6, kind: input, shape index: {}]
  %s7 = inlined_call_operand.vmem [shape: f32[2,64,32], index: 7, kind: input, shape index: {}]
  %s8 = inlined_call_operand.vmem [shape: f32[1,32], index: 8, kind: input, shape index: {}]
  %s9 = inlined_call_operand.vmem [shape: f32[32,32], index: 9, kind: input, shape index: {}]
  %s10 = inlined_call_operand.vmem [shape: f32[1,32], index: 10, kind: input, shape index: {}]
  %s11 = inlined_call_operand.vmem [shape: f32[32,20], index: 11, kind: input, shape index: {}]
  %s12 = inlined_call_operand.vmem [shape: f32[1,20], index: 12, kind: input, shape index: {}]
  %s13 = inlined_call_operand.vmem [shape: f32[2,1,20], index: 13, kind: output, shape index: {}]
  %s14 = sld [smem:[#allocation0]]
  $region62: #{encoder_forward.1} parent=0
    _
  %s16 = ssub.s32 1, %s14
  %s17 = scalar_select 0, %s16, %s14
  // Predicated region
  $region2: #{encoder_forward.1} parent=0 // pred_check
    _
  $region3: #{encoder_forward.1} parent=0 // pred_check_branch
    %19 = sbr.rel (0) target = $region5
  $region4: #{encoder_forward.1} parent=0 // pred_region
    _
  $region5: #{encoder_forward.1} parent=0 // pred_fallthru
    _
  // Predicated region
  $region6: #{encoder_forward.1} parent=0 // pred_check
    _
  $region7: #{encoder_forward.1} parent=0 // pred_check_branch
    %21 = sbr.rel (0) target = $region9
  $region8: #{encoder_forward.1} parent=0 // pred_region
    _
  $region9: #{encoder_forward.1} parent=0 // pred_fallthru
    _
  // Predicated region
  $region10: #{encoder_forward.1} parent=0 // pred_check
    _
  $region11: #{encoder_forward.1} parent=0 // pred_check_branch
    %23 = sbr.rel (0) target = $region13
  $region12: #{encoder_forward.1} parent=0 // pred_region
    _
  $region13: #{encoder_forward.1} parent=0 // pred_fallthru
    _
  // Predicated region
  $region14: #{encoder_forward.1} parent=0 // pred_check
    _
  $region15: #{encoder_forward.1} parent=0 // pred_check_branch
    %25 = sbr.rel (0) target = $region17
  $region16: #{encoder_forward.1} parent=0 // pred_region
    _
  $region17: #{encoder_forward.1} parent=0 // pred_fallthru
    _
  // Predicated region
  $region18: #{encoder_forward.1} parent=0 // pred_check
    _
  $region19: #{encoder_forward.1} parent=0 // pred_check_branch
    %27 = sbr.rel (0) target = $region21
  $region20: #{encoder_forward.1} parent=0 // pred_region
    _
  $region21: #{encoder_forward.1} parent=0 // pred_fallthru
    _
  // Predicated region
  $region22: #{encoder_forward.1} parent=0 // pred_check
    _
  $region23: #{encoder_forward.1} parent=0 // pred_check_branch
    %29 = sbr.rel (0) target = $region25
  $region24: #{encoder_forward.1} parent=0 // pred_region
    _
  $region25: #{encoder_forward.1} parent=0 // pred_fallthru
    _
  // Predicated region
  $region26: #{encoder_forward.1} parent=0 // pred_check
    _
  $region27: #{encoder_forward.1} parent=0 // pred_check_branch
    %31 = sbr.rel (0) target = $region29
  $region28: #{encoder_forward.1} parent=0 // pred_region
    _
  $region29: #{encoder_forward.1} parent=0 // pred_fallthru
    _
  // Predicated region
  $region30: #{encoder_forward.1} parent=0 // pred_check
    _
  $region31: #{encoder_forward.1} parent=0 // pred_check_branch
    %33 = sbr.rel (0) target = $region33
  $region32: #{encoder_forward.1} parent=0 // pred_region
    _
  $region33: #{encoder_forward.1} parent=0 // pred_fallthru
    _
  // Predicated region
  $region34: #{encoder_forward.1} parent=0 // pred_check
    _
  $region35: #{encoder_forward.1} parent=0 // pred_check_branch
    %35 = sbr.rel (0) target = $region37
  $region36: #{encoder_forward.1} parent=0 // pred_region
    _
  $region37: #{encoder_forward.1} parent=0 // pred_fallthru
    _
  // Predicated region
  $region38: #{encoder_forward.1} parent=0 // pred_check
    _
  $region39: #{encoder_forward.1} parent=0 // pred_check_branch
    %37 = sbr.rel (0) target = $region41
  $region40: #{encoder_forward.1} parent=0 // pred_region
    _
  $region41: #{encoder_forward.1} parent=0 // pred_fallthru
    _
  // Predicated region
  $region42: #{encoder_forward.1} parent=0 // pred_check
    _
  $region43: #{encoder_forward.1} parent=0 // pred_check_branch
    %39 = sbr.rel (0) target = $region45
  $region44: #{encoder_forward.1} parent=0 // pred_region
    _
  $region45: #{encoder_forward.1} parent=0 // pred_fallthru
    _
  // Predicated region
  $region46: #{encoder_forward.1} parent=0 // pred_check
    _
  $region47: #{encoder_forward.1} parent=0 // pred_check_branch
    %41 = sbr.rel (0) target = $region49
  $region48: #{encoder_forward.1} parent=0 // pred_region
    _
  $region49: #{encoder_forward.1} parent=0 // pred_fallthru
    _
  // Predicated region
  $region50: #{encoder_forward.1} parent=0 // pred_check
    _
  $region51: #{encoder_forward.1} parent=0 // pred_check_branch
    %43 = sbr.rel (0) target = $region53
  $region52: #{encoder_forward.1} parent=0 // pred_region
    _
  $region53: #{encoder_forward.1} parent=0 // pred_fallthru
    _
  %v44 = vlaneseq
  %vm45 = vcmp.ge.s32.totalorder %v44, 0
  %vm46 = vcmp.lt.s32.totalorder %v44, 320
  %vm47 = vmand %vm45, %vm46
  %48 = vst.msk [vmem:[#allocation2] ss:$8 sm:$0x7] %vm47, 0.0
  %49 = vst.msk [vmem:[#allocation2] ss:$8 sm:$0x0] %vm47, 0.0
  %s50 = scalar_lea.vmem [#allocation2], 48
  %51 = vst.msk [vmem:[%s50] ss:$8 sm:$0x7] %vm47, 0.0
  %52 = vst.msk [vmem:[%s50] ss:$8 sm:$0x0] %vm47, 0.0
  %s53 = scalar_lea.vmem [#allocation2], 24
  %s54 = scalar_lea.vmem %s53, 4 [#allocation2]
  %55 = vst.msk [vmem:[%s54] ss:$8 sm:$0x7] %vm47, 0.0
  %56 = vst.msk [vmem:[%s54] ss:$8 sm:$0x0] %vm47, 0.0
  %s57 = scalar_lea.vmem %s53, 52 [#allocation2]
  %58 = vst.msk [vmem:[%s57] ss:$8 sm:$0x7] %vm47, 0.0
  %59 = vst.msk [vmem:[%s57] ss:$8 sm:$0x0] %vm47, 0.0
  %vm60 = vcmask 258048
  %61 = vst.msk [vmem:[#allocation2] sm:$0x1f] %vm60, 0.0
  %62 = vst.msk [vmem:[#allocation2 + $0x18] sm:$0x1f] %vm60, 0.0
  %63 = vst.msk [vmem:[#allocation2 + $0x30] sm:$0x1f] %vm60, 0.0
  %64 = vst.msk [vmem:[#allocation2 + $0x48] sm:$0x1f] %vm60, 0.0
  %vm65 = vcmask 520448
  %66 = vst.msk [vmem:[#allocation2 + $0x10] sm:$0x1f] %vm65, 0.0
  %67 = vst.msk [vmem:[#allocation2 + $0x28] sm:$0x1f] %vm65, 0.0
  %68 = vst.msk [vmem:[#allocation2 + $0x40] sm:$0x1f] %vm65, 0.0
  %69 = vst.msk [vmem:[#allocation2 + $0x58] sm:$0x1f] %vm65, 0.0
  %vm70 = vcmp.lt.s32.totalorder %v44, 192
  %vm71 = vmand %vm45, %vm70
  %72 = vst.msk [vmem:[#allocation3] ss:$4 sm:$0x3] %vm71, 0.0
  %s73 = scalar_lea.vmem [#allocation3], 16
  %74 = vst.msk [vmem:[%s73] ss:$4 sm:$0x3] %vm71, 0.0
  %s75 = scalar_lea.vmem [#allocation3], 8
  %s76 = scalar_lea.vmem %s75, 2 [#allocation3]
  %77 = vst.msk [vmem:[%s76] ss:$4 sm:$0x3] %vm71, 0.0
  %s78 = scalar_lea.vmem %s75, 18 [#allocation3]
  %79 = vst.msk [vmem:[%s78] ss:$4 sm:$0x3] %vm71, 0.0
  %vm80 = vcmask 256000
  %81 = vst.msk [vmem:[#allocation3] sm:$0x7] %vm80, 0.0
  %82 = vst.msk [vmem:[#allocation3 + $0x8] sm:$0x7] %vm80, 0.0
  %83 = vst.msk [vmem:[#allocation3 + $0x10] sm:$0x7] %vm80, 0.0
  %84 = vst.msk [vmem:[#allocation3 + $0x18] sm:$0x7] %vm80, 0.0
  %vm85 = vcmask 518400
  %86 = vst.msk [vmem:[#allocation3 + $0x4] sm:$0x7] %vm85, 0.0
  %87 = vst.msk [vmem:[#allocation3 + $0xc] sm:$0x7] %vm85, 0.0
  %88 = vst.msk [vmem:[#allocation3 + $0x14] sm:$0x7] %vm85, 0.0
  %89 = vst.msk [vmem:[#allocation3 + $0x1c] sm:$0x7] %vm85, 0.0
  %v90 = vld [vmem:[%s0] sm:$0xff]
  %v91 = vld [vmem:[%s0 + $0x20] sm:$0xff]
  %v92 = vld [vmem:[%s1] sm:$0xff]
  %v93 = vld [vmem:[%s1 + $0x8] sm:$0xff]
  %v94 = vld [vmem:[%s1 + $0x10] sm:$0xff]
  %v95 = vld [vmem:[%s1 + $0x18] sm:$0xff]
  %v96 = vld [vmem:[%s1 + $0x20] sm:$0xff]
  %v97 = vld [vmem:[%s1 + $0x28] sm:$0xff]
  %v98 = vld [vmem:[%s1 + $0x30] sm:$0xff]
  %v99 = vld [vmem:[%s1 + $0x38] sm:$0xff]
  %v100 = vld [vmem:[%s1 + $0x40] sm:$0xff]
  %v101 = vld [vmem:[%s1 + $0x48] sm:$0xff]
  %v102 = vld [vmem:[%s1 + $0x50] sm:$0xff]
  %v103 = vld [vmem:[%s1 + $0x58] sm:$0xff]
  %v104 = vld [vmem:[%s1 + $0x60] sm:$0xff]
  %v105 = vld [vmem:[%s1 + $0x68] sm:$0xff]
  %v106 = vld [vmem:[%s1 + $0x70] sm:$0xff]
  %v107 = vld [vmem:[%s1 + $0x78] sm:$0xff]
  %v108 = vld [vmem:[%s1 + $0x80] sm:$0xff]
  %v109 = vld [vmem:[%s1 + $0x88] sm:$0xff]
  %s110 = scalar_lea.vmem %s0, 16
  %v111 = vld [vmem:[%s110] sm:$0xff]
  %v112 = vld [vmem:[%s110 + $0x20] sm:$0xff]
  %s113 = scalar_lea.vmem %s1, 144
  %v114 = vld [vmem:[%s113] sm:$0xff]
  %v115 = vld [vmem:[%s113 + $0x8] sm:$0xff]
  %v116 = vld [vmem:[%s113 + $0x10] sm:$0xff]
  %v117 = vld [vmem:[%s113 + $0x18] sm:$0xff]
  %v118 = vld [vmem:[%s113 + $0x20] sm:$0xff]
  %v119 = vld [vmem:[%s113 + $0x28] sm:$0xff]
  %v120 = vld [vmem:[%s113 + $0x30] sm:$0xff]
  %v121 = vld [vmem:[%s113 + $0x38] sm:$0xff]
  %v122 = vld [vmem:[%s113 + $0x40] sm:$0xff]
  %v123 = vld [vmem:[%s113 + $0x48] sm:$0xff]
  %v124 = vld [vmem:[%s113 + $0x50] sm:$0xff]
  %v125 = vld [vmem:[%s113 + $0x58] sm:$0xff]
  %v126 = vld [vmem:[%s113 + $0x60] sm:$0xff]
  %v127 = vld [vmem:[%s113 + $0x68] sm:$0xff]
  %v128 = vld [vmem:[%s113 + $0x70] sm:$0xff]
  %v129 = vld [vmem:[%s113 + $0x78] sm:$0xff]
  %v130 = vld [vmem:[%s113 + $0x80] sm:$0xff]
  %v131 = vld [vmem:[%s113 + $0x88] sm:$0xff]
  %vm132 = vcmask 588800
  %v134 = vsel %vm132, %v111, 0
  %v137 = vsel %vm132, %v112, 0
  %139 = vmatprep.subr.mxu0 %v115
  %140 = vmatpush1.msra.mxu0 %v114
  %141 = vmatprep.subr.mxu0 %v117
  %142 = vmatpush1.msra.mxu0 %v116
  %143 = vmatprep.subr.mxu0 %v119
  %144 = vmatpush1.msra.mxu0 %v118
  %145 = vmatprep.subr.mxu0 %v121
  %146 = vmatpush1.msra.mxu0 %v120
  %147 = vmatprep.subr.mxu0 %v123
  %148 = vmatpush1.msra.mxu0 %v122
  %149 = vmatprep.subr.mxu0 %v125
  %150 = vmatpush1.msra.mxu0 %v124
  %151 = vmatprep.subr.mxu0 %v127
  %152 = vmatpush1.msra.mxu0 %v126
  %153 = vmatprep.subr.mxu0 %v129
  %154 = vmatpush1.msra.mxu0 %v128
  %155 = vmatprep.subr.mxu0 %v131
  %156 = vmatpush1.msra.mxu0 %v130
  %157 = vmatprep.subr.mxu0 0.0
  %158 = vmatpush1.msra.mxu0 0.0
  %159 = vmatprep.subr.mxu0 0.0
  %160 = vmatpush1.msra.mxu0 0.0
  %161 = vmatprep.subr.mxu0 0.0
  %162 = vmatpush1.msra.mxu0 0.0
  %163 = vmatprep.subr.mxu0 0.0
  %164 = vmatpush1.msra.mxu0 0.0
  %165 = vmatprep.subr.mxu0 0.0
  %166 = vmatpush1.msra.mxu0 0.0
  %167 = vmatprep.subr.mxu0 0.0
  %168 = vmatpush1.msra.mxu0 0.0
  %169 = vmatprep.subr.mxu0 0.0
  %170 = vmatpush1.msra.mxu0 0.0
  %171 = vmatprep.subr.mxu0 0.0
  %172 = vmatpush1.msra.mxu0 0.0
  %173 = vmatprep.subr.mxu0 0.0
  %174 = vmatpush1.msra.mxu0 0.0
  %175 = vmatprep.subr.mxu0 0.0
  %176 = vmatpush1.msra.mxu0 0.0
  %177 = vmatprep.subr.mxu0 0.0
  %178 = vmatpush1.msra.mxu0 0.0
  %179 = vmatprep.subr.mxu0 0.0
  %180 = vmatpush1.msra.mxu0 0.0
  %181 = vmatprep.subr.mxu0 0.0
  %182 = vmatpush1.msra.mxu0 0.0
  %183 = vmatprep.subr.mxu0 0.0
  %184 = vmatpush1.msra.mxu0 0.0
  %185 = vmatprep.subr.mxu0 0.0
  %186 = vmatpush1.msra.mxu0 0.0
  %187 = vmatprep.subr.mxu0 0.0
  %188 = vmatpush1.msra.mxu0 0.0
  %189 = vmatprep.subr.mxu0 0.0
  %190 = vmatpush1.msra.mxu0 0.0
  %191 = vmatprep.subr.mxu0 0.0
  %192 = vmatpush1.msra.mxu0 0.0
  %193 = vmatprep.subr.mxu0 0.0
  %194 = vmatpush1.msra.mxu0 0.0
  %195 = vmatprep.subr.mxu0 0.0
  %196 = vmatpush1.msra.mxu0 0.0
  %197 = vmatprep.subr.mxu0 0.0
  %198 = vmatpush1.msra.mxu0 0.0
  %199 = vmatprep.subr.mxu0 0.0
  %200 = vmatpush1.msra.mxu0 0.0
  %201 = vmatprep.subr.mxu0 0.0
  %202 = vmatpush1.msra.mxu0 0.0
  %203 = vmatprep.mubr.f32.mxu0 0.0
  %204 = vmatmul.mubr.f32.gmra.mrb[0].mxu0 %v134
  %v205 = vpop.f32.mrb[0].mxu0
  %v206 = vadd.f32 0.0, %v205
  %v207 = vpop.f32.mrb[0].mxu0
  %v208 = vadd.f32 0.0, %v207
  %209 = vmatprep.mubr.f32.mxu0 0.0
  %210 = vmatmul.mubr.f32.gmra.mrb[0].mxu0 %v137
  %v211 = vpop.f32.mrb[0].mxu0
  %v212 = vadd.f32 0.0, %v211
  %v213 = vpop.f32.mrb[0].mxu0
  %v214 = vadd.f32 0.0, %v213
  %215 = vdwg.mxu0
  %v217 = vsel %vm132, %v90, 0
  %v220 = vsel %vm132, %v91, 0
  %222 = vmatprep.subr.mxu0 %v93
  %223 = vmatpush1.msra.mxu0 %v92
  %224 = vmatprep.subr.mxu0 %v95
  %225 = vmatpush1.msra.mxu0 %v94
  %226 = vmatprep.subr.mxu0 %v97
  %227 = vmatpush1.msra.mxu0 %v96
  %228 = vmatprep.subr.mxu0 %v99
  %229 = vmatpush1.msra.mxu0 %v98
  %230 = vmatprep.subr.mxu0 %v101
  %231 = vmatpush1.msra.mxu0 %v100
  %232 = vmatprep.subr.mxu0 %v103
  %233 = vmatpush1.msra.mxu0 %v102
  %234 = vmatprep.subr.mxu0 %v105
  %235 = vmatpush1.msra.mxu0 %v104
  %236 = vmatprep.subr.mxu0 %v107
  %237 = vmatpush1.msra.mxu0 %v106
  %238 = vmatprep.subr.mxu0 %v109
  %239 = vmatpush1.msra.mxu0 %v108
  %240 = vmatprep.subr.mxu0 0.0
  %241 = vmatpush1.msra.mxu0 0.0
  %242 = vmatprep.subr.mxu0 0.0
  %243 = vmatpush1.msra.mxu0 0.0
  %244 = vmatprep.subr.mxu0 0.0
  %245 = vmatpush1.msra.mxu0 0.0
  %246 = vmatprep.subr.mxu0 0.0
  %247 = vmatpush1.msra.mxu0 0.0
  %248 = vmatprep.subr.mxu0 0.0
  %249 = vmatpush1.msra.mxu0 0.0
  %250 = vmatprep.subr.mxu0 0.0
  %251 = vmatpush1.msra.mxu0 0.0
  %252 = vmatprep.subr.mxu0 0.0
  %253 = vmatpush1.msra.mxu0 0.0
  %254 = vmatprep.subr.mxu0 0.0
  %255 = vmatpush1.msra.mxu0 0.0
  %256 = vmatprep.subr.mxu0 0.0
  %257 = vmatpush1.msra.mxu0 0.0
  %258 = vmatprep.subr.mxu0 0.0
  %259 = vmatpush1.msra.mxu0 0.0
  %260 = vmatprep.subr.mxu0 0.0
  %261 = vmatpush1.msra.mxu0 0.0
  %262 = vmatprep.subr.mxu0 0.0
  %263 = vmatpush1.msra.mxu0 0.0
  %264 = vmatprep.subr.mxu0 0.0
  %265 = vmatpush1.msra.mxu0 0.0
  %266 = vmatprep.subr.mxu0 0.0
  %267 = vmatpush1.msra.mxu0 0.0
  %268 = vmatprep.subr.mxu0 0.0
  %269 = vmatpush1.msra.mxu0 0.0
  %270 = vmatprep.subr.mxu0 0.0
  %271 = vmatpush1.msra.mxu0 0.0
  %272 = vmatprep.subr.mxu0 0.0
  %273 = vmatpush1.msra.mxu0 0.0
  %274 = vmatprep.subr.mxu0 0.0
  %275 = vmatpush1.msra.mxu0 0.0
  %276 = vmatprep.subr.mxu0 0.0
  %277 = vmatpush1.msra.mxu0 0.0
  %278 = vmatprep.subr.mxu0 0.0
  %279 = vmatpush1.msra.mxu0 0.0
  %280 = vmatprep.subr.mxu0 0.0
  %281 = vmatpush1.msra.mxu0 0.0
  %282 = vmatprep.subr.mxu0 0.0
  %283 = vmatpush1.msra.mxu0 0.0
  %284 = vmatprep.subr.mxu0 0.0
  %285 = vmatpush1.msra.mxu0 0.0
  %286 = vmatprep.mubr.f32.mxu0 0.0
  %287 = vmatmul.mubr.f32.gmra.mrb[0].mxu0 %v217
  %v288 = vpop.f32.mrb[0].mxu0
  %v289 = vadd.f32 %v206, %v288
  %v290 = vpop.f32.mrb[0].mxu0
  %v291 = vadd.f32 %v208, %v290
  %292 = vmatprep.mubr.f32.mxu0 0.0
  %293 = vmatmul.mubr.f32.gmra.mrb[0].mxu0 %v220
  %v294 = vpop.f32.mrb[0].mxu0
  %v295 = vadd.f32 %v212, %v294
  %v296 = vpop.f32.mrb[0].mxu0
  %v297 = vadd.f32 %v214, %v296
  %298 = vdwg.mxu0
  %v299 = vld [vmem:[%s0 + $0x1] sm:$0xff]
  %v300 = vld [vmem:[%s0 + $0x21] sm:$0xff]
  %s301 = scalar_lea.vmem %s1, 288
  %v302 = vld [vmem:[%s301] sm:$0xff]
  %v303 = vld [vmem:[%s301 + $0x8] sm:$0xff]
  %v304 = vld [vmem:[%s301 + $0x10] sm:$0xff]
  %v305 = vld [vmem:[%s301 + $0x18] sm:$0xff]
  %v306 = vld [vmem:[%s301 + $0x20] sm:$0xff]
  %v307 = vld [vmem:[%s301 + $0x28] sm:$0xff]
  %v308 = vld [vmem:[%s301 + $0x30] sm:$0xff]
  %v309 = vld [vmem:[%s301 + $0x38] sm:$0xff]
  %v310 = vld [vmem:[%s301 + $0x40] sm:$0xff]
  %v311 = vld [vmem:[%s301 + $0x48] sm:$0xff]
  %v312 = vld [vmem:[%s301 + $0x50] sm:$0xff]
  %v313 = vld [vmem:[%s301 + $0x58] sm:$0xff]
  %v314 = vld [vmem:[%s301 + $0x60] sm:$0xff]
  %v315 = vld [vmem:[%s301 + $0x68] sm:$0xff]
  %v316 = vld [vmem:[%s301 + $0x70] sm:$0xff]
  %v317 = vld [vmem:[%s301 + $0x78] sm:$0xff]
  %v318 = vld [vmem:[%s301 + $0x80] sm:$0xff]
  %v319 = vld [vmem:[%s301 + $0x88] sm:$0xff]
  %v321 = vsel %vm132, %v299, 0
  %v324 = vsel %vm132, %v300, 0
  %326 = vmatprep.subr.mxu0 %v303
  %327 = vmatpush1.msra.mxu0 %v302
  %328 = vmatprep.subr.mxu0 %v305
  %329 = vmatpush1.msra.mxu0 %v304
  %330 = vmatprep.subr.mxu0 %v307
  %331 = vmatpush1.msra.mxu0 %v306
  %332 = vmatprep.subr.mxu0 %v309
  %333 = vmatpush1.msra.mxu0 %v308
  %334 = vmatprep.subr.mxu0 %v311
  %335 = vmatpush1.msra.mxu0 %v310
  %336 = vmatprep.subr.mxu0 %v313
  %337 = vmatpush1.msra.mxu0 %v312
  %338 = vmatprep.subr.mxu0 %v315
  %339 = vmatpush1.msra.mxu0 %v314
  %340 = vmatprep.subr.mxu0 %v317
  %341 = vmatpush1.msra.mxu0 %v316
  %342 = vmatprep.subr.mxu0 %v319
  %343 = vmatpush1.msra.mxu0 %v318
  %344 = vmatprep.subr.mxu0 0.0
  %345 = vmatpush1.msra.mxu0 0.0
  %346 = vmatprep.subr.mxu0 0.0
  %347 = vmatpush1.msra.mxu0 0.0
  %348 = vmatprep.subr.mxu0 0.0
  %349 = vmatpush1.msra.mxu0 0.0
  %350 = vmatprep.subr.mxu0 0.0
  %351 = vmatpush1.msra.mxu0 0.0
  %352 = vmatprep.subr.mxu0 0.0
  %353 = vmatpush1.msra.mxu0 0.0
  %354 = vmatprep.subr.mxu0 0.0
  %355 = vmatpush1.msra.mxu0 0.0
  %356 = vmatprep.subr.mxu0 0.0
  %357 = vmatpush1.msra.mxu0 0.0
  %358 = vmatprep.subr.mxu0 0.0
  %359 = vmatpush1.msra.mxu0 0.0
  %360 = vmatprep.subr.mxu0 0.0
  %361 = vmatpush1.msra.mxu0 0.0
  %362 = vmatprep.subr.mxu0 0.0
  %363 = vmatpush1.msra.mxu0 0.0
  %364 = vmatprep.subr.mxu0 0.0
  %365 = vmatpush1.msra.mxu0 0.0
  %366 = vmatprep.subr.mxu0 0.0
  %367 = vmatpush1.msra.mxu0 0.0
  %368 = vmatprep.subr.mxu0 0.0
  %369 = vmatpush1.msra.mxu0 0.0
  %370 = vmatprep.subr.mxu0 0.0
  %371 = vmatpush1.msra.mxu0 0.0
  %372 = vmatprep.subr.mxu0 0.0
  %373 = vmatpush1.msra.mxu0 0.0
  %374 = vmatprep.subr.mxu0 0.0
  %375 = vmatpush1.msra.mxu0 0.0
  %376 = vmatprep.subr.mxu0 0.0
  %377 = vmatpush1.msra.mxu0 0.0
  %378 = vmatprep.subr.mxu0 0.0
  %379 = vmatpush1.msra.mxu0 0.0
  %380 = vmatprep.subr.mxu0 0.0
  %381 = vmatpush1.msra.mxu0 0.0
  %382 = vmatprep.subr.mxu0 0.0
  %383 = vmatpush1.msra.mxu0 0.0
  %384 = vmatprep.subr.mxu0 0.0
  %385 = vmatpush1.msra.mxu0 0.0
  %386 = vmatprep.subr.mxu0 0.0
  %387 = vmatpush1.msra.mxu0 0.0
  %388 = vmatprep.subr.mxu0 0.0
  %389 = vmatpush1.msra.mxu0 0.0
  %390 = vmatprep.mubr.f32.mxu0 0.0
  %391 = vmatmul.mubr.f32.gmra.mrb[0].mxu0 %v321
  %v392 = vpop.f32.mrb[0].mxu0
  %v393 = vadd.f32 0.0, %v392
  %v394 = vpop.f32.mrb[0].mxu0
  %v395 = vadd.f32 0.0, %v394
  %396 = vmatprep.mubr.f32.mxu0 0.0
  %397 = vmatmul.mubr.f32.gmra.mrb[0].mxu0 %v324
  %v398 = vpop.f32.mrb[0].mxu0
  %v399 = vadd.f32 0.0, %v398
  %v400 = vpop.f32.mrb[0].mxu0
  %v401 = vadd.f32 0.0, %v400
  %402 = vdwg.mxu0
  %v403 = vadd.f32 %v289, %v393
  %v404 = vadd.f32 %v291, %v395
  %v405 = vadd.f32 %v295, %v399
  %v406 = vadd.f32 %v297, %v401
  %v407 = vld [vmem:[%s110 + $0x1] sm:$0xff]
  %v408 = vld [vmem:[%s110 + $0x21] sm:$0xff]
  %s409 = scalar_lea.vmem %s1, 432
  %v410 = vld [vmem:[%s409] sm:$0xff]
  %v411 = vld [vmem:[%s409 + $0x8] sm:$0xff]
  %v412 = vld [vmem:[%s409 + $0x10] sm:$0xff]
  %v413 = vld [vmem:[%s409 + $0x18] sm:$0xff]
  %v414 = vld [vmem:[%s409 + $0x20] sm:$0xff]
  %v415 = vld [vmem:[%s409 + $0x28] sm:$0xff]
  %v416 = vld [vmem:[%s409 + $0x30] sm:$0xff]
  %v417 = vld [vmem:[%s409 + $0x38] sm:$0xff]
  %v418 = vld [vmem:[%s409 + $0x40] sm:$0xff]
  %v419 = vld [vmem:[%s409 + $0x48] sm:$0xff]
  %v420 = vld [vmem:[%s409 + $0x50] sm:$0xff]
  %v421 = vld [vmem:[%s409 + $0x58] sm:$0xff]
  %v422 = vld [vmem:[%s409 + $0x60] sm:$0xff]
  %v423 = vld [vmem:[%s409 + $0x68] sm:$0xff]
  %v424 = vld [vmem:[%s409 + $0x70] sm:$0xff]
  %v425 = vld [vmem:[%s409 + $0x78] sm:$0xff]
  %v426 = vld [vmem:[%s409 + $0x80] sm:$0xff]
  %v427 = vld [vmem:[%s409 + $0x88] sm:$0xff]
  %v429 = vsel %vm132, %v407, 0
  %v432 = vsel %vm132, %v408, 0
  %434 = vmatprep.subr.mxu0 %v411
  %435 = vmatpush1.msra.mxu0 %v410
  %436 = vmatprep.subr.mxu0 %v413
  %437 = vmatpush1.msra.mxu0 %v412
  %438 = vmatprep.subr.mxu0 %v415
  %439 = vmatpush1.msra.mxu0 %v414
  %440 = vmatprep.subr.mxu0 %v417
  %441 = vmatpush1.msra.mxu0 %v416
  %442 = vmatprep.subr.mxu0 %v419
  %443 = vmatpush1.msra.mxu0 %v418
  %444 = vmatprep.subr.mxu0 %v421
  %445 = vmatpush1.msra.mxu0 %v420
  %446 = vmatprep.subr.mxu0 %v423
  %447 = vmatpush1.msra.mxu0 %v422
  %448 = vmatprep.subr.mxu0 %v425
  %449 = vmatpush1.msra.mxu0 %v424
  %450 = vmatprep.subr.mxu0 %v427
  %451 = vmatpush1.msra.mxu0 %v426
  %452 = vmatprep.subr.mxu0 0.0
  %453 = vmatpush1.msra.mxu0 0.0
  %454 = vmatprep.subr.mxu0 0.0
  %455 = vmatpush1.msra.mxu0 0.0
  %456 = vmatprep.subr.mxu0 0.0
  %457 = vmatpush1.msra.mxu0 0.0
  %458 = vmatprep.subr.mxu0 0.0
  %459 = vmatpush1.msra.mxu0 0.0
  %460 = vmatprep.subr.mxu0 0.0
  %461 = vmatpush1.msra.mxu0 0.0
  %462 = vmatprep.subr.mxu0 0.0
  %463 = vmatpush1.msra.mxu0 0.0
  %464 = vmatprep.subr.mxu0 0.0
  %465 = vmatpush1.msra.mxu0 0.0
  %466 = vmatprep.subr.mxu0 0.0
  %467 = vmatpush1.msra.mxu0 0.0
  %468 = vmatprep.subr.mxu0 0.0
  %469 = vmatpush1.msra.mxu0 0.0
  %470 = vmatprep.subr.mxu0 0.0
  %471 = vmatpush1.msra.mxu0 0.0
  %472 = vmatprep.subr.mxu0 0.0
  %473 = vmatpush1.msra.mxu0 0.0
  %474 = vmatprep.subr.mxu0 0.0
  %475 = vmatpush1.msra.mxu0 0.0
  %476 = vmatprep.subr.mxu0 0.0
  %477 = vmatpush1.msra.mxu0 0.0
  %478 = vmatprep.subr.mxu0 0.0
  %479 = vmatpush1.msra.mxu0 0.0
  %480 = vmatprep.subr.mxu0 0.0
  %481 = vmatpush1.msra.mxu0 0.0
  %482 = vmatprep.subr.mxu0 0.0
  %483 = vmatpush1.msra.mxu0 0.0
  %484 = vmatprep.subr.mxu0 0.0
  %485 = vmatpush1.msra.mxu0 0.0
  %486 = vmatprep.subr.mxu0 0.0
  %487 = vmatpush1.msra.mxu0 0.0
  %488 = vmatprep.subr.mxu0 0.0
  %489 = vmatpush1.msra.mxu0 0.0
  %490 = vmatprep.subr.mxu0 0.0
  %491 = vmatpush1.msra.mxu0 0.0
  %492 = vmatprep.subr.mxu0 0.0
  %493 = vmatpush1.msra.mxu0 0.0
  %494 = vmatprep.subr.mxu0 0.0
  %495 = vmatpush1.msra.mxu0 0.0
  %496 = vmatprep.subr.mxu0 0.0
  %497 = vmatpush1.msra.mxu0 0.0
  %498 = vmatprep.mubr.f32.mxu0 0.0
  %499 = vmatmul.mubr.f32.gmra.mrb[0].mxu0 %v429
  %v500 = vpop.f32.mrb[0].mxu0
  %v501 = vadd.f32 0.0, %v500
  %v502 = vpop.f32.mrb[0].mxu0
  %v503 = vadd.f32 0.0, %v502
  %504 = vmatprep.mubr.f32.mxu0 0.0
  %505 = vmatmul.mubr.f32.gmra.mrb[0].mxu0 %v432
  %v506 = vpop.f32.mrb[0].mxu0
  %v507 = vadd.f32 0.0, %v506
  %v508 = vpop.f32.mrb[0].mxu0
  %v509 = vadd.f32 0.0, %v508
  %510 = vdwg.mxu0
  %v511 = vadd.f32 %v403, %v501
  %v512 = vadd.f32 %v404, %v503
  %v513 = vadd.f32 %v405, %v507
  %v514 = vadd.f32 %v406, %v509
  %v515 = vld [vmem:[%s2] sm:$0x3]
  %v517 = vlaneseq
  %v518 = vshrl.u32 %v517, 7
  %v519 = vsub.s32 0, %v518
  %v520 = vrot.slane %v515, %v519
  %v521 = vlaneseq
  %v522 = vshrl.u32 %v521, 7
  %v523 = vsub.s32 1, %v522
  %v524 = vrot.slane %v515, %v523
  %v527 = vadd.f32 %v511, %v520
  %v528 = vadd.f32 %v512, %v524
  %v529 = vadd.f32 %v513, %v520
  %v530 = vadd.f32 %v514, %v524
  %v531 = vmax.f32 %v527, 0.0
  %v532 = vmax.f32 %v528, 0.0
  %v533 = vmax.f32 %v529, 0.0
  %v534 = vmax.f32 %v530, 0.0
  %v539 = vcombine.low %v531, %v532
  %v541 = vunpack.c.l.s4 1966171168
  %v542 = vunpack.c.0.s8 %v541
  %v543 = vlaneseq
  %v544 = vshrl.u32 %v543, 7
  %v545 = vsub.s32 %v542, %v544
  %v546 = vrot.slane %v539, %v545
  %v548 = vunpack.c.l.s4 1966171168
  %v549 = vunpack.c.0.s8 %v548
  %v550 = vlaneseq
  %v551 = vshrl.u32 %v550, 7
  %v552 = vsub.s32 %v549, %v551
  %v553 = vrot.slane %v546, %v552
  %v554 = vcombine.low %v533, %v534
  %v556 = vunpack.c.l.s4 1966171168
  %v557 = vunpack.c.0.s8 %v556
  %v558 = vlaneseq
  %v559 = vshrl.u32 %v558, 7
  %v560 = vsub.s32 %v557, %v559
  %v561 = vrot.slane %v554, %v560
  %v563 = vunpack.c.l.s4 1966171168
  %v564 = vunpack.c.0.s8 %v563
  %v565 = vlaneseq
  %v566 = vshrl.u32 %v565, 7
  %v567 = vsub.s32 %v564, %v566
  %v568 = vrot.slane %v561, %v567
  %569 = vrot.lane.b32.xlu0 %v553, 32
  %v570 = vpop.permute.xlu0 %569
  %571 = vrot.lane.b32.xlu0 %v568, 32
  %v572 = vpop.permute.xlu0 %571
  %v573 = vrot.slane %v570, 7
  %v574 = vrot.slane %v572, 7
  %vm575 = vcmask 261120
  %v576 = vsel %vm575, %v573, %v570
  %v577 = vsel %vm575, %v574, %v572
  %vm580 = vcmp.ge.s32.totalorder %v44, 32
  %vm581 = vcmp.lt.s32.totalorder %v44, 288
  %vm582 = vmand %vm580, %vm581
  %583 = vst.msk [vmem:[%s53] ss:$8 sm:$0x7] %vm582, %v576
  %584 = vst.msk [vmem:[%s53] ss:$8 sm:$0x0] %vm582, %v576
  %s585 = scalar_lea.vmem %s53, 48 [#allocation2]
  %586 = vst.msk [vmem:[%s585] ss:$8 sm:$0x7] %vm582, %v577
  %587 = vst.msk [vmem:[%s585] ss:$8 sm:$0x0] %vm582, %v577
  %v588 = vcombine.high %v546, %v546
  %v590 = vunpack.c.l.s4 1966171168
  %v591 = vunpack.c.0.s8 %v590
  %v592 = vlaneseq
  %v593 = vshrl.u32 %v592, 7
  %v594 = vsub.s32 %v591, %v593
  %v595 = vrot.slane %v588, %v594
  %v596 = vcombine.high %v561, %v561
  %v598 = vunpack.c.l.s4 1966171168
  %v599 = vunpack.c.0.s8 %v598
  %v600 = vlaneseq
  %v601 = vshrl.u32 %v600, 7
  %v602 = vsub.s32 %v599, %v601
  %v603 = vrot.slane %v596, %v602
  %604 = vrot.lane.b32.xlu0 %v595, 32
  %v605 = vpop.permute.xlu0 %604
  %606 = vrot.lane.b32.xlu0 %v603, 32
  %v607 = vpop.permute.xlu0 %606
  %v608 = vrot.slane %v605, 7
  %v609 = vrot.slane %v607, 7
  %v610 = vsel %vm575, %v608, %v605
  %v611 = vsel %vm575, %v609, %v607
  %s614 = scalar_lea.vmem [#allocation2], 1
  %615 = vst.msk [vmem:[%s614] ss:$8 sm:$0x7] %vm582, %v610
  %616 = vst.msk [vmem:[%s614] ss:$8 sm:$0x0] %vm582, %v610
  %s617 = scalar_lea.vmem [#allocation2], 49
  %618 = vst.msk [vmem:[%s617] ss:$8 sm:$0x7] %vm582, %v611
  %619 = vst.msk [vmem:[%s617] ss:$8 sm:$0x0] %vm582, %v611
  %v620 = vcombine.high %v553, %v553
  %v621 = vcombine.high %v568, %v568
  %622 = vrot.lane.b32.xlu0 %v620, 32
  %v623 = vpop.permute.xlu0 %622
  %624 = vrot.lane.b32.xlu0 %v621, 32
  %v625 = vpop.permute.xlu0 %624
  %v626 = vrot.slane %v623, 7
  %v627 = vrot.slane %v625, 7
  %v628 = vsel %vm575, %v626, %v623
  %v629 = vsel %vm575, %v627, %v625
  %s632 = scalar_lea.vmem %s53, 1 [#allocation2]
  %633 = vst.msk [vmem:[%s632] ss:$8 sm:$0x7] %vm582, %v628
  %634 = vst.msk [vmem:[%s632] ss:$8 sm:$0x0] %vm582, %v628
  %s635 = scalar_lea.vmem %s53, 49 [#allocation2]
  %636 = vst.msk [vmem:[%s635] ss:$8 sm:$0x7] %vm582, %v629
  %637 = vst.msk [vmem:[%s635] ss:$8 sm:$0x0] %vm582, %v629
  %v638 = vcombine.high %v595, %v595
  %v639 = vcombine.high %v603, %v603
  %640 = vrot.lane.b32.xlu0 %v638, 32
  %v641 = vpop.permute.xlu0 %640
  %642 = vrot.lane.b32.xlu0 %v639, 32
  %v643 = vpop.permute.xlu0 %642
  %v644 = vrot.slane %v641, 7
  %v645 = vrot.slane %v643, 7
  %v646 = vsel %vm575, %v644, %v641
  %v647 = vsel %vm575, %v645, %v643
  %s650 = scalar_lea.vmem [#allocation2], 2
  %651 = vst.msk [vmem:[%s650] ss:$8 sm:$0x7] %vm582, %v646
  %652 = vst.msk [vmem:[%s650] ss:$8 sm:$0x0] %vm582, %v646
  %s653 = scalar_lea.vmem [#allocation2], 50
  %654 = vst.msk [vmem:[%s653] ss:$8 sm:$0x7] %vm582, %v647
  %655 = vst.msk [vmem:[%s653] ss:$8 sm:$0x0] %vm582, %v647
  %v656 = vcombine.high %v531, %v532
  %v658 = vunpack.c.l.s4 1966171168
  %v659 = vunpack.c.0.s8 %v658
  %v660 = vlaneseq
  %v661 = vshrl.u32 %v660, 7
  %v662 = vsub.s32 %v659, %v661
  %v663 = vrot.slane %v656, %v662
  %v665 = vunpack.c.l.s4 1966171168
  %v666 = vunpack.c.0.s8 %v665
  %v667 = vlaneseq
  %v668 = vshrl.u32 %v667, 7
  %v669 = vsub.s32 %v666, %v668
  %v670 = vrot.slane %v663, %v669
  %v671 = vcombine.high %v533, %v534
  %v673 = vunpack.c.l.s4 1966171168
  %v674 = vunpack.c.0.s8 %v673
  %v675 = vlaneseq
  %v676 = vshrl.u32 %v675, 7
  %v677 = vsub.s32 %v674, %v676
  %v678 = vrot.slane %v671, %v677
  %v680 = vunpack.c.l.s4 1966171168
  %v681 = vunpack.c.0.s8 %v680
  %v682 = vlaneseq
  %v683 = vshrl.u32 %v682, 7
  %v684 = vsub.s32 %v681, %v683
  %v685 = vrot.slane %v678, %v684
  %686 = vrot.lane.b32.xlu0 %v670, 32
  %v687 = vpop.permute.xlu0 %686
  %688 = vrot.lane.b32.xlu0 %v685, 32
  %v689 = vpop.permute.xlu0 %688
  %v690 = vrot.slane %v687, 7
  %v691 = vrot.slane %v689, 7
  %v692 = vsel %vm575, %v690, %v687
  %v693 = vsel %vm575, %v691, %v689
  %s696 = scalar_lea.vmem %s53, 2 [#allocation2]
  %697 = vst.msk [vmem:[%s696] ss:$8 sm:$0x7] %vm582, %v692
  %698 = vst.msk [vmem:[%s696] ss:$8 sm:$0x0] %vm582, %v692
  %s699 = scalar_lea.vmem %s53, 50 [#allocation2]
  %700 = vst.msk [vmem:[%s699] ss:$8 sm:$0x7] %vm582, %v693
  %701 = vst.msk [vmem:[%s699] ss:$8 sm:$0x0] %vm582, %v693
  %v702 = vcombine.high %v663, %v663
  %v704 = vunpack.c.l.s4 1966171168
  %v705 = vunpack.c.0.s8 %v704
  %v706 = vlaneseq
  %v707 = vshrl.u32 %v706, 7
  %v708 = vsub.s32 %v705, %v707
  %v709 = vrot.slane %v702, %v708
  %v710 = vcombine.high %v678, %v678
  %v712 = vunpack.c.l.s4 1966171168
  %v713 = vunpack.c.0.s8 %v712
  %v714 = vlaneseq
  %v715 = vshrl.u32 %v714, 7
  %v716 = vsub.s32 %v713, %v715
  %v717 = vrot.slane %v710, %v716
  %718 = vrot.lane.b32.xlu0 %v709, 32
  %v719 = vpop.permute.xlu0 %718
  %720 = vrot.lane.b32.xlu0 %v717, 32
  %v721 = vpop.permute.xlu0 %720
  %v722 = vrot.slane %v719, 7
  %v723 = vrot.slane %v721, 7
  %v724 = vsel %vm575, %v722, %v719
  %v725 = vsel %vm575, %v723, %v721
  %s728 = scalar_lea.vmem [#allocation2], 3
  %729 = vst.msk [vmem:[%s728] ss:$8 sm:$0x7] %vm582, %v724
  %730 = vst.msk [vmem:[%s728] ss:$8 sm:$0x0] %vm582, %v724
  %s731 = scalar_lea.vmem [#allocation2], 51
  %732 = vst.msk [vmem:[%s731] ss:$8 sm:$0x7] %vm582, %v725
  %733 = vst.msk [vmem:[%s731] ss:$8 sm:$0x0] %vm582, %v725
  %v734 = vcombine.high %v670, %v670
  %v735 = vcombine.high %v685, %v685
  %736 = vrot.lane.b32.xlu0 %v734, 32
  %v737 = vpop.permute.xlu0 %736
  %738 = vrot.lane.b32.xlu0 %v735, 32
  %v739 = vpop.permute.xlu0 %738
  %v740 = vrot.slane %v737, 7
  %v741 = vrot.slane %v739, 7
  %v742 = vsel %vm575, %v740, %v737
  %v743 = vsel %vm575, %v741, %v739
  %s746 = scalar_lea.vmem %s53, 3 [#allocation2]
  %747 = vst.msk [vmem:[%s746] ss:$8 sm:$0x7] %vm582, %v742
  %748 = vst.msk [vmem:[%s746] ss:$8 sm:$0x0] %vm582, %v742
  %s749 = scalar_lea.vmem %s53, 51 [#allocation2]
  %750 = vst.msk [vmem:[%s749] ss:$8 sm:$0x7] %vm582, %v743
  %751 = vst.msk [vmem:[%s749] ss:$8 sm:$0x0] %vm582, %v743
  %v752 = vcombine.high %v709, %v709
  %v753 = vcombine.high %v717, %v717
  %754 = vrot.lane.b32.xlu0 %v752, 32
  %v755 = vpop.permute.xlu0 %754
  %756 = vrot.lane.b32.xlu0 %v753, 32
  %v757 = vpop.permute.xlu0 %756
  %v758 = vrot.slane %v755, 7
  %v759 = vrot.slane %v757, 7
  %v760 = vsel %vm575, %v758, %v755
  %v761 = vsel %vm575, %v759, %v757
  %s764 = scalar_lea.vmem [#allocation2], 4
  %765 = vst.msk [vmem:[%s764] ss:$8 sm:$0x7] %vm582, %v760
  %766 = vst.msk [vmem:[%s764] ss:$8 sm:$0x0] %vm582, %v760
  %s767 = scalar_lea.vmem [#allocation2], 52
  %768 = vst.msk [vmem:[%s767] ss:$8 sm:$0x7] %vm582, %v761
  %769 = vst.msk [vmem:[%s767] ss:$8 sm:$0x0] %vm582, %v761
  %v770 = vld [vmem:[#allocation2] sm:$0xf]
  %v771 = vld [vmem:[#allocation2 + $0x8] sm:$0xf]
  %v772 = vld [vmem:[#allocation2 + $0x10] sm:$0xf]
  %v773 = vld [vmem:[#allocation2 + $0x30] sm:$0xf]
  %v774 = vld [vmem:[#allocation2 + $0x38] sm:$0xf]
  %v775 = vld [vmem:[#allocation2 + $0x40] sm:$0xf]
  %v782 = vcombine.low %v770, %v771
  %v783 = vcombine.low %v773, %v774
  %v784 = vld [vmem:[%s3] sm:$0xff]
  %v785 = vld [vmem:[%s3 + $0x8] sm:$0xff]
  %v786 = vld [vmem:[%s3 + $0x10] sm:$0xff]
  %v787 = vld [vmem:[%s3 + $0x18] sm:$0xff]
  %v788 = vld [vmem:[%s3 + $0x20] sm:$0xff]
  %v789 = vld [vmem:[%s3 + $0x28] sm:$0xff]
  %v790 = vld [vmem:[%s3 + $0x30] sm:$0xff]
  %v791 = vld [vmem:[%s3 + $0x38] sm:$0xff]
  %v792 = vld [vmem:[%s3 + $0x40] sm:$0xff]
  %v793 = vld [vmem:[%s3 + $0x48] sm:$0xff]
  %v794 = vld [vmem:[%s3 + $0x50] sm:$0xff]
  %v795 = vld [vmem:[%s3 + $0x58] sm:$0xff]
  %v796 = vld [vmem:[%s3 + $0x60] sm:$0xff]
  %v797 = vld [vmem:[%s3 + $0x68] sm:$0xff]
  %v798 = vld [vmem:[%s3 + $0x70] sm:$0xff]
  %v799 = vld [vmem:[%s3 + $0x78] sm:$0xff]
  %v800 = vld [vmem:[%s3 + $0x80] sm:$0xff]
  %v801 = vld [vmem:[%s3 + $0x88] sm:$0xff]
  %v802 = vld [vmem:[%s3 + $0x90] sm:$0xff]
  %v803 = vld [vmem:[%s3 + $0x98] sm:$0xff]
  %v804 = vld [vmem:[%s3 + $0xa0] sm:$0xff]
  %v805 = vld [vmem:[%s3 + $0xa8] sm:$0xff]
  %v806 = vld [vmem:[%s3 + $0xb0] sm:$0xff]
  %v807 = vld [vmem:[%s3 + $0xb8] sm:$0xff]
  %v808 = vld [vmem:[%s3 + $0xc0] sm:$0xff]
  %v809 = vld [vmem:[%s3 + $0xc8] sm:$0xff]
  %v810 = vld [vmem:[%s3 + $0xd0] sm:$0xff]
  %v811 = vld [vmem:[%s3 + $0xd8] sm:$0xff]
  %v812 = vld [vmem:[%s3 + $0xe0] sm:$0xff]
  %v813 = vld [vmem:[%s3 + $0xe8] sm:$0xff]
  %v814 = vld [vmem:[%s3 + $0xf0] sm:$0xff]
  %v815 = vld [vmem:[%s3 + $0xf8] sm:$0xff]
  %v816 = vld [vmem:[%s3 + $0x100] sm:$0xff]
  %v817 = vld [vmem:[%s3 + $0x108] sm:$0xff]
  %v818 = vld [vmem:[%s3 + $0x110] sm:$0xff]
  %v819 = vld [vmem:[%s3 + $0x118] sm:$0xff]
  %v820 = vld [vmem:[%s3 + $0x120] sm:$0xff]
  %v821 = vld [vmem:[%s3 + $0x128] sm:$0xff]
  %v822 = vld [vmem:[%s3 + $0x130] sm:$0xff]
  %v823 = vld [vmem:[%s3 + $0x138] sm:$0xff]
  %v824 = vld [vmem:[%s53] sm:$0xf]
  %v825 = vld [vmem:[%s53 + $0x8] sm:$0xf]
  %v826 = vld [vmem:[%s53 + $0x10] sm:$0xf]
  %v827 = vld [vmem:[%s53 + $0x30] sm:$0xf]
  %v828 = vld [vmem:[%s53 + $0x38] sm:$0xf]
  %v829 = vld [vmem:[%s53 + $0x40] sm:$0xf]
  %v836 = vcombine.low %v824, %v825
  %v837 = vcombine.low %v827, %v828
  %s838 = scalar_lea.vmem %s3, 320
  %v839 = vld [vmem:[%s838] sm:$0xff]
  %v840 = vld [vmem:[%s838 + $0x8] sm:$0xff]
  %v841 = vld [vmem:[%s838 + $0x10] sm:$0xff]
  %v842 = vld [vmem:[%s838 + $0x18] sm:$0xff]
  %v843 = vld [vmem:[%s838 + $0x20] sm:$0xff]
  %v844 = vld [vmem:[%s838 + $0x28] sm:$0xff]
  %v845 = vld [vmem:[%s838 + $0x30] sm:$0xff]
  %v846 = vld [vmem:[%s838 + $0x38] sm:$0xff]
  %v847 = vld [vmem:[%s838 + $0x40] sm:$0xff]
  %v848 = vld [vmem:[%s838 + $0x48] sm:$0xff]
  %v849 = vld [vmem:[%s838 + $0x50] sm:$0xff]
  %v850 = vld [vmem:[%s838 + $0x58] sm:$0xff]
  %v851 = vld [vmem:[%s838 + $0x60] sm:$0xff]
  %v852 = vld [vmem:[%s838 + $0x68] sm:$0xff]
  %v853 = vld [vmem:[%s838 + $0x70] sm:$0xff]
  %v854 = vld [vmem:[%s838 + $0x78] sm:$0xff]
  %v855 = vld [vmem:[%s838 + $0x80] sm:$0xff]
  %v856 = vld [vmem:[%s838 + $0x88] sm:$0xff]
  %v857 = vld [vmem:[%s838 + $0x90] sm:$0xff]
  %v858 = vld [vmem:[%s838 + $0x98] sm:$0xff]
  %v859 = vld [vmem:[%s838 + $0xa0] sm:$0xff]
  %v860 = vld [vmem:[%s838 + $0xa8] sm:$0xff]
  %v861 = vld [vmem:[%s838 + $0xb0] sm:$0xff]
  %v862 = vld [vmem:[%s838 + $0xb8] sm:$0xff]
  %v863 = vld [vmem:[%s838 + $0xc0] sm:$0xff]
  %v864 = vld [vmem:[%s838 + $0xc8] sm:$0xff]
  %v865 = vld [vmem:[%s838 + $0xd0] sm:$0xff]
  %v866 = vld [vmem:[%s838 + $0xd8] sm:$0xff]
  %v867 = vld [vmem:[%s838 + $0xe0] sm:$0xff]
  %v868 = vld [vmem:[%s838 + $0xe8] sm:$0xff]
  %v869 = vld [vmem:[%s838 + $0xf0] sm:$0xff]
  %v870 = vld [vmem:[%s838 + $0xf8] sm:$0xff]
  %v871 = vld [vmem:[%s838 + $0x100] sm:$0xff]
  %v872 = vld [vmem:[%s838 + $0x108] sm:$0xff]
  %v873 = vld [vmem:[%s838 + $0x110] sm:$0xff]
  %v874 = vld [vmem:[%s838 + $0x118] sm:$0xff]
  %v875 = vld [vmem:[%s838 + $0x120] sm:$0xff]
  %v876 = vld [vmem:[%s838 + $0x128] sm:$0xff]
  %v877 = vld [vmem:[%s838 + $0x130] sm:$0xff]
  %v878 = vld [vmem:[%s838 + $0x138] sm:$0xff]
  %v879 = vcombine.low %v836, %v837
  %v880 = vcombine.high %v836, %v837
  %v881 = vcombine.low %v826, %v829
  %vm884 = vcmask 523264
  %v885 = vsel %vm884, %v881, 0
  %887 = vmatprep.subr.mxu0 0.0
  %888 = vmatpush1.msra.mxu0 %v839
  %889 = vmatprep.subr.mxu0 0.0
  %890 = vmatpush1.msra.mxu0 %v840
  %891 = vmatprep.subr.mxu0 0.0
  %892 = vmatpush1.msra.mxu0 %v841
  %893 = vmatprep.subr.mxu0 0.0
  %894 = vmatpush1.msra.mxu0 %v842
  %895 = vmatprep.subr.mxu0 0.0
  %896 = vmatpush1.msra.mxu0 %v843
  %897 = vmatprep.subr.mxu0 0.0
  %898 = vmatpush1.msra.mxu0 %v844
  %899 = vmatprep.subr.mxu0 0.0
  %900 = vmatpush1.msra.mxu0 %v845
  %901 = vmatprep.subr.mxu0 0.0
  %902 = vmatpush1.msra.mxu0 %v846
  %903 = vmatprep.subr.mxu0 0.0
  %904 = vmatpush1.msra.mxu0 %v847
  %905 = vmatprep.subr.mxu0 0.0
  %906 = vmatpush1.msra.mxu0 %v848
  %907 = vmatprep.subr.mxu0 0.0
  %908 = vmatpush1.msra.mxu0 %v849
  %909 = vmatprep.subr.mxu0 0.0
  %910 = vmatpush1.msra.mxu0 %v850
  %911 = vmatprep.subr.mxu0 0.0
  %912 = vmatpush1.msra.mxu0 %v851
  %913 = vmatprep.subr.mxu0 0.0
  %914 = vmatpush1.msra.mxu0 %v852
  %915 = vmatprep.subr.mxu0 0.0
  %916 = vmatpush1.msra.mxu0 %v853
  %917 = vmatprep.subr.mxu0 0.0
  %918 = vmatpush1.msra.mxu0 %v854
  %919 = vmatprep.subr.mxu0 0.0
  %920 = vmatpush1.msra.mxu0 %v855
  %921 = vmatprep.subr.mxu0 0.0
  %922 = vmatpush1.msra.mxu0 %v856
  %923 = vmatprep.subr.mxu0 0.0
  %924 = vmatpush1.msra.mxu0 %v857
  %925 = vmatprep.subr.mxu0 0.0
  %926 = vmatpush1.msra.mxu0 %v858
  %927 = vmatprep.subr.mxu0 0.0
  %928 = vmatpush1.msra.mxu0 %v859
  %929 = vmatprep.subr.mxu0 0.0
  %930 = vmatpush1.msra.mxu0 %v860
  %931 = vmatprep.subr.mxu0 0.0
  %932 = vmatpush1.msra.mxu0 %v861
  %933 = vmatprep.subr.mxu0 0.0
  %934 = vmatpush1.msra.mxu0 %v862
  %935 = vmatprep.subr.mxu0 0.0
  %936 = vmatpush1.msra.mxu0 %v863
  %937 = vmatprep.subr.mxu0 0.0
  %938 = vmatpush1.msra.mxu0 %v864
  %939 = vmatprep.subr.mxu0 0.0
  %940 = vmatpush1.msra.mxu0 %v865
  %941 = vmatprep.subr.mxu0 0.0
  %942 = vmatpush1.msra.mxu0 %v866
  %943 = vmatprep.subr.mxu0 0.0
  %944 = vmatpush1.msra.mxu0 %v867
  %945 = vmatprep.subr.mxu0 0.0
  %946 = vmatpush1.msra.mxu0 %v868
  %947 = vmatprep.subr.mxu0 0.0
  %948 = vmatpush1.msra.mxu0 %v869
  %949 = vmatprep.subr.mxu0 0.0
  %950 = vmatpush1.msra.mxu0 %v870
  %951 = vmatprep.mubr.f32.mxu0 %v880
  %952 = vmatmul.mubr.f32.gmra.mrb[0].mxu0 %v879
  %v953 = vpop.f32.mrb[0].mxu0
  %v954 = vadd.f32 0.0, %v953
  %v955 = vpop.f32.mrb[0].mxu0
  %956 = vdwg.mxu0
  %957 = vmatprep.subr.mxu0 0.0
  %958 = vmatpush1.msra.mxu0 %v871
  %959 = vmatprep.subr.mxu0 0.0
  %960 = vmatpush1.msra.mxu0 %v872
  %961 = vmatprep.subr.mxu0 0.0
  %962 = vmatpush1.msra.mxu0 %v873
  %963 = vmatprep.subr.mxu0 0.0
  %964 = vmatpush1.msra.mxu0 %v874
  %965 = vmatprep.subr.mxu0 0.0
  %966 = vmatpush1.msra.mxu0 %v875
  %967 = vmatprep.subr.mxu0 0.0
  %968 = vmatpush1.msra.mxu0 %v876
  %969 = vmatprep.subr.mxu0 0.0
  %970 = vmatpush1.msra.mxu0 %v877
  %971 = vmatprep.subr.mxu0 0.0
  %972 = vmatpush1.msra.mxu0 %v878
  %973 = vmatprep.subr.mxu0 0.0
  %974 = vmatpush1.msra.mxu0 0.0
  %975 = vmatprep.subr.mxu0 0.0
  %976 = vmatpush1.msra.mxu0 0.0
  %977 = vmatprep.subr.mxu0 0.0
  %978 = vmatpush1.msra.mxu0 0.0
  %979 = vmatprep.subr.mxu0 0.0
  %980 = vmatpush1.msra.mxu0 0.0
  %981 = vmatprep.subr.mxu0 0.0
  %982 = vmatpush1.msra.mxu0 0.0
  %983 = vmatprep.subr.mxu0 0.0
  %984 = vmatpush1.msra.mxu0 0.0
  %985 = vmatprep.subr.mxu0 0.0
  %986 = vmatpush1.msra.mxu0 0.0
  %987 = vmatprep.subr.mxu0 0.0
  %988 = vmatpush1.msra.mxu0 0.0
  %989 = vmatprep.subr.mxu0 0.0
  %990 = vmatpush1.msra.mxu0 0.0
  %991 = vmatprep.subr.mxu0 0.0
  %992 = vmatpush1.msra.mxu0 0.0
  %993 = vmatprep.subr.mxu0 0.0
  %994 = vmatpush1.msra.mxu0 0.0
  %995 = vmatprep.subr.mxu0 0.0
  %996 = vmatpush1.msra.mxu0 0.0
  %997 = vmatprep.subr.mxu0 0.0
  %998 = vmatpush1.msra.mxu0 0.0
  %999 = vmatprep.subr.mxu0 0.0
  %1000 = vmatpush1.msra.mxu0 0.0
  %1001 = vmatprep.subr.mxu0 0.0
  %1002 = vmatpush1.msra.mxu0 0.0
  %1003 = vmatprep.subr.mxu0 0.0
  %1004 = vmatpush1.msra.mxu0 0.0
  %1005 = vmatprep.subr.mxu0 0.0
  %1006 = vmatpush1.msra.mxu0 0.0
  %1007 = vmatprep.subr.mxu0 0.0
  %1008 = vmatpush1.msra.mxu0 0.0
  %1009 = vmatprep.subr.mxu0 0.0
  %1010 = vmatpush1.msra.mxu0 0.0
  %1011 = vmatprep.subr.mxu0 0.0
  %1012 = vmatpush1.msra.mxu0 0.0
  %1013 = vmatprep.subr.mxu0 0.0
  %1014 = vmatpush1.msra.mxu0 0.0
  %1015 = vmatprep.subr.mxu0 0.0
  %1016 = vmatpush1.msra.mxu0 0.0
  %1017 = vmatprep.subr.mxu0 0.0
  %1018 = vmatpush1.msra.mxu0 0.0
  %1019 = vmatprep.subr.mxu0 0.0
  %1020 = vmatpush1.msra.mxu0 0.0
  %1021 = vmatprep.mubr.f32.mxu0 0.0
  %1022 = vmatmul.mubr.f32.gmra.mrb[0].mxu0 %v885
  %v1023 = vpop.f32.mrb[0].mxu0
  %v1024 = vadd.f32 %v954, %v1023
  %v1025 = vpop.f32.mrb[0].mxu0
  %1026 = vdwg.mxu0
  %v1027 = vcombine.low %v782, %v783
  %v1028 = vcombine.high %v782, %v783
  %v1029 = vcombine.low %v772, %v775
  %v1032 = vsel %vm884, %v1029, 0
  %1034 = vmatprep.subr.mxu0 0.0
  %1035 = vmatpush1.msra.mxu0 %v784
  %1036 = vmatprep.subr.mxu0 0.0
  %1037 = vmatpush1.msra.mxu0 %v785
  %1038 = vmatprep.subr.mxu0 0.0
  %1039 = vmatpush1.msra.mxu0 %v786
  %1040 = vmatprep.subr.mxu0 0.0
  %1041 = vmatpush1.msra.mxu0 %v787
  %1042 = vmatprep.subr.mxu0 0.0
  %1043 = vmatpush1.msra.mxu0 %v788
  %1044 = vmatprep.subr.mxu0 0.0
  %1045 = vmatpush1.msra.mxu0 %v789
  %1046 = vmatprep.subr.mxu0 0.0
  %1047 = vmatpush1.msra.mxu0 %v790
  %1048 = vmatprep.subr.mxu0 0.0
  %1049 = vmatpush1.msra.mxu0 %v791
  %1050 = vmatprep.subr.mxu0 0.0
  %1051 = vmatpush1.msra.mxu0 %v792
  %1052 = vmatprep.subr.mxu0 0.0
  %1053 = vmatpush1.msra.mxu0 %v793
  %1054 = vmatprep.subr.mxu0 0.0
  %1055 = vmatpush1.msra.mxu0 %v794
  %1056 = vmatprep.subr.mxu0 0.0
  %1057 = vmatpush1.msra.mxu0 %v795
  %1058 = vmatprep.subr.mxu0 0.0
  %1059 = vmatpush1.msra.mxu0 %v796
  %1060 = vmatprep.subr.mxu0 0.0
  %1061 = vmatpush1.msra.mxu0 %v797
  %1062 = vmatprep.subr.mxu0 0.0
  %1063 = vmatpush1.msra.mxu0 %v798
  %1064 = vmatprep.subr.mxu0 0.0
  %1065 = vmatpush1.msra.mxu0 %v799
  %1066 = vmatprep.subr.mxu0 0.0
  %1067 = vmatpush1.msra.mxu0 %v800
  %1068 = vmatprep.subr.mxu0 0.0
  %1069 = vmatpush1.msra.mxu0 %v801
  %1070 = vmatprep.subr.mxu0 0.0
  %1071 = vmatpush1.msra.mxu0 %v802
  %1072 = vmatprep.subr.mxu0 0.0
  %1073 = vmatpush1.msra.mxu0 %v803
  %1074 = vmatprep.subr.mxu0 0.0
  %1075 = vmatpush1.msra.mxu0 %v804
  %1076 = vmatprep.subr.mxu0 0.0
  %1077 = vmatpush1.msra.mxu0 %v805
  %1078 = vmatprep.subr.mxu0 0.0
  %1079 = vmatpush1.msra.mxu0 %v806
  %1080 = vmatprep.subr.mxu0 0.0
  %1081 = vmatpush1.msra.mxu0 %v807
  %1082 = vmatprep.subr.mxu0 0.0
  %1083 = vmatpush1.msra.mxu0 %v808
  %1084 = vmatprep.subr.mxu0 0.0
  %1085 = vmatpush1.msra.mxu0 %v809
  %1086 = vmatprep.subr.mxu0 0.0
  %1087 = vmatpush1.msra.mxu0 %v810
  %1088 = vmatprep.subr.mxu0 0.0
  %1089 = vmatpush1.msra.mxu0 %v811
  %1090 = vmatprep.subr.mxu0 0.0
  %1091 = vmatpush1.msra.mxu0 %v812
  %1092 = vmatprep.subr.mxu0 0.0
  %1093 = vmatpush1.msra.mxu0 %v813
  %1094 = vmatprep.subr.mxu0 0.0
  %1095 = vmatpush1.msra.mxu0 %v814
  %1096 = vmatprep.subr.mxu0 0.0
  %1097 = vmatpush1.msra.mxu0 %v815
  %1098 = vmatprep.mubr.f32.mxu0 %v1028
  %1099 = vmatmul.mubr.f32.gmra.mrb[0].mxu0 %v1027
  %v1100 = vpop.f32.mrb[0].mxu0
  %v1101 = vadd.f32 %v1024, %v1100
  %v1102 = vpop.f32.mrb[0].mxu0
  %1103 = vdwg.mxu0
  %1104 = vmatprep.subr.mxu0 0.0
  %1105 = vmatpush1.msra.mxu0 %v816
  %1106 = vmatprep.subr.mxu0 0.0
  %1107 = vmatpush1.msra.mxu0 %v817
  %1108 = vmatprep.subr.mxu0 0.0
  %1109 = vmatpush1.msra.mxu0 %v818
  %1110 = vmatprep.subr.mxu0 0.0
  %1111 = vmatpush1.msra.mxu0 %v819
  %1112 = vmatprep.subr.mxu0 0.0
  %1113 = vmatpush1.msra.mxu0 %v820
  %1114 = vmatprep.subr.mxu0 0.0
  %1115 = vmatpush1.msra.mxu0 %v821
  %1116 = vmatprep.subr.mxu0 0.0
  %1117 = vmatpush1.msra.mxu0 %v822
  %1118 = vmatprep.subr.mxu0 0.0
  %1119 = vmatpush1.msra.mxu0 %v823
  %1120 = vmatprep.subr.mxu0 0.0
  %1121 = vmatpush1.msra.mxu0 0.0
  %1122 = vmatprep.subr.mxu0 0.0
  %1123 = vmatpush1.msra.mxu0 0.0
  %1124 = vmatprep.subr.mxu0 0.0
  %1125 = vmatpush1.msra.mxu0 0.0
  %1126 = vmatprep.subr.mxu0 0.0
  %1127 = vmatpush1.msra.mxu0 0.0
  %1128 = vmatprep.subr.mxu0 0.0
  %1129 = vmatpush1.msra.mxu0 0.0
  %1130 = vmatprep.subr.mxu0 0.0
  %1131 = vmatpush1.msra.mxu0 0.0
  %1132 = vmatprep.subr.mxu0 0.0
  %1133 = vmatpush1.msra.mxu0 0.0
  %1134 = vmatprep.subr.mxu0 0.0
  %1135 = vmatpush1.msra.mxu0 0.0
  %1136 = vmatprep.subr.mxu0 0.0
  %1137 = vmatpush1.msra.mxu0 0.0
  %1138 = vmatprep.subr.mxu0 0.0
  %1139 = vmatpush1.msra.mxu0 0.0
  %1140 = vmatprep.subr.mxu0 0.0
  %1141 = vmatpush1.msra.mxu0 0.0
  %1142 = vmatprep.subr.mxu0 0.0
  %1143 = vmatpush1.msra.mxu0 0.0
  %1144 = vmatprep.subr.mxu0 0.0
  %1145 = vmatpush1.msra.mxu0 0.0
  %1146 = vmatprep.subr.mxu0 0.0
  %1147 = vmatpush1.msra.mxu0 0.0
  %1148 = vmatprep.subr.mxu0 0.0
  %1149 = vmatpush1.msra.mxu0 0.0
  %1150 = vmatprep.subr.mxu0 0.0
  %1151 = vmatpush1.msra.mxu0 0.0
  %1152 = vmatprep.subr.mxu0 0.0
  %1153 = vmatpush1.msra.mxu0 0.0
  %1154 = vmatprep.subr.mxu0 0.0
  %1155 = vmatpush1.msra.mxu0 0.0
  %1156 = vmatprep.subr.mxu0 0.0
  %1157 = vmatpush1.msra.mxu0 0.0
  %1158 = vmatprep.subr.mxu0 0.0
  %1159 = vmatpush1.msra.mxu0 0.0
  %1160 = vmatprep.subr.mxu0 0.0
  %1161 = vmatpush1.msra.mxu0 0.0
  %1162 = vmatprep.subr.mxu0 0.0
  %1163 = vmatpush1.msra.mxu0 0.0
  %1164 = vmatprep.subr.mxu0 0.0
  %1165 = vmatpush1.msra.mxu0 0.0
  %1166 = vmatprep.subr.mxu0 0.0
  %1167 = vmatpush1.msra.mxu0 0.0
  %1168 = vmatprep.mubr.f32.mxu0 0.0
  %1169 = vmatmul.mubr.f32.gmra.mrb[0].mxu0 %v1032
  %v1170 = vpop.f32.mrb[0].mxu0
  %v1171 = vadd.f32 %v1101, %v1170
  %v1172 = vpop.f32.mrb[0].mxu0
  %1173 = vdwg.mxu0
  %v1174 = vld [vmem:[#allocation2] sm:$0x1e]
  %v1175 = vld [vmem:[#allocation2 + $0x8] sm:$0x1e]
  %v1176 = vld [vmem:[#allocation2 + $0x10] sm:$0x1e]
  %v1177 = vld [vmem:[#allocation2 + $0x30] sm:$0x1e]
  %v1178 = vld [vmem:[#allocation2 + $0x38] sm:$0x1e]
  %v1179 = vld [vmem:[#allocation2 + $0x40] sm:$0x1e]
  %v1186 = vcombine.low %v1174, %v1175
  %v1187 = vcombine.high %v1174, %v1175
  %v1188 = vcombine.high %v1176, %v1176
  %v1189 = vcombine.low %v1177, %v1178
  %v1190 = vcombine.high %v1177, %v1178
  %v1191 = vcombine.high %v1179, %v1179
  %vm1192 = vcmask 1042432
  %vm1193 = vcmask 1046532
  %vm1194 = vmor %vm1192, %vm1193
  %v1195 = vrot.slane %v1186, 5
  %v1196 = vrot.slane %v1195, 4
  %v1197 = vrot.slane %v1187, 5
  %v1198 = vsel %vm1194, %v1196, %v1197
  %v1199 = vrot.slane %v1176, 5
  %v1200 = vrot.slane %v1199, 4
  %v1201 = vrot.slane %v1188, 5
  %v1202 = vsel %vm1194, %v1200, %v1201
  %v1203 = vrot.slane %v1189, 5
  %v1204 = vrot.slane %v1203, 4
  %v1205 = vrot.slane %v1190, 5
  %v1206 = vsel %vm1194, %v1204, %v1205
  %v1207 = vrot.slane %v1179, 5
  %v1208 = vrot.slane %v1207, 4
  %v1209 = vrot.slane %v1191, 5
  %v1210 = vsel %vm1194, %v1208, %v1209
  %s1211 = scalar_lea.vmem %s3, 640
  %v1212 = vld [vmem:[%s1211] sm:$0xff]
  %v1213 = vld [vmem:[%s1211 + $0x8] sm:$0xff]
  %v1214 = vld [vmem:[%s1211 + $0x10] sm:$0xff]
  %v1215 = vld [vmem:[%s1211 + $0x18] sm:$0xff]
  %v1216 = vld [vmem:[%s1211 + $0x20] sm:$0xff]
  %v1217 = vld [vmem:[%s1211 + $0x28] sm:$0xff]
  %v1218 = vld [vmem:[%s1211 + $0x30] sm:$0xff]
  %v1219 = vld [vmem:[%s1211 + $0x38] sm:$0xff]
  %v1220 = vld [vmem:[%s1211 + $0x40] sm:$0xff]
  %v1221 = vld [vmem:[%s1211 + $0x48] sm:$0xff]
  %v1222 = vld [vmem:[%s1211 + $0x50] sm:$0xff]
  %v1223 = vld [vmem:[%s1211 + $0x58] sm:$0xff]
  %v1224 = vld [vmem:[%s1211 + $0x60] sm:$0xff]
  %v1225 = vld [vmem:[%s1211 + $0x68] sm:$0xff]
  %v1226 = vld [vmem:[%s1211 + $0x70] sm:$0xff]
  %v1227 = vld [vmem:[%s1211 + $0x78] sm:$0xff]
  %v1228 = vld [vmem:[%s1211 + $0x80] sm:$0xff]
  %v1229 = vld [vmem:[%s1211 + $0x88] sm:$0xff]
  %v1230 = vld [vmem:[%s1211 + $0x90] sm:$0xff]
  %v1231 = vld [vmem:[%s1211 + $0x98] sm:$0xff]
  %v1232 = vld [vmem:[%s1211 + $0xa0] sm:$0xff]
  %v1233 = vld [vmem:[%s1211 + $0xa8] sm:$0xff]
  %v1234 = vld [vmem:[%s1211 + $0xb0] sm:$0xff]
  %v1235 = vld [vmem:[%s1211 + $0xb8] sm:$0xff]
  %v1236 = vld [vmem:[%s1211 + $0xc0] sm:$0xff]
  %v1237 = vld [vmem:[%s1211 + $0xc8] sm:$0xff]
  %v1238 = vld [vmem:[%s1211 + $0xd0] sm:$0xff]
  %v1239 = vld [vmem:[%s1211 + $0xd8] sm:$0xff]
  %v1240 = vld [vmem:[%s1211 + $0xe0] sm:$0xff]
  %v1241 = vld [vmem:[%s1211 + $0xe8] sm:$0xff]
  %v1242 = vld [vmem:[%s1211 + $0xf0] sm:$0xff]
  %v1243 = vld [vmem:[%s1211 + $0xf8] sm:$0xff]
  %v1244 = vld [vmem:[%s1211 + $0x100] sm:$0xff]
  %v1245 = vld [vmem:[%s1211 + $0x108] sm:$0xff]
  %v1246 = vld [vmem:[%s1211 + $0x110] sm:$0xff]
  %v1247 = vld [vmem:[%s1211 + $0x118] sm:$0xff]
  %v1248 = vld [vmem:[%s1211 + $0x120] sm:$0xff]
  %v1249 = vld [vmem:[%s1211 + $0x128] sm:$0xff]
  %v1250 = vld [vmem:[%s1211 + $0x130] sm:$0xff]
  %v1251 = vld [vmem:[%s1211 + $0x138] sm:$0xff]
  %v1252 = vcombine.low %v1198, %v1206
  %v1253 = vcombine.high %v1198, %v1206
  %v1254 = vcombine.low %v1202, %v1210
  %v1257 = vsel %vm884, %v1254, 0
  %1259 = vmatprep.subr.mxu0 0.0
  %1260 = vmatpush1.msra.mxu0 %v1212
  %1261 = vmatprep.subr.mxu0 0.0
  %1262 = vmatpush1.msra.mxu0 %v1213
  %1263 = vmatprep.subr.mxu0 0.0
  %1264 = vmatpush1.msra.mxu0 %v1214
  %1265 = vmatprep.subr.mxu0 0.0
  %1266 = vmatpush1.msra.mxu0 %v1215
  %1267 = vmatprep.subr.mxu0 0.0
  %1268 = vmatpush1.msra.mxu0 %v1216
  %1269 = vmatprep.subr.mxu0 0.0
  %1270 = vmatpush1.msra.mxu0 %v1217
  %1271 = vmatprep.subr.mxu0 0.0
  %1272 = vmatpush1.msra.mxu0 %v1218
  %1273 = vmatprep.subr.mxu0 0.0
  %1274 = vmatpush1.msra.mxu0 %v1219
  %1275 = vmatprep.subr.mxu0 0.0
  %1276 = vmatpush1.msra.mxu0 %v1220
  %1277 = vmatprep.subr.mxu0 0.0
  %1278 = vmatpush1.msra.mxu0 %v1221
  %1279 = vmatprep.subr.mxu0 0.0
  %1280 = vmatpush1.msra.mxu0 %v1222
  %1281 = vmatprep.subr.mxu0 0.0
  %1282 = vmatpush1.msra.mxu0 %v1223
  %1283 = vmatprep.subr.mxu0 0.0
  %1284 = vmatpush1.msra.mxu0 %v1224
  %1285 = vmatprep.subr.mxu0 0.0
  %1286 = vmatpush1.msra.mxu0 %v1225
  %1287 = vmatprep.subr.mxu0 0.0
  %1288 = vmatpush1.msra.mxu0 %v1226
  %1289 = vmatprep.subr.mxu0 0.0
  %1290 = vmatpush1.msra.mxu0 %v1227
  %1291 = vmatprep.subr.mxu0 0.0
  %1292 = vmatpush1.msra.mxu0 %v1228
  %1293 = vmatprep.subr.mxu0 0.0
  %1294 = vmatpush1.msra.mxu0 %v1229
  %1295 = vmatprep.subr.mxu0 0.0
  %1296 = vmatpush1.msra.mxu0 %v1230
  %1297 = vmatprep.subr.mxu0 0.0
  %1298 = vmatpush1.msra.mxu0 %v1231
  %1299 = vmatprep.subr.mxu0 0.0
  %1300 = vmatpush1.msra.mxu0 %v1232
  %1301 = vmatprep.subr.mxu0 0.0
  %1302 = vmatpush1.msra.mxu0 %v1233
  %1303 = vmatprep.subr.mxu0 0.0
  %1304 = vmatpush1.msra.mxu0 %v1234
  %1305 = vmatprep.subr.mxu0 0.0
  %1306 = vmatpush1.msra.mxu0 %v1235
  %1307 = vmatprep.subr.mxu0 0.0
  %1308 = vmatpush1.msra.mxu0 %v1236
  %1309 = vmatprep.subr.mxu0 0.0
  %1310 = vmatpush1.msra.mxu0 %v1237
  %1311 = vmatprep.subr.mxu0 0.0
  %1312 = vmatpush1.msra.mxu0 %v1238
  %1313 = vmatprep.subr.mxu0 0.0
  %1314 = vmatpush1.msra.mxu0 %v1239
  %1315 = vmatprep.subr.mxu0 0.0
  %1316 = vmatpush1.msra.mxu0 %v1240
  %1317 = vmatprep.subr.mxu0 0.0
  %1318 = vmatpush1.msra.mxu0 %v1241
  %1319 = vmatprep.subr.mxu0 0.0
  %1320 = vmatpush1.msra.mxu0 %v1242
  %1321 = vmatprep.subr.mxu0 0.0
  %1322 = vmatpush1.msra.mxu0 %v1243
  %1323 = vmatprep.mubr.f32.mxu0 %v1253
  %1324 = vmatmul.mubr.f32.gmra.mrb[0].mxu0 %v1252
  %v1325 = vpop.f32.mrb[0].mxu0
  %v1326 = vadd.f32 0.0, %v1325
  %v1327 = vpop.f32.mrb[0].mxu0
  %1328 = vdwg.mxu0
  %1329 = vmatprep.subr.mxu0 0.0
  %1330 = vmatpush1.msra.mxu0 %v1244
  %1331 = vmatprep.subr.mxu0 0.0
  %1332 = vmatpush1.msra.mxu0 %v1245
  %1333 = vmatprep.subr.mxu0 0.0
  %1334 = vmatpush1.msra.mxu0 %v1246
  %1335 = vmatprep.subr.mxu0 0.0
  %1336 = vmatpush1.msra.mxu0 %v1247
  %1337 = vmatprep.subr.mxu0 0.0
  %1338 = vmatpush1.msra.mxu0 %v1248
  %1339 = vmatprep.subr.mxu0 0.0
  %1340 = vmatpush1.msra.mxu0 %v1249
  %1341 = vmatprep.subr.mxu0 0.0
  %1342 = vmatpush1.msra.mxu0 %v1250
  %1343 = vmatprep.subr.mxu0 0.0
  %1344 = vmatpush1.msra.mxu0 %v1251
  %1345 = vmatprep.subr.mxu0 0.0
  %1346 = vmatpush1.msra.mxu0 0.0
  %1347 = vmatprep.subr.mxu0 0.0
  %1348 = vmatpush1.msra.mxu0 0.0
  %1349 = vmatprep.subr.mxu0 0.0
  %1350 = vmatpush1.msra.mxu0 0.0
  %1351 = vmatprep.subr.mxu0 0.0
  %1352 = vmatpush1.msra.mxu0 0.0
  %1353 = vmatprep.subr.mxu0 0.0
  %1354 = vmatpush1.msra.mxu0 0.0
  %1355 = vmatprep.subr.mxu0 0.0
  %1356 = vmatpush1.msra.mxu0 0.0
  %1357 = vmatprep.subr.mxu0 0.0
  %1358 = vmatpush1.msra.mxu0 0.0
  %1359 = vmatprep.subr.mxu0 0.0
  %1360 = vmatpush1.msra.mxu0 0.0
  %1361 = vmatprep.subr.mxu0 0.0
  %1362 = vmatpush1.msra.mxu0 0.0
  %1363 = vmatprep.subr.mxu0 0.0
  %1364 = vmatpush1.msra.mxu0 0.0
  %1365 = vmatprep.subr.mxu0 0.0
  %1366 = vmatpush1.msra.mxu0 0.0
  %1367 = vmatprep.subr.mxu0 0.0
  %1368 = vmatpush1.msra.mxu0 0.0
  %1369 = vmatprep.subr.mxu0 0.0
  %1370 = vmatpush1.msra.mxu0 0.0
  %1371 = vmatprep.subr.mxu0 0.0
  %1372 = vmatpush1.msra.mxu0 0.0
  %1373 = vmatprep.subr.mxu0 0.0
  %1374 = vmatpush1.msra.mxu0 0.0
  %1375 = vmatprep.subr.mxu0 0.0
  %1376 = vmatpush1.msra.mxu0 0.0
  %1377 = vmatprep.subr.mxu0 0.0
  %1378 = vmatpush1.msra.mxu0 0.0
  %1379 = vmatprep.subr.mxu0 0.0
  %1380 = vmatpush1.msra.mxu0 0.0
  %1381 = vmatprep.subr.mxu0 0.0
  %1382 = vmatpush1.msra.mxu0 0.0
  %1383 = vmatprep.subr.mxu0 0.0
  %1384 = vmatpush1.msra.mxu0 0.0
  %1385 = vmatprep.subr.mxu0 0.0
  %1386 = vmatpush1.msra.mxu0 0.0
  %1387 = vmatprep.subr.mxu0 0.0
  %1388 = vmatpush1.msra.mxu0 0.0
  %1389 = vmatprep.subr.mxu0 0.0
  %1390 = vmatpush1.msra.mxu0 0.0
  %1391 = vmatprep.subr.mxu0 0.0
  %1392 = vmatpush1.msra.mxu0 0.0
  %1393 = vmatprep.mubr.f32.mxu0 0.0
  %1394 = vmatmul.mubr.f32.gmra.mrb[0].mxu0 %v1257
  %v1395 = vpop.f32.mrb[0].mxu0
  %v1396 = vadd.f32 %v1326, %v1395
  %v1397 = vpop.f32.mrb[0].mxu0
  %1398 = vdwg.mxu0
  %v1399 = vadd.f32 %v1171, %v1396
  %v1400 = vld [vmem:[%s53] sm:$0x1e]
  %v1401 = vld [vmem:[%s53 + $0x8] sm:$0x1e]
  %v1402 = vld [vmem:[%s53 + $0x10] sm:$0x1e]
  %v1403 = vld [vmem:[%s53 + $0x30] sm:$0x1e]
  %v1404 = vld [vmem:[%s53 + $0x38] sm:$0x1e]
  %v1405 = vld [vmem:[%s53 + $0x40] sm:$0x1e]
  %v1412 = vcombine.low %v1400, %v1401
  %v1413 = vcombine.high %v1400, %v1401
  %v1414 = vcombine.high %v1402, %v1402
  %v1415 = vcombine.low %v1403, %v1404
  %v1416 = vcombine.high %v1403, %v1404
  %v1417 = vcombine.high %v1405, %v1405
  %v1418 = vrot.slane %v1412, 5
  %v1419 = vrot.slane %v1418, 4
  %v1420 = vrot.slane %v1413, 5
  %v1421 = vsel %vm1194, %v1419, %v1420
  %v1422 = vrot.slane %v1402, 5
  %v1423 = vrot.slane %v1422, 4
  %v1424 = vrot.slane %v1414, 5
  %v1425 = vsel %vm1194, %v1423, %v1424
  %v1426 = vrot.slane %v1415, 5
  %v1427 = vrot.slane %v1426, 4
  %v1428 = vrot.slane %v1416, 5
  %v1429 = vsel %vm1194, %v1427, %v1428
  %v1430 = vrot.slane %v1405, 5
  %v1431 = vrot.slane %v1430, 4
  %v1432 = vrot.slane %v1417, 5
  %v1433 = vsel %vm1194, %v1431, %v1432
  %s1434 = scalar_lea.vmem %s3, 960
  %v1435 = vld [vmem:[%s1434] sm:$0xff]
  %v1436 = vld [vmem:[%s1434 + $0x8] sm:$0xff]
  %v1437 = vld [vmem:[%s1434 + $0x10] sm:$0xff]
  %v1438 = vld [vmem:[%s1434 + $0x18] sm:$0xff]
  %v1439 = vld [vmem:[%s1434 + $0x20] sm:$0xff]
  %v1440 = vld [vmem:[%s1434 + $0x28] sm:$0xff]
  %v1441 = vld [vmem:[%s1434 + $0x30] sm:$0xff]
  %v1442 = vld [vmem:[%s1434 + $0x38] sm:$0xff]
  %v1443 = vld [vmem:[%s1434 + $0x40] sm:$0xff]
  %v1444 = vld [vmem:[%s1434 + $0x48] sm:$0xff]
  %v1445 = vld [vmem:[%s1434 + $0x50] sm:$0xff]
  %v1446 = vld [vmem:[%s1434 + $0x58] sm:$0xff]
  %v1447 = vld [vmem:[%s1434 + $0x60] sm:$0xff]
  %v1448 = vld [vmem:[%s1434 + $0x68] sm:$0xff]
  %v1449 = vld [vmem:[%s1434 + $0x70] sm:$0xff]
  %v1450 = vld [vmem:[%s1434 + $0x78] sm:$0xff]
  %v1451 = vld [vmem:[%s1434 + $0x80] sm:$0xff]
  %v1452 = vld [vmem:[%s1434 + $0x88] sm:$0xff]
  %v1453 = vld [vmem:[%s1434 + $0x90] sm:$0xff]
  %v1454 = vld [vmem:[%s1434 + $0x98] sm:$0xff]
  %v1455 = vld [vmem:[%s1434 + $0xa0] sm:$0xff]
  %v1456 = vld [vmem:[%s1434 + $0xa8] sm:$0xff]
  %v1457 = vld [vmem:[%s1434 + $0xb0] sm:$0xff]
  %v1458 = vld [vmem:[%s1434 + $0xb8] sm:$0xff]
  %v1459 = vld [vmem:[%s1434 + $0xc0] sm:$0xff]
  %v1460 = vld [vmem:[%s1434 + $0xc8] sm:$0xff]
  %v1461 = vld [vmem:[%s1434 + $0xd0] sm:$0xff]
  %v1462 = vld [vmem:[%s1434 + $0xd8] sm:$0xff]
  %v1463 = vld [vmem:[%s1434 + $0xe0] sm:$0xff]
  %v1464 = vld [vmem:[%s1434 + $0xe8] sm:$0xff]
  %v1465 = vld [vmem:[%s1434 + $0xf0] sm:$0xff]
  %v1466 = vld [vmem:[%s1434 + $0xf8] sm:$0xff]
  %v1467 = vld [vmem:[%s1434 + $0x100] sm:$0xff]
  %v1468 = vld [vmem:[%s1434 + $0x108] sm:$0xff]
  %v1469 = vld [vmem:[%s1434 + $0x110] sm:$0xff]
  %v1470 = vld [vmem:[%s1434 + $0x118] sm:$0xff]
  %v1471 = vld [vmem:[%s1434 + $0x120] sm:$0xff]
  %v1472 = vld [vmem:[%s1434 + $0x128] sm:$0xff]
  %v1473 = vld [vmem:[%s1434 + $0x130] sm:$0xff]
  %v1474 = vld [vmem:[%s1434 + $0x138] sm:$0xff]
  %v1475 = vcombine.low %v1421, %v1429
  %v1476 = vcombine.high %v1421, %v1429
  %v1477 = vcombine.low %v1425, %v1433
  %v1480 = vsel %vm884, %v1477, 0
  %1482 = vmatprep.subr.mxu0 0.0
  %1483 = vmatpush1.msra.mxu0 %v1435
  %1484 = vmatprep.subr.mxu0 0.0
  %1485 = vmatpush1.msra.mxu0 %v1436
  %1486 = vmatprep.subr.mxu0 0.0
  %1487 = vmatpush1.msra.mxu0 %v1437
  %1488 = vmatprep.subr.mxu0 0.0
  %1489 = vmatpush1.msra.mxu0 %v1438
  %1490 = vmatprep.subr.mxu0 0.0
  %1491 = vmatpush1.msra.mxu0 %v1439
  %1492 = vmatprep.subr.mxu0 0.0
  %1493 = vmatpush1.msra.mxu0 %v1440
  %1494 = vmatprep.subr.mxu0 0.0
  %1495 = vmatpush1.msra.mxu0 %v1441
  %1496 = vmatprep.subr.mxu0 0.0
  %1497 = vmatpush1.msra.mxu0 %v1442
  %1498 = vmatprep.subr.mxu0 0.0
  %1499 = vmatpush1.msra.mxu0 %v1443
  %1500 = vmatprep.subr.mxu0 0.0
  %1501 = vmatpush1.msra.mxu0 %v1444
  %1502 = vmatprep.subr.mxu0 0.0
  %1503 = vmatpush1.msra.mxu0 %v1445
  %1504 = vmatprep.subr.mxu0 0.0
  %1505 = vmatpush1.msra.mxu0 %v1446
  %1506 = vmatprep.subr.mxu0 0.0
  %1507 = vmatpush1.msra.mxu0 %v1447
  %1508 = vmatprep.subr.mxu0 0.0
  %1509 = vmatpush1.msra.mxu0 %v1448
  %1510 = vmatprep.subr.mxu0 0.0
  %1511 = vmatpush1.msra.mxu0 %v1449
  %1512 = vmatprep.subr.mxu0 0.0
  %1513 = vmatpush1.msra.mxu0 %v1450
  %1514 = vmatprep.subr.mxu0 0.0
  %1515 = vmatpush1.msra.mxu0 %v1451
  %1516 = vmatprep.subr.mxu0 0.0
  %1517 = vmatpush1.msra.mxu0 %v1452
  %1518 = vmatprep.subr.mxu0 0.0
  %1519 = vmatpush1.msra.mxu0 %v1453
  %1520 = vmatprep.subr.mxu0 0.0
  %1521 = vmatpush1.msra.mxu0 %v1454
  %1522 = vmatprep.subr.mxu0 0.0
  %1523 = vmatpush1.msra.mxu0 %v1455
  %1524 = vmatprep.subr.mxu0 0.0
  %1525 = vmatpush1.msra.mxu0 %v1456
  %1526 = vmatprep.subr.mxu0 0.0
  %1527 = vmatpush1.msra.mxu0 %v1457
  %1528 = vmatprep.subr.mxu0 0.0
  %1529 = vmatpush1.msra.mxu0 %v1458
  %1530 = vmatprep.subr.mxu0 0.0
  %1531 = vmatpush1.msra.mxu0 %v1459
  %1532 = vmatprep.subr.mxu0 0.0
  %1533 = vmatpush1.msra.mxu0 %v1460
  %1534 = vmatprep.subr.mxu0 0.0
  %1535 = vmatpush1.msra.mxu0 %v1461
  %1536 = vmatprep.subr.mxu0 0.0
  %1537 = vmatpush1.msra.mxu0 %v1462
  %1538 = vmatprep.subr.mxu0 0.0
  %1539 = vmatpush1.msra.mxu0 %v1463
  %1540 = vmatprep.subr.mxu0 0.0
  %1541 = vmatpush1.msra.mxu0 %v1464
  %1542 = vmatprep.subr.mxu0 0.0
  %1543 = vmatpush1.msra.mxu0 %v1465
  %1544 = vmatprep.subr.mxu0 0.0
  %1545 = vmatpush1.msra.mxu0 %v1466
  %1546 = vmatprep.mubr.f32.mxu0 %v1476
  %1547 = vmatmul.mubr.f32.gmra.mrb[0].mxu0 %v1475
  %v1548 = vpop.f32.mrb[0].mxu0
  %v1549 = vadd.f32 0.0, %v1548
  %v1550 = vpop.f32.mrb[0].mxu0
  %1551 = vdwg.mxu0
  %1552 = vmatprep.subr.mxu0 0.0
  %1553 = vmatpush1.msra.mxu0 %v1467
  %1554 = vmatprep.subr.mxu0 0.0
  %1555 = vmatpush1.msra.mxu0 %v1468
  %1556 = vmatprep.subr.mxu0 0.0
  %1557 = vmatpush1.msra.mxu0 %v1469
  %1558 = vmatprep.subr.mxu0 0.0
  %1559 = vmatpush1.msra.mxu0 %v1470
  %1560 = vmatprep.subr.mxu0 0.0
  %1561 = vmatpush1.msra.mxu0 %v1471
  %1562 = vmatprep.subr.mxu0 0.0
  %1563 = vmatpush1.msra.mxu0 %v1472
  %1564 = vmatprep.subr.mxu0 0.0
  %1565 = vmatpush1.msra.mxu0 %v1473
  %1566 = vmatprep.subr.mxu0 0.0
  %1567 = vmatpush1.msra.mxu0 %v1474
  %1568 = vmatprep.subr.mxu0 0.0
  %1569 = vmatpush1.msra.mxu0 0.0
  %1570 = vmatprep.subr.mxu0 0.0
  %1571 = vmatpush1.msra.mxu0 0.0
  %1572 = vmatprep.subr.mxu0 0.0
  %1573 = vmatpush1.msra.mxu0 0.0
  %1574 = vmatprep.subr.mxu0 0.0
  %1575 = vmatpush1.msra.mxu0 0.0
  %1576 = vmatprep.subr.mxu0 0.0
  %1577 = vmatpush1.msra.mxu0 0.0
  %1578 = vmatprep.subr.mxu0 0.0
  %1579 = vmatpush1.msra.mxu0 0.0
  %1580 = vmatprep.subr.mxu0 0.0
  %1581 = vmatpush1.msra.mxu0 0.0
  %1582 = vmatprep.subr.mxu0 0.0
  %1583 = vmatpush1.msra.mxu0 0.0
  %1584 = vmatprep.subr.mxu0 0.0
  %1585 = vmatpush1.msra.mxu0 0.0
  %1586 = vmatprep.subr.mxu0 0.0
  %1587 = vmatpush1.msra.mxu0 0.0
  %1588 = vmatprep.subr.mxu0 0.0
  %1589 = vmatpush1.msra.mxu0 0.0
  %1590 = vmatprep.subr.mxu0 0.0
  %1591 = vmatpush1.msra.mxu0 0.0
  %1592 = vmatprep.subr.mxu0 0.0
  %1593 = vmatpush1.msra.mxu0 0.0
  %1594 = vmatprep.subr.mxu0 0.0
  %1595 = vmatpush1.msra.mxu0 0.0
  %1596 = vmatprep.subr.mxu0 0.0
  %1597 = vmatpush1.msra.mxu0 0.0
  %1598 = vmatprep.subr.mxu0 0.0
  %1599 = vmatpush1.msra.mxu0 0.0
  %1600 = vmatprep.subr.mxu0 0.0
  %1601 = vmatpush1.msra.mxu0 0.0
  %1602 = vmatprep.subr.mxu0 0.0
  %1603 = vmatpush1.msra.mxu0 0.0
  %1604 = vmatprep.subr.mxu0 0.0
  %1605 = vmatpush1.msra.mxu0 0.0
  %1606 = vmatprep.subr.mxu0 0.0
  %1607 = vmatpush1.msra.mxu0 0.0
  %1608 = vmatprep.subr.mxu0 0.0
  %1609 = vmatpush1.msra.mxu0 0.0
  %1610 = vmatprep.subr.mxu0 0.0
  %1611 = vmatpush1.msra.mxu0 0.0
  %1612 = vmatprep.subr.mxu0 0.0
  %1613 = vmatpush1.msra.mxu0 0.0
  %1614 = vmatprep.subr.mxu0 0.0
  %1615 = vmatpush1.msra.mxu0 0.0
  %1616 = vmatprep.mubr.f32.mxu0 0.0
  %1617 = vmatmul.mubr.f32.gmra.mrb[0].mxu0 %v1480
  %v1618 = vpop.f32.mrb[0].mxu0
  %v1619 = vadd.f32 %v1549, %v1618
  %v1620 = vpop.f32.mrb[0].mxu0
  %1621 = vdwg.mxu0
  %v1622 = vadd.f32 %v1399, %v1619
  %v1623 = vld [vmem:[%s4] sm:$0x1]
  %v1625 = vlaneseq
  %v1626 = vshrl.u32 %v1625, 7
  %v1627 = vsub.s32 0, %v1626
  %v1628 = vrot.slane %v1623, %v1627
  %v1630 = vadd.f32 %v1622, %v1628
  %v1631 = vmax.f32 %v1630, 0.0
  %v1633 = vcombine.high %v1631, %v1631
  %1634 = vrot.lane.b32.xlu0 %v1631, 32
  %v1635 = vpop.permute.xlu0 %1634
  %1636 = vrot.lane.b32.xlu0 %v1633, 32
  %v1637 = vpop.permute.xlu0 %1636
  %v1638 = vrot.slane %v1635, 4
  %v1639 = vrot.slane %v1637, 4
  %v1640 = vsel %vm575, %v1638, %v1635
  %v1641 = vsel %vm575, %v1639, %v1637
  %vm1644 = vcmask 1040640
  %vm1645 = vcmask 258052
  %vm1646 = vmor %vm1645, %vm1644
  %1647 = vst.msk [vmem:[%s75] sm:$0x11] %vm1646, %v1640
  %1648 = vst.msk [vmem:[%s75 + $0x10] sm:$0x11] %vm1646, %v1641
  %v1649 = vrot.slane %v1631, 5
  %v1650 = vrot.slane %v1649, 4
  %v1651 = vrot.slane %v1633, 5
  %v1652 = vrot.slane %v1651, 4
  %1653 = vrot.lane.b32.xlu0 %v1650, 32
  %v1654 = vpop.permute.xlu0 %1653
  %1655 = vrot.lane.b32.xlu0 %v1652, 32
  %v1656 = vpop.permute.xlu0 %1655
  %v1657 = vrot.slane %v1654, 4
  %v1658 = vrot.slane %v1656, 4
  %v1659 = vsel %vm575, %v1657, %v1654
  %v1660 = vsel %vm575, %v1658, %v1656
  %1663 = vst.msk [vmem:[#allocation3 + $0x1] sm:$0x11] %vm1646, %v1659
  %1664 = vst.msk [vmem:[#allocation3 + $0x11] sm:$0x11] %vm1646, %v1660
  %v1665 = vrot.slane %v1631, 6
  %v1666 = vrot.slane %v1665, 4
  %v1667 = vrot.slane %v1633, 6
  %v1668 = vrot.slane %v1667, 4
  %1669 = vrot.lane.b32.xlu0 %v1666, 32
  %v1670 = vpop.permute.xlu0 %1669
  %1671 = vrot.lane.b32.xlu0 %v1668, 32
  %v1672 = vpop.permute.xlu0 %1671
  %v1673 = vrot.slane %v1670, 4
  %v1674 = vrot.slane %v1672, 4
  %v1675 = vsel %vm575, %v1673, %v1670
  %v1676 = vsel %vm575, %v1674, %v1672
  %1679 = vst.msk [vmem:[%s75 + $0x1] sm:$0x11] %vm1646, %v1675
  %1680 = vst.msk [vmem:[%s75 + $0x11] sm:$0x11] %vm1646, %v1676
  %v1681 = vrot.slane %v1631, 7
  %v1682 = vrot.slane %v1681, 4
  %v1683 = vrot.slane %v1633, 7
  %v1684 = vrot.slane %v1683, 4
  %1685 = vrot.lane.b32.xlu0 %v1682, 32
  %v1686 = vpop.permute.xlu0 %1685
  %1687 = vrot.lane.b32.xlu0 %v1684, 32
  %v1688 = vpop.permute.xlu0 %1687
  %v1689 = vrot.slane %v1686, 4
  %v1690 = vrot.slane %v1688, 4
  %v1691 = vsel %vm575, %v1689, %v1686
  %v1692 = vsel %vm575, %v1690, %v1688
  %1695 = vst.msk [vmem:[#allocation3 + $0x2] sm:$0x11] %vm1646, %v1691
  %1696 = vst.msk [vmem:[#allocation3 + $0x12] sm:$0x11] %vm1646, %v1692
  %v1697 = vld [vmem:[#allocation3] sm:$0x33]
  %v1698 = vld [vmem:[#allocation3 + $0x10] sm:$0x33]
  %v1702 = vunpack.c.l.s4 1983009808
  %v1703 = vunpack.c.0.s8 %v1702
  %v1704 = vlaneseq
  %v1705 = vshrl.u32 %v1704, 7
  %v1706 = vsub.s32 %v1703, %v1705
  %v1707 = vrot.slane %v1697, %v1706
  %v1709 = vunpack.c.l.s4 1983009808
  %v1710 = vunpack.c.0.s8 %v1709
  %v1711 = vlaneseq
  %v1712 = vshrl.u32 %v1711, 7
  %v1713 = vsub.s32 %v1710, %v1712
  %v1714 = vrot.slane %v1698, %v1713
  %v1715 = vld [vmem:[%s5] sm:$0xff]
  %v1716 = vld [vmem:[%s5 + $0x8] sm:$0xff]
  %v1717 = vld [vmem:[%s5 + $0x10] sm:$0xff]
  %v1718 = vld [vmem:[%s5 + $0x18] sm:$0xff]
  %v1719 = vld [vmem:[%s5 + $0x20] sm:$0xff]
  %v1720 = vld [vmem:[%s5 + $0x28] sm:$0xff]
  %v1721 = vld [vmem:[%s5 + $0x30] sm:$0xff]
  %v1722 = vld [vmem:[%s5 + $0x38] sm:$0xff]
  %v1723 = vld [vmem:[%s5 + $0x40] sm:$0xff]
  %v1724 = vld [vmem:[%s5 + $0x48] sm:$0xff]
  %v1725 = vld [vmem:[%s5 + $0x50] sm:$0xff]
  %v1726 = vld [vmem:[%s5 + $0x58] sm:$0xff]
  %v1727 = vld [vmem:[%s5 + $0x60] sm:$0xff]
  %v1728 = vld [vmem:[%s5 + $0x68] sm:$0xff]
  %v1729 = vld [vmem:[%s5 + $0x70] sm:$0xff]
  %v1730 = vld [vmem:[%s5 + $0x78] sm:$0xff]
  %v1731 = vld [vmem:[%s5 + $0x80] sm:$0xff]
  %v1732 = vld [vmem:[%s5 + $0x88] sm:$0xff]
  %v1733 = vld [vmem:[%s5 + $0x90] sm:$0xff]
  %v1734 = vld [vmem:[%s5 + $0x98] sm:$0xff]
  %v1735 = vld [vmem:[%s5 + $0xa0] sm:$0xff]
  %v1736 = vld [vmem:[%s5 + $0xa8] sm:$0xff]
  %v1737 = vld [vmem:[%s5 + $0xb0] sm:$0xff]
  %v1738 = vld [vmem:[%s5 + $0xb8] sm:$0xff]
  %v1739 = vld [vmem:[%s75] sm:$0x33]
  %v1740 = vld [vmem:[%s75 + $0x10] sm:$0x33]
  %v1744 = vunpack.c.l.s4 1983009808
  %v1745 = vunpack.c.0.s8 %v1744
  %v1746 = vlaneseq
  %v1747 = vshrl.u32 %v1746, 7
  %v1748 = vsub.s32 %v1745, %v1747
  %v1749 = vrot.slane %v1739, %v1748
  %v1751 = vunpack.c.l.s4 1983009808
  %v1752 = vunpack.c.0.s8 %v1751
  %v1753 = vlaneseq
  %v1754 = vshrl.u32 %v1753, 7
  %v1755 = vsub.s32 %v1752, %v1754
  %v1756 = vrot.slane %v1740, %v1755
  %s1757 = scalar_lea.vmem %s5, 192
  %v1758 = vld [vmem:[%s1757] sm:$0xff]
  %v1759 = vld [vmem:[%s1757 + $0x8] sm:$0xff]
  %v1760 = vld [vmem:[%s1757 + $0x10] sm:$0xff]
  %v1761 = vld [vmem:[%s1757 + $0x18] sm:$0xff]
  %v1762 = vld [vmem:[%s1757 + $0x20] sm:$0xff]
  %v1763 = vld [vmem:[%s1757 + $0x28] sm:$0xff]
  %v1764 = vld [vmem:[%s1757 + $0x30] sm:$0xff]
  %v1765 = vld [vmem:[%s1757 + $0x38] sm:$0xff]
  %v1766 = vld [vmem:[%s1757 + $0x40] sm:$0xff]
  %v1767 = vld [vmem:[%s1757 + $0x48] sm:$0xff]
  %v1768 = vld [vmem:[%s1757 + $0x50] sm:$0xff]
  %v1769 = vld [vmem:[%s1757 + $0x58] sm:$0xff]
  %v1770 = vld [vmem:[%s1757 + $0x60] sm:$0xff]
  %v1771 = vld [vmem:[%s1757 + $0x68] sm:$0xff]
  %v1772 = vld [vmem:[%s1757 + $0x70] sm:$0xff]
  %v1773 = vld [vmem:[%s1757 + $0x78] sm:$0xff]
  %v1774 = vld [vmem:[%s1757 + $0x80] sm:$0xff]
  %v1775 = vld [vmem:[%s1757 + $0x88] sm:$0xff]
  %v1776 = vld [vmem:[%s1757 + $0x90] sm:$0xff]
  %v1777 = vld [vmem:[%s1757 + $0x98] sm:$0xff]
  %v1778 = vld [vmem:[%s1757 + $0xa0] sm:$0xff]
  %v1779 = vld [vmem:[%s1757 + $0xa8] sm:$0xff]
  %v1780 = vld [vmem:[%s1757 + $0xb0] sm:$0xff]
  %v1781 = vld [vmem:[%s1757 + $0xb8] sm:$0xff]
  %v1782 = vcombine.low %v1749, %v1756
  %v1784 = vunpack.c.l.s4 1983009808
  %v1785 = vunpack.c.0.s8 %v1784
  %v1786 = vlaneseq
  %v1787 = vshrl.u32 %v1786, 7
  %v1788 = vsub.s32 %v1785, %v1787
  %v1789 = vrot.slane %v1782, %v1788
  %v1790 = vcombine.high %v1789, %v1789
  %v1792 = vsel %vm884, %v1790, 0
  %1794 = vmatprep.subr.mxu0 0.0
  %1795 = vmatpush1.msra.mxu0 %v1758
  %1796 = vmatprep.subr.mxu0 0.0
  %1797 = vmatpush1.msra.mxu0 %v1759
  %1798 = vmatprep.subr.mxu0 0.0
  %1799 = vmatpush1.msra.mxu0 %v1760
  %1800 = vmatprep.subr.mxu0 0.0
  %1801 = vmatpush1.msra.mxu0 %v1761
  %1802 = vmatprep.subr.mxu0 0.0
  %1803 = vmatpush1.msra.mxu0 %v1762
  %1804 = vmatprep.subr.mxu0 0.0
  %1805 = vmatpush1.msra.mxu0 %v1763
  %1806 = vmatprep.subr.mxu0 0.0
  %1807 = vmatpush1.msra.mxu0 %v1764
  %1808 = vmatprep.subr.mxu0 0.0
  %1809 = vmatpush1.msra.mxu0 %v1765
  %1810 = vmatprep.subr.mxu0 0.0
  %1811 = vmatpush1.msra.mxu0 %v1766
  %1812 = vmatprep.subr.mxu0 0.0
  %1813 = vmatpush1.msra.mxu0 %v1767
  %1814 = vmatprep.subr.mxu0 0.0
  %1815 = vmatpush1.msra.mxu0 %v1768
  %1816 = vmatprep.subr.mxu0 0.0
  %1817 = vmatpush1.msra.mxu0 %v1769
  %1818 = vmatprep.subr.mxu0 0.0
  %1819 = vmatpush1.msra.mxu0 %v1770
  %1820 = vmatprep.subr.mxu0 0.0
  %1821 = vmatpush1.msra.mxu0 %v1771
  %1822 = vmatprep.subr.mxu0 0.0
  %1823 = vmatpush1.msra.mxu0 %v1772
  %1824 = vmatprep.subr.mxu0 0.0
  %1825 = vmatpush1.msra.mxu0 %v1773
  %1826 = vmatprep.subr.mxu0 0.0
  %1827 = vmatpush1.msra.mxu0 %v1774
  %1828 = vmatprep.subr.mxu0 0.0
  %1829 = vmatpush1.msra.mxu0 %v1775
  %1830 = vmatprep.subr.mxu0 0.0
  %1831 = vmatpush1.msra.mxu0 %v1776
  %1832 = vmatprep.subr.mxu0 0.0
  %1833 = vmatpush1.msra.mxu0 %v1777
  %1834 = vmatprep.subr.mxu0 0.0
  %1835 = vmatpush1.msra.mxu0 %v1778
  %1836 = vmatprep.subr.mxu0 0.0
  %1837 = vmatpush1.msra.mxu0 %v1779
  %1838 = vmatprep.subr.mxu0 0.0
  %1839 = vmatpush1.msra.mxu0 %v1780
  %1840 = vmatprep.subr.mxu0 0.0
  %1841 = vmatpush1.msra.mxu0 %v1781
  %1842 = vmatprep.subr.mxu0 0.0
  %1843 = vmatpush1.msra.mxu0 0.0
  %1844 = vmatprep.subr.mxu0 0.0
  %1845 = vmatpush1.msra.mxu0 0.0
  %1846 = vmatprep.subr.mxu0 0.0
  %1847 = vmatpush1.msra.mxu0 0.0
  %1848 = vmatprep.subr.mxu0 0.0
  %1849 = vmatpush1.msra.mxu0 0.0
  %1850 = vmatprep.subr.mxu0 0.0
  %1851 = vmatpush1.msra.mxu0 0.0
  %1852 = vmatprep.subr.mxu0 0.0
  %1853 = vmatpush1.msra.mxu0 0.0
  %1854 = vmatprep.subr.mxu0 0.0
  %1855 = vmatpush1.msra.mxu0 0.0
  %1856 = vmatprep.subr.mxu0 0.0
  %1857 = vmatpush1.msra.mxu0 0.0
  %1858 = vmatprep.mubr.f32.mxu0 %v1792
  %1859 = vmatmul.mubr.f32.gmra.mrb[0].mxu0 %v1789
  %v1860 = vpop.f32.mrb[0].mxu0
  %v1861 = vadd.f32 0.0, %v1860
  %v1862 = vpop.f32.mrb[0].mxu0
  %1863 = vdwg.mxu0
  %v1864 = vcombine.low %v1707, %v1714
  %v1866 = vunpack.c.l.s4 1983009808
  %v1867 = vunpack.c.0.s8 %v1866
  %v1868 = vlaneseq
  %v1869 = vshrl.u32 %v1868, 7
  %v1870 = vsub.s32 %v1867, %v1869
  %v1871 = vrot.slane %v1864, %v1870
  %v1872 = vcombine.high %v1871, %v1871
  %v1874 = vsel %vm884, %v1872, 0
  %1876 = vmatprep.subr.mxu0 0.0
  %1877 = vmatpush1.msra.mxu0 %v1715
  %1878 = vmatprep.subr.mxu0 0.0
  %1879 = vmatpush1.msra.mxu0 %v1716
  %1880 = vmatprep.subr.mxu0 0.0
  %1881 = vmatpush1.msra.mxu0 %v1717
  %1882 = vmatprep.subr.mxu0 0.0
  %1883 = vmatpush1.msra.mxu0 %v1718
  %1884 = vmatprep.subr.mxu0 0.0
  %1885 = vmatpush1.msra.mxu0 %v1719
  %1886 = vmatprep.subr.mxu0 0.0
  %1887 = vmatpush1.msra.mxu0 %v1720
  %1888 = vmatprep.subr.mxu0 0.0
  %1889 = vmatpush1.msra.mxu0 %v1721
  %1890 = vmatprep.subr.mxu0 0.0
  %1891 = vmatpush1.msra.mxu0 %v1722
  %1892 = vmatprep.subr.mxu0 0.0
  %1893 = vmatpush1.msra.mxu0 %v1723
  %1894 = vmatprep.subr.mxu0 0.0
  %1895 = vmatpush1.msra.mxu0 %v1724
  %1896 = vmatprep.subr.mxu0 0.0
  %1897 = vmatpush1.msra.mxu0 %v1725
  %1898 = vmatprep.subr.mxu0 0.0
  %1899 = vmatpush1.msra.mxu0 %v1726
  %1900 = vmatprep.subr.mxu0 0.0
  %1901 = vmatpush1.msra.mxu0 %v1727
  %1902 = vmatprep.subr.mxu0 0.0
  %1903 = vmatpush1.msra.mxu0 %v1728
  %1904 = vmatprep.subr.mxu0 0.0
  %1905 = vmatpush1.msra.mxu0 %v1729
  %1906 = vmatprep.subr.mxu0 0.0
  %1907 = vmatpush1.msra.mxu0 %v1730
  %1908 = vmatprep.subr.mxu0 0.0
  %1909 = vmatpush1.msra.mxu0 %v1731
  %1910 = vmatprep.subr.mxu0 0.0
  %1911 = vmatpush1.msra.mxu0 %v1732
  %1912 = vmatprep.subr.mxu0 0.0
  %1913 = vmatpush1.msra.mxu0 %v1733
  %1914 = vmatprep.subr.mxu0 0.0
  %1915 = vmatpush1.msra.mxu0 %v1734
  %1916 = vmatprep.subr.mxu0 0.0
  %1917 = vmatpush1.msra.mxu0 %v1735
  %1918 = vmatprep.subr.mxu0 0.0
  %1919 = vmatpush1.msra.mxu0 %v1736
  %1920 = vmatprep.subr.mxu0 0.0
  %1921 = vmatpush1.msra.mxu0 %v1737
  %1922 = vmatprep.subr.mxu0 0.0
  %1923 = vmatpush1.msra.mxu0 %v1738
  %1924 = vmatprep.subr.mxu0 0.0
  %1925 = vmatpush1.msra.mxu0 0.0
  %1926 = vmatprep.subr.mxu0 0.0
  %1927 = vmatpush1.msra.mxu0 0.0
  %1928 = vmatprep.subr.mxu0 0.0
  %1929 = vmatpush1.msra.mxu0 0.0
  %1930 = vmatprep.subr.mxu0 0.0
  %1931 = vmatpush1.msra.mxu0 0.0
  %1932 = vmatprep.subr.mxu0 0.0
  %1933 = vmatpush1.msra.mxu0 0.0
  %1934 = vmatprep.subr.mxu0 0.0
  %1935 = vmatpush1.msra.mxu0 0.0
  %1936 = vmatprep.subr.mxu0 0.0
  %1937 = vmatpush1.msra.mxu0 0.0
  %1938 = vmatprep.subr.mxu0 0.0
  %1939 = vmatpush1.msra.mxu0 0.0
  %1940 = vmatprep.mubr.f32.mxu0 %v1874
  %1941 = vmatmul.mubr.f32.gmra.mrb[0].mxu0 %v1871
  %v1942 = vpop.f32.mrb[0].mxu0
  %v1943 = vadd.f32 %v1861, %v1942
  %v1944 = vpop.f32.mrb[0].mxu0
  %1945 = vdwg.mxu0
  %v1946 = vld [vmem:[#allocation3] sm:$0x66]
  %v1947 = vld [vmem:[#allocation3 + $0x10] sm:$0x66]
  %v1951 = vunpack.c.l.s4 1983009808
  %v1952 = vunpack.c.0.s8 %v1951
  %v1953 = vlaneseq
  %v1954 = vshrl.u32 %v1953, 7
  %v1955 = vsub.s32 %v1952, %v1954
  %v1956 = vrot.slane %v1946, %v1955
  %v1957 = vcombine.high %v1956, %v1956
  %v1959 = vunpack.c.l.s4 1983009808
  %v1960 = vunpack.c.0.s8 %v1959
  %v1961 = vlaneseq
  %v1962 = vshrl.u32 %v1961, 7
  %v1963 = vsub.s32 %v1960, %v1962
  %v1964 = vrot.slane %v1947, %v1963
  %v1965 = vcombine.high %v1964, %v1964
  %vm1966 = vcmask 1040384
  %vm1967 = vcmask 1042434
  %vm1968 = vmor %vm1966, %vm1967
  %vm1969 = vcmask 1044484
  %vm1970 = vmor %vm1968, %vm1969
  %vm1971 = vcmask 1046534
  %vm1972 = vmor %vm1970, %vm1971
  %v1973 = vrot.slane %v1956, 7
  %v1974 = vrot.slane %v1973, 2
  %v1975 = vrot.slane %v1957, 7
  %v1976 = vsel %vm1972, %v1974, %v1975
  %v1977 = vrot.slane %v1964, 7
  %v1978 = vrot.slane %v1977, 2
  %v1979 = vrot.slane %v1965, 7
  %v1980 = vsel %vm1972, %v1978, %v1979
  %s1981 = scalar_lea.vmem %s5, 384
  %v1982 = vld [vmem:[%s1981] sm:$0xff]
  %v1983 = vld [vmem:[%s1981 + $0x8] sm:$0xff]
  %v1984 = vld [vmem:[%s1981 + $0x10] sm:$0xff]
  %v1985 = vld [vmem:[%s1981 + $0x18] sm:$0xff]
  %v1986 = vld [vmem:[%s1981 + $0x20] sm:$0xff]
  %v1987 = vld [vmem:[%s1981 + $0x28] sm:$0xff]
  %v1988 = vld [vmem:[%s1981 + $0x30] sm:$0xff]
  %v1989 = vld [vmem:[%s1981 + $0x38] sm:$0xff]
  %v1990 = vld [vmem:[%s1981 + $0x40] sm:$0xff]
  %v1991 = vld [vmem:[%s1981 + $0x48] sm:$0xff]
  %v1992 = vld [vmem:[%s1981 + $0x50] sm:$0xff]
  %v1993 = vld [vmem:[%s1981 + $0x58] sm:$0xff]
  %v1994 = vld [vmem:[%s1981 + $0x60] sm:$0xff]
  %v1995 = vld [vmem:[%s1981 + $0x68] sm:$0xff]
  %v1996 = vld [vmem:[%s1981 + $0x70] sm:$0xff]
  %v1997 = vld [vmem:[%s1981 + $0x78] sm:$0xff]
  %v1998 = vld [vmem:[%s1981 + $0x80] sm:$0xff]
  %v1999 = vld [vmem:[%s1981 + $0x88] sm:$0xff]
  %v2000 = vld [vmem:[%s1981 + $0x90] sm:$0xff]
  %v2001 = vld [vmem:[%s1981 + $0x98] sm:$0xff]
  %v2002 = vld [vmem:[%s1981 + $0xa0] sm:$0xff]
  %v2003 = vld [vmem:[%s1981 + $0xa8] sm:$0xff]
  %v2004 = vld [vmem:[%s1981 + $0xb0] sm:$0xff]
  %v2005 = vld [vmem:[%s1981 + $0xb8] sm:$0xff]
  %v2006 = vcombine.low %v1976, %v1980
  %v2008 = vunpack.c.l.s4 1983009808
  %v2009 = vunpack.c.0.s8 %v2008
  %v2010 = vlaneseq
  %v2011 = vshrl.u32 %v2010, 7
  %v2012 = vsub.s32 %v2009, %v2011
  %v2013 = vrot.slane %v2006, %v2012
  %v2014 = vcombine.high %v2013, %v2013
  %v2016 = vsel %vm884, %v2014, 0
  %2018 = vmatprep.subr.mxu0 0.0
  %2019 = vmatpush1.msra.mxu0 %v1982
  %2020 = vmatprep.subr.mxu0 0.0
  %2021 = vmatpush1.msra.mxu0 %v1983
  %2022 = vmatprep.subr.mxu0 0.0
  %2023 = vmatpush1.msra.mxu0 %v1984
  %2024 = vmatprep.subr.mxu0 0.0
  %2025 = vmatpush1.msra.mxu0 %v1985
  %2026 = vmatprep.subr.mxu0 0.0
  %2027 = vmatpush1.msra.mxu0 %v1986
  %2028 = vmatprep.subr.mxu0 0.0
  %2029 = vmatpush1.msra.mxu0 %v1987
  %2030 = vmatprep.subr.mxu0 0.0
  %2031 = vmatpush1.msra.mxu0 %v1988
  %2032 = vmatprep.subr.mxu0 0.0
  %2033 = vmatpush1.msra.mxu0 %v1989
  %2034 = vmatprep.subr.mxu0 0.0
  %2035 = vmatpush1.msra.mxu0 %v1990
  %2036 = vmatprep.subr.mxu0 0.0
  %2037 = vmatpush1.msra.mxu0 %v1991
  %2038 = vmatprep.subr.mxu0 0.0
  %2039 = vmatpush1.msra.mxu0 %v1992
  %2040 = vmatprep.subr.mxu0 0.0
  %2041 = vmatpush1.msra.mxu0 %v1993
  %2042 = vmatprep.subr.mxu0 0.0
  %2043 = vmatpush1.msra.mxu0 %v1994
  %2044 = vmatprep.subr.mxu0 0.0
  %2045 = vmatpush1.msra.mxu0 %v1995
  %2046 = vmatprep.subr.mxu0 0.0
  %2047 = vmatpush1.msra.mxu0 %v1996
  %2048 = vmatprep.subr.mxu0 0.0
  %2049 = vmatpush1.msra.mxu0 %v1997
  %2050 = vmatprep.subr.mxu0 0.0
  %2051 = vmatpush1.msra.mxu0 %v1998
  %2052 = vmatprep.subr.mxu0 0.0
  %2053 = vmatpush1.msra.mxu0 %v1999
  %2054 = vmatprep.subr.mxu0 0.0
  %2055 = vmatpush1.msra.mxu0 %v2000
  %2056 = vmatprep.subr.mxu0 0.0
  %2057 = vmatpush1.msra.mxu0 %v2001
  %2058 = vmatprep.subr.mxu0 0.0
  %2059 = vmatpush1.msra.mxu0 %v2002
  %2060 = vmatprep.subr.mxu0 0.0
  %2061 = vmatpush1.msra.mxu0 %v2003
  %2062 = vmatprep.subr.mxu0 0.0
  %2063 = vmatpush1.msra.mxu0 %v2004
  %2064 = vmatprep.subr.mxu0 0.0
  %2065 = vmatpush1.msra.mxu0 %v2005
  %2066 = vmatprep.subr.mxu0 0.0
  %2067 = vmatpush1.msra.mxu0 0.0
  %2068 = vmatprep.subr.mxu0 0.0
  %2069 = vmatpush1.msra.mxu0 0.0
  %2070 = vmatprep.subr.mxu0 0.0
  %2071 = vmatpush1.msra.mxu0 0.0
  %2072 = vmatprep.subr.mxu0 0.0
  %2073 = vmatpush1.msra.mxu0 0.0
  %2074 = vmatprep.subr.mxu0 0.0
  %2075 = vmatpush1.msra.mxu0 0.0
  %2076 = vmatprep.subr.mxu0 0.0
  %2077 = vmatpush1.msra.mxu0 0.0
  %2078 = vmatprep.subr.mxu0 0.0
  %2079 = vmatpush1.msra.mxu0 0.0
  %2080 = vmatprep.subr.mxu0 0.0
  %2081 = vmatpush1.msra.mxu0 0.0
  %2082 = vmatprep.mubr.f32.mxu0 %v2016
  %2083 = vmatmul.mubr.f32.gmra.mrb[0].mxu0 %v2013
  %v2084 = vpop.f32.mrb[0].mxu0
  %v2085 = vadd.f32 0.0, %v2084
  %v2086 = vpop.f32.mrb[0].mxu0
  %2087 = vdwg.mxu0
  %v2088 = vadd.f32 %v1943, %v2085
  %v2089 = vld [vmem:[%s75] sm:$0x66]
  %v2090 = vld [vmem:[%s75 + $0x10] sm:$0x66]
  %v2094 = vunpack.c.l.s4 1983009808
  %v2095 = vunpack.c.0.s8 %v2094
  %v2096 = vlaneseq
  %v2097 = vshrl.u32 %v2096, 7
  %v2098 = vsub.s32 %v2095, %v2097
  %v2099 = vrot.slane %v2089, %v2098
  %v2100 = vcombine.high %v2099, %v2099
  %v2102 = vunpack.c.l.s4 1983009808
  %v2103 = vunpack.c.0.s8 %v2102
  %v2104 = vlaneseq
  %v2105 = vshrl.u32 %v2104, 7
  %v2106 = vsub.s32 %v2103, %v2105
  %v2107 = vrot.slane %v2090, %v2106
  %v2108 = vcombine.high %v2107, %v2107
  %v2109 = vrot.slane %v2099, 7
  %v2110 = vrot.slane %v2109, 2
  %v2111 = vrot.slane %v2100, 7
  %v2112 = vsel %vm1972, %v2110, %v2111
  %v2113 = vrot.slane %v2107, 7
  %v2114 = vrot.slane %v2113, 2
  %v2115 = vrot.slane %v2108, 7
  %v2116 = vsel %vm1972, %v2114, %v2115
  %s2117 = scalar_lea.vmem %s5, 576
  %v2118 = vld [vmem:[%s2117] sm:$0xff]
  %v2119 = vld [vmem:[%s2117 + $0x8] sm:$0xff]
  %v2120 = vld [vmem:[%s2117 + $0x10] sm:$0xff]
  %v2121 = vld [vmem:[%s2117 + $0x18] sm:$0xff]
  %v2122 = vld [vmem:[%s2117 + $0x20] sm:$0xff]
  %v2123 = vld [vmem:[%s2117 + $0x28] sm:$0xff]
  %v2124 = vld [vmem:[%s2117 + $0x30] sm:$0xff]
  %v2125 = vld [vmem:[%s2117 + $0x38] sm:$0xff]
  %v2126 = vld [vmem:[%s2117 + $0x40] sm:$0xff]
  %v2127 = vld [vmem:[%s2117 + $0x48] sm:$0xff]
  %v2128 = vld [vmem:[%s2117 + $0x50] sm:$0xff]
  %v2129 = vld [vmem:[%s2117 + $0x58] sm:$0xff]
  %v2130 = vld [vmem:[%s2117 + $0x60] sm:$0xff]
  %v2131 = vld [vmem:[%s2117 + $0x68] sm:$0xff]
  %v2132 = vld [vmem:[%s2117 + $0x70] sm:$0xff]
  %v2133 = vld [vmem:[%s2117 + $0x78] sm:$0xff]
  %v2134 = vld [vmem:[%s2117 + $0x80] sm:$0xff]
  %v2135 = vld [vmem:[%s2117 + $0x88] sm:$0xff]
  %v2136 = vld [vmem:[%s2117 + $0x90] sm:$0xff]
  %v2137 = vld [vmem:[%s2117 + $0x98] sm:$0xff]
  %v2138 = vld [vmem:[%s2117 + $0xa0] sm:$0xff]
  %v2139 = vld [vmem:[%s2117 + $0xa8] sm:$0xff]
  %v2140 = vld [vmem:[%s2117 + $0xb0] sm:$0xff]
  %v2141 = vld [vmem:[%s2117 + $0xb8] sm:$0xff]
  %v2142 = vcombine.low %v2112, %v2116
  %v2144 = vunpack.c.l.s4 1983009808
  %v2145 = vunpack.c.0.s8 %v2144
  %v2146 = vlaneseq
  %v2147 = vshrl.u32 %v2146, 7
  %v2148 = vsub.s32 %v2145, %v2147
  %v2149 = vrot.slane %v2142, %v2148
  %v2150 = vcombine.high %v2149, %v2149
  %v2152 = vsel %vm884, %v2150, 0
  %2154 = vmatprep.subr.mxu0 0.0
  %2155 = vmatpush1.msra.mxu0 %v2118
  %2156 = vmatprep.subr.mxu0 0.0
  %2157 = vmatpush1.msra.mxu0 %v2119
  %2158 = vmatprep.subr.mxu0 0.0
  %2159 = vmatpush1.msra.mxu0 %v2120
  %2160 = vmatprep.subr.mxu0 0.0
  %2161 = vmatpush1.msra.mxu0 %v2121
  %2162 = vmatprep.subr.mxu0 0.0
  %2163 = vmatpush1.msra.mxu0 %v2122
  %2164 = vmatprep.subr.mxu0 0.0
  %2165 = vmatpush1.msra.mxu0 %v2123
  %2166 = vmatprep.subr.mxu0 0.0
  %2167 = vmatpush1.msra.mxu0 %v2124
  %2168 = vmatprep.subr.mxu0 0.0
  %2169 = vmatpush1.msra.mxu0 %v2125
  %2170 = vmatprep.subr.mxu0 0.0
  %2171 = vmatpush1.msra.mxu0 %v2126
  %2172 = vmatprep.subr.mxu0 0.0
  %2173 = vmatpush1.msra.mxu0 %v2127
  %2174 = vmatprep.subr.mxu0 0.0
  %2175 = vmatpush1.msra.mxu0 %v2128
  %2176 = vmatprep.subr.mxu0 0.0
  %2177 = vmatpush1.msra.mxu0 %v2129
  %2178 = vmatprep.subr.mxu0 0.0
  %2179 = vmatpush1.msra.mxu0 %v2130
  %2180 = vmatprep.subr.mxu0 0.0
  %2181 = vmatpush1.msra.mxu0 %v2131
  %2182 = vmatprep.subr.mxu0 0.0
  %2183 = vmatpush1.msra.mxu0 %v2132
  %2184 = vmatprep.subr.mxu0 0.0
  %2185 = vmatpush1.msra.mxu0 %v2133
  %2186 = vmatprep.subr.mxu0 0.0
  %2187 = vmatpush1.msra.mxu0 %v2134
  %2188 = vmatprep.subr.mxu0 0.0
  %2189 = vmatpush1.msra.mxu0 %v2135
  %2190 = vmatprep.subr.mxu0 0.0
  %2191 = vmatpush1.msra.mxu0 %v2136
  %2192 = vmatprep.subr.mxu0 0.0
  %2193 = vmatpush1.msra.mxu0 %v2137
  %2194 = vmatprep.subr.mxu0 0.0
  %2195 = vmatpush1.msra.mxu0 %v2138
  %2196 = vmatprep.subr.mxu0 0.0
  %2197 = vmatpush1.msra.mxu0 %v2139
  %2198 = vmatprep.subr.mxu0 0.0
  %2199 = vmatpush1.msra.mxu0 %v2140
  %2200 = vmatprep.subr.mxu0 0.0
  %2201 = vmatpush1.msra.mxu0 %v2141
  %2202 = vmatprep.subr.mxu0 0.0
  %2203 = vmatpush1.msra.mxu0 0.0
  %2204 = vmatprep.subr.mxu0 0.0
  %2205 = vmatpush1.msra.mxu0 0.0
  %2206 = vmatprep.subr.mxu0 0.0
  %2207 = vmatpush1.msra.mxu0 0.0
  %2208 = vmatprep.subr.mxu0 0.0
  %2209 = vmatpush1.msra.mxu0 0.0
  %2210 = vmatprep.subr.mxu0 0.0
  %2211 = vmatpush1.msra.mxu0 0.0
  %2212 = vmatprep.subr.mxu0 0.0
  %2213 = vmatpush1.msra.mxu0 0.0
  %2214 = vmatprep.subr.mxu0 0.0
  %2215 = vmatpush1.msra.mxu0 0.0
  %2216 = vmatprep.subr.mxu0 0.0
  %2217 = vmatpush1.msra.mxu0 0.0
  %2218 = vmatprep.mubr.f32.mxu0 %v2152
  %2219 = vmatmul.mubr.f32.gmra.mrb[0].mxu0 %v2149
  %v2220 = vpop.f32.mrb[0].mxu0
  %v2221 = vadd.f32 0.0, %v2220
  %v2222 = vpop.f32.mrb[0].mxu0
  %2223 = vdwg.mxu0
  %v2224 = vadd.f32 %v2088, %v2221
  %v2225 = vld [vmem:[%s6] sm:$0x1]
  %v2227 = vlaneseq
  %v2228 = vshrl.u32 %v2227, 7
  %v2229 = vsub.s32 0, %v2228
  %v2230 = vrot.slane %v2225, %v2229
  %v2232 = vadd.f32 %v2224, %v2230
  %v2233 = vmax.f32 %v2232, 0.0
  %v2236 = vunpack.c.l.s4 1983009808
  %v2237 = vunpack.c.0.s8 %v2236
  %v2238 = vlaneseq
  %v2239 = vshrl.u32 %v2238, 7
  %v2240 = vsub.s32 %v2237, %v2239
  %v2241 = vrot.slane %v2233, %v2240
  %v2242 = vcombine.high %v2241, %v2241
  %v2243 = vld [vmem:[%s7] sm:$0xff]
  %v2244 = vld [vmem:[%s7 + $0x8] sm:$0xff]
  %v2245 = vld [vmem:[%s7 + $0x10] sm:$0xff]
  %v2246 = vld [vmem:[%s7 + $0x18] sm:$0xff]
  %v2247 = vld [vmem:[%s7 + $0x20] sm:$0xff]
  %v2248 = vld [vmem:[%s7 + $0x28] sm:$0xff]
  %v2249 = vld [vmem:[%s7 + $0x30] sm:$0xff]
  %v2250 = vld [vmem:[%s7 + $0x38] sm:$0xff]
  %s2251 = scalar_lea.vmem %s7, 64
  %v2252 = vld [vmem:[%s2251] sm:$0xff]
  %v2253 = vld [vmem:[%s2251 + $0x8] sm:$0xff]
  %v2254 = vld [vmem:[%s2251 + $0x10] sm:$0xff]
  %v2255 = vld [vmem:[%s2251 + $0x18] sm:$0xff]
  %v2256 = vld [vmem:[%s2251 + $0x20] sm:$0xff]
  %v2257 = vld [vmem:[%s2251 + $0x28] sm:$0xff]
  %v2258 = vld [vmem:[%s2251 + $0x30] sm:$0xff]
  %v2259 = vld [vmem:[%s2251 + $0x38] sm:$0xff]
  %v2260 = vlaneseq
  %v2261 = vshrl.u32 %v2260, 7
  %v2262 = vsub.s32 1, %v2261
  %v2263 = vrot.slane %v2241, %v2262
  %v2264 = vlaneseq
  %v2265 = vshrl.u32 %v2264, 7
  %v2266 = vsub.s32 1, %v2265
  %v2267 = vrot.slane %v2242, %v2266
  %vm2268 = vcmask 1041409
  %v2269 = vsel %vm2268, %v2267, %v2263
  %v2270 = vsel %vm884, %v2269, 0
  %2272 = vmatprep.subr.mxu0 0.0
  %2273 = vmatpush1.msra.mxu0 %v2252
  %2274 = vmatprep.subr.mxu0 0.0
  %2275 = vmatpush1.msra.mxu0 %v2253
  %2276 = vmatprep.subr.mxu0 0.0
  %2277 = vmatpush1.msra.mxu0 %v2254
  %2278 = vmatprep.subr.mxu0 0.0
  %2279 = vmatpush1.msra.mxu0 %v2255
  %2280 = vmatprep.subr.mxu0 0.0
  %2281 = vmatpush1.msra.mxu0 %v2256
  %2282 = vmatprep.subr.mxu0 0.0
  %2283 = vmatpush1.msra.mxu0 %v2257
  %2284 = vmatprep.subr.mxu0 0.0
  %2285 = vmatpush1.msra.mxu0 %v2258
  %2286 = vmatprep.subr.mxu0 0.0
  %2287 = vmatpush1.msra.mxu0 %v2259
  %2288 = vmatprep.subr.mxu0 0.0
  %2289 = vmatpush1.msra.mxu0 0.0
  %2290 = vmatprep.subr.mxu0 0.0
  %2291 = vmatpush1.msra.mxu0 0.0
  %2292 = vmatprep.subr.mxu0 0.0
  %2293 = vmatpush1.msra.mxu0 0.0
  %2294 = vmatprep.subr.mxu0 0.0
  %2295 = vmatpush1.msra.mxu0 0.0
  %2296 = vmatprep.subr.mxu0 0.0
  %2297 = vmatpush1.msra.mxu0 0.0
  %2298 = vmatprep.subr.mxu0 0.0
  %2299 = vmatpush1.msra.mxu0 0.0
  %2300 = vmatprep.subr.mxu0 0.0
  %2301 = vmatpush1.msra.mxu0 0.0
  %2302 = vmatprep.subr.mxu0 0.0
  %2303 = vmatpush1.msra.mxu0 0.0
  %2304 = vmatprep.subr.mxu0 0.0
  %2305 = vmatpush1.msra.mxu0 0.0
  %2306 = vmatprep.subr.mxu0 0.0
  %2307 = vmatpush1.msra.mxu0 0.0
  %2308 = vmatprep.subr.mxu0 0.0
  %2309 = vmatpush1.msra.mxu0 0.0
  %2310 = vmatprep.subr.mxu0 0.0
  %2311 = vmatpush1.msra.mxu0 0.0
  %2312 = vmatprep.subr.mxu0 0.0
  %2313 = vmatpush1.msra.mxu0 0.0
  %2314 = vmatprep.subr.mxu0 0.0
  %2315 = vmatpush1.msra.mxu0 0.0
  %2316 = vmatprep.subr.mxu0 0.0
  %2317 = vmatpush1.msra.mxu0 0.0
  %2318 = vmatprep.subr.mxu0 0.0
  %2319 = vmatpush1.msra.mxu0 0.0
  %2320 = vmatprep.subr.mxu0 0.0
  %2321 = vmatpush1.msra.mxu0 0.0
  %2322 = vmatprep.subr.mxu0 0.0
  %2323 = vmatpush1.msra.mxu0 0.0
  %2324 = vmatprep.subr.mxu0 0.0
  %2325 = vmatpush1.msra.mxu0 0.0
  %2326 = vmatprep.subr.mxu0 0.0
  %2327 = vmatpush1.msra.mxu0 0.0
  %2328 = vmatprep.subr.mxu0 0.0
  %2329 = vmatpush1.msra.mxu0 0.0
  %2330 = vmatprep.subr.mxu0 0.0
  %2331 = vmatpush1.msra.mxu0 0.0
  %2332 = vmatprep.subr.mxu0 0.0
  %2333 = vmatpush1.msra.mxu0 0.0
  %2334 = vmatprep.subr.mxu0 0.0
  %2335 = vmatpush1.msra.mxu0 0.0
  %2336 = vmatprep.mubr.f32.mxu0 0.0
  %2337 = vmatmul.mubr.f32.gmra.mrb[0].mxu0 %v2270
  %v2338 = vpop.f32.mrb[0].mxu0
  %v2339 = vadd.f32 0.0, %v2338
  %v2340 = vpop.f32.mrb[0].mxu0
  %2341 = vdwg.mxu0
  %v2342 = vlaneseq
  %v2343 = vshrl.u32 %v2342, 7
  %v2344 = vsub.s32 0, %v2343
  %v2345 = vrot.slane %v2241, %v2344
  %v2346 = vlaneseq
  %v2347 = vshrl.u32 %v2346, 7
  %v2348 = vsub.s32 0, %v2347
  %v2349 = vrot.slane %v2242, %v2348
  %v2350 = vsel %vm2268, %v2349, %v2345
  %v2351 = vsel %vm884, %v2350, 0
  %2353 = vmatprep.subr.mxu0 0.0
  %2354 = vmatpush1.msra.mxu0 %v2243
  %2355 = vmatprep.subr.mxu0 0.0
  %2356 = vmatpush1.msra.mxu0 %v2244
  %2357 = vmatprep.subr.mxu0 0.0
  %2358 = vmatpush1.msra.mxu0 %v2245
  %2359 = vmatprep.subr.mxu0 0.0
  %2360 = vmatpush1.msra.mxu0 %v2246
  %2361 = vmatprep.subr.mxu0 0.0
  %2362 = vmatpush1.msra.mxu0 %v2247
  %2363 = vmatprep.subr.mxu0 0.0
  %2364 = vmatpush1.msra.mxu0 %v2248
  %2365 = vmatprep.subr.mxu0 0.0
  %2366 = vmatpush1.msra.mxu0 %v2249
  %2367 = vmatprep.subr.mxu0 0.0
  %2368 = vmatpush1.msra.mxu0 %v2250
  %2369 = vmatprep.subr.mxu0 0.0
  %2370 = vmatpush1.msra.mxu0 0.0
  %2371 = vmatprep.subr.mxu0 0.0
  %2372 = vmatpush1.msra.mxu0 0.0
  %2373 = vmatprep.subr.mxu0 0.0
  %2374 = vmatpush1.msra.mxu0 0.0
  %2375 = vmatprep.subr.mxu0 0.0
  %2376 = vmatpush1.msra.mxu0 0.0
  %2377 = vmatprep.subr.mxu0 0.0
  %2378 = vmatpush1.msra.mxu0 0.0
  %2379 = vmatprep.subr.mxu0 0.0
  %2380 = vmatpush1.msra.mxu0 0.0
  %2381 = vmatprep.subr.mxu0 0.0
  %2382 = vmatpush1.msra.mxu0 0.0
  %2383 = vmatprep.subr.mxu0 0.0
  %2384 = vmatpush1.msra.mxu0 0.0
  %2385 = vmatprep.subr.mxu0 0.0
  %2386 = vmatpush1.msra.mxu0 0.0
  %2387 = vmatprep.subr.mxu0 0.0
  %2388 = vmatpush1.msra.mxu0 0.0
  %2389 = vmatprep.subr.mxu0 0.0
  %2390 = vmatpush1.msra.mxu0 0.0
  %2391 = vmatprep.subr.mxu0 0.0
  %2392 = vmatpush1.msra.mxu0 0.0
  %2393 = vmatprep.subr.mxu0 0.0
  %2394 = vmatpush1.msra.mxu0 0.0
  %2395 = vmatprep.subr.mxu0 0.0
  %2396 = vmatpush1.msra.mxu0 0.0
  %2397 = vmatprep.subr.mxu0 0.0
  %2398 = vmatpush1.msra.mxu0 0.0
  %2399 = vmatprep.subr.mxu0 0.0
  %2400 = vmatpush1.msra.mxu0 0.0
  %2401 = vmatprep.subr.mxu0 0.0
  %2402 = vmatpush1.msra.mxu0 0.0
  %2403 = vmatprep.subr.mxu0 0.0
  %2404 = vmatpush1.msra.mxu0 0.0
  %2405 = vmatprep.subr.mxu0 0.0
  %2406 = vmatpush1.msra.mxu0 0.0
  %2407 = vmatprep.subr.mxu0 0.0
  %2408 = vmatpush1.msra.mxu0 0.0
  %2409 = vmatprep.subr.mxu0 0.0
  %2410 = vmatpush1.msra.mxu0 0.0
  %2411 = vmatprep.subr.mxu0 0.0
  %2412 = vmatpush1.msra.mxu0 0.0
  %2413 = vmatprep.subr.mxu0 0.0
  %2414 = vmatpush1.msra.mxu0 0.0
  %2415 = vmatprep.subr.mxu0 0.0
  %2416 = vmatpush1.msra.mxu0 0.0
  %2417 = vmatprep.mubr.f32.mxu0 0.0
  %2418 = vmatmul.mubr.f32.gmra.mrb[0].mxu0 %v2351
  %v2419 = vpop.f32.mrb[0].mxu0
  %v2420 = vadd.f32 %v2339, %v2419
  %v2421 = vpop.f32.mrb[0].mxu0
  %2422 = vdwg.mxu0
  %v2423 = vld [vmem:[%s8] sm:$0x1]
  %v2425 = vlaneseq
  %v2426 = vshrl.u32 %v2425, 7
  %v2427 = vsub.s32 0, %v2426
  %v2428 = vrot.slane %v2423, %v2427
  %v2430 = vadd.f32 %v2420, %v2428
  %v2431 = vmax.f32 %v2430, 0.0
  %v2432 = vld [vmem:[%s9] sm:$0xff]
  %v2433 = vld [vmem:[%s9 + $0x8] sm:$0xff]
  %v2434 = vld [vmem:[%s9 + $0x10] sm:$0xff]
  %v2435 = vld [vmem:[%s9 + $0x18] sm:$0xff]
  %v2436 = vld [vmem:[%s10] sm:$0x1]
  %v2438 = vlaneseq
  %v2439 = vshrl.u32 %v2438, 7
  %v2440 = vsub.s32 0, %v2439
  %v2441 = vrot.slane %v2436, %v2440
  %v2444 = vsel %vm575, %v2431, 0
  %2446 = vmatprep.subr.mxu0 0.0
  %2447 = vmatpush1.msra.mxu0 %v2432
  %2448 = vmatprep.subr.mxu0 0.0
  %2449 = vmatpush1.msra.mxu0 %v2433
  %2450 = vmatprep.subr.mxu0 0.0
  %2451 = vmatpush1.msra.mxu0 %v2434
  %2452 = vmatprep.subr.mxu0 0.0
  %2453 = vmatpush1.msra.mxu0 %v2435
  %2454 = vmatprep.subr.mxu0 0.0
  %2455 = vmatpush1.msra.mxu0 0.0
  %2456 = vmatprep.subr.mxu0 0.0
  %2457 = vmatpush1.msra.mxu0 0.0
  %2458 = vmatprep.subr.mxu0 0.0
  %2459 = vmatpush1.msra.mxu0 0.0
  %2460 = vmatprep.subr.mxu0 0.0
  %2461 = vmatpush1.msra.mxu0 0.0
  %2462 = vmatprep.subr.mxu0 0.0
  %2463 = vmatpush1.msra.mxu0 0.0
  %2464 = vmatprep.subr.mxu0 0.0
  %2465 = vmatpush1.msra.mxu0 0.0
  %2466 = vmatprep.subr.mxu0 0.0
  %2467 = vmatpush1.msra.mxu0 0.0
  %2468 = vmatprep.subr.mxu0 0.0
  %2469 = vmatpush1.msra.mxu0 0.0
  %2470 = vmatprep.subr.mxu0 0.0
  %2471 = vmatpush1.msra.mxu0 0.0
  %2472 = vmatprep.subr.mxu0 0.0
  %2473 = vmatpush1.msra.mxu0 0.0
  %2474 = vmatprep.subr.mxu0 0.0
  %2475 = vmatpush1.msra.mxu0 0.0
  %2476 = vmatprep.subr.mxu0 0.0
  %2477 = vmatpush1.msra.mxu0 0.0
  %2478 = vmatprep.subr.mxu0 0.0
  %2479 = vmatpush1.msra.mxu0 0.0
  %2480 = vmatprep.subr.mxu0 0.0
  %2481 = vmatpush1.msra.mxu0 0.0
  %2482 = vmatprep.subr.mxu0 0.0
  %2483 = vmatpush1.msra.mxu0 0.0
  %2484 = vmatprep.subr.mxu0 0.0
  %2485 = vmatpush1.msra.mxu0 0.0
  %2486 = vmatprep.subr.mxu0 0.0
  %2487 = vmatpush1.msra.mxu0 0.0
  %2488 = vmatprep.subr.mxu0 0.0
  %2489 = vmatpush1.msra.mxu0 0.0
  %2490 = vmatprep.subr.mxu0 0.0
  %2491 = vmatpush1.msra.mxu0 0.0
  %2492 = vmatprep.subr.mxu0 0.0
  %2493 = vmatpush1.msra.mxu0 0.0
  %2494 = vmatprep.subr.mxu0 0.0
  %2495 = vmatpush1.msra.mxu0 0.0
  %2496 = vmatprep.subr.mxu0 0.0
  %2497 = vmatpush1.msra.mxu0 0.0
  %2498 = vmatprep.subr.mxu0 0.0
  %2499 = vmatpush1.msra.mxu0 0.0
  %2500 = vmatprep.subr.mxu0 0.0
  %2501 = vmatpush1.msra.mxu0 0.0
  %2502 = vmatprep.subr.mxu0 0.0
  %2503 = vmatpush1.msra.mxu0 0.0
  %2504 = vmatprep.subr.mxu0 0.0
  %2505 = vmatpush1.msra.mxu0 0.0
  %2506 = vmatprep.subr.mxu0 0.0
  %2507 = vmatpush1.msra.mxu0 0.0
  %2508 = vmatprep.subr.mxu0 0.0
  %2509 = vmatpush1.msra.mxu0 0.0
  %2510 = vmatprep.mubr.f32.mxu0 0.0
  %2511 = vmatmul.mubr.f32.gmra.mrb[0].mxu0 %v2444
  %v2512 = vpop.f32.mrb[0].mxu0
  %v2513 = vadd.f32 %v2441, %v2512
  %v2514 = vpop.f32.mrb[0].mxu0
  %2515 = vdwg.mxu0
  %v2516 = vmax.f32 %v2513, 0.0
  %v2517 = vld [vmem:[%s11] sm:$0xff]
  %v2518 = vld [vmem:[%s11 + $0x8] sm:$0xff]
  %v2519 = vld [vmem:[%s11 + $0x10] sm:$0xff]
  %v2520 = vld [vmem:[%s11 + $0x18] sm:$0xff]
  %v2521 = vld [vmem:[%s12] sm:$0x1]
  %v2523 = vlaneseq
  %v2524 = vshrl.u32 %v2523, 7
  %v2525 = vsub.s32 0, %v2524
  %v2526 = vrot.slane %v2521, %v2525
  %v2529 = vsel %vm575, %v2516, 0
  %2531 = vmatprep.subr.mxu0 0.0
  %2532 = vmatpush1.msra.mxu0 %v2517
  %2533 = vmatprep.subr.mxu0 0.0
  %2534 = vmatpush1.msra.mxu0 %v2518
  %2535 = vmatprep.subr.mxu0 0.0
  %2536 = vmatpush1.msra.mxu0 %v2519
  %2537 = vmatprep.subr.mxu0 0.0
  %2538 = vmatpush1.msra.mxu0 %v2520
  %2539 = vmatprep.subr.mxu0 0.0
  %2540 = vmatpush1.msra.mxu0 0.0
  %2541 = vmatprep.subr.mxu0 0.0
  %2542 = vmatpush1.msra.mxu0 0.0
  %2543 = vmatprep.subr.mxu0 0.0
  %2544 = vmatpush1.msra.mxu0 0.0
  %2545 = vmatprep.subr.mxu0 0.0
  %2546 = vmatpush1.msra.mxu0 0.0
  %2547 = vmatprep.subr.mxu0 0.0
  %2548 = vmatpush1.msra.mxu0 0.0
  %2549 = vmatprep.subr.mxu0 0.0
  %2550 = vmatpush1.msra.mxu0 0.0
  %2551 = vmatprep.subr.mxu0 0.0
  %2552 = vmatpush1.msra.mxu0 0.0
  %2553 = vmatprep.subr.mxu0 0.0
  %2554 = vmatpush1.msra.mxu0 0.0
  %2555 = vmatprep.subr.mxu0 0.0
  %2556 = vmatpush1.msra.mxu0 0.0
  %2557 = vmatprep.subr.mxu0 0.0
  %2558 = vmatpush1.msra.mxu0 0.0
  %2559 = vmatprep.subr.mxu0 0.0
  %2560 = vmatpush1.msra.mxu0 0.0
  %2561 = vmatprep.subr.mxu0 0.0
  %2562 = vmatpush1.msra.mxu0 0.0
  %2563 = vmatprep.subr.mxu0 0.0
  %2564 = vmatpush1.msra.mxu0 0.0
  %2565 = vmatprep.subr.mxu0 0.0
  %2566 = vmatpush1.msra.mxu0 0.0
  %2567 = vmatprep.subr.mxu0 0.0
  %2568 = vmatpush1.msra.mxu0 0.0
  %2569 = vmatprep.subr.mxu0 0.0
  %2570 = vmatpush1.msra.mxu0 0.0
  %2571 = vmatprep.subr.mxu0 0.0
  %2572 = vmatpush1.msra.mxu0 0.0
  %2573 = vmatprep.subr.mxu0 0.0
  %2574 = vmatpush1.msra.mxu0 0.0
  %2575 = vmatprep.subr.mxu0 0.0
  %2576 = vmatpush1.msra.mxu0 0.0
  %2577 = vmatprep.subr.mxu0 0.0
  %2578 = vmatpush1.msra.mxu0 0.0
  %2579 = vmatprep.subr.mxu0 0.0
  %2580 = vmatpush1.msra.mxu0 0.0
  %2581 = vmatprep.subr.mxu0 0.0
  %2582 = vmatpush1.msra.mxu0 0.0
  %2583 = vmatprep.subr.mxu0 0.0
  %2584 = vmatpush1.msra.mxu0 0.0
  %2585 = vmatprep.subr.mxu0 0.0
  %2586 = vmatpush1.msra.mxu0 0.0
  %2587 = vmatprep.subr.mxu0 0.0
  %2588 = vmatpush1.msra.mxu0 0.0
  %2589 = vmatprep.subr.mxu0 0.0
  %2590 = vmatpush1.msra.mxu0 0.0
  %2591 = vmatprep.subr.mxu0 0.0
  %2592 = vmatpush1.msra.mxu0 0.0
  %2593 = vmatprep.subr.mxu0 0.0
  %2594 = vmatpush1.msra.mxu0 0.0
  %2595 = vmatprep.mubr.f32.mxu0 0.0
  %2596 = vmatmul.mubr.f32.gmra.mrb[0].mxu0 %v2529
  %v2597 = vpop.f32.mrb[0].mxu0
  %v2598 = vadd.f32 %v2526, %v2597
  %v2599 = vpop.f32.mrb[0].mxu0
  %2600 = vdwg.mxu0
  %v2603 = vunpack.c.l.s4 1966171168
  %v2604 = vunpack.c.0.s8 %v2603
  %v2605 = vlaneseq
  %v2606 = vshrl.u32 %v2605, 7
  %v2607 = vsub.s32 %v2604, %v2606
  %v2608 = vrot.slane %v2598, %v2607
  %v2609 = vcombine.high %v2608, %v2608
  %v2611 = vunpack.c.l.s4 1966171168
  %v2612 = vunpack.c.0.s8 %v2611
  %v2613 = vlaneseq
  %v2614 = vshrl.u32 %v2613, 7
  %v2615 = vsub.s32 %v2612, %v2614
  %v2616 = vrot.slane %v2608, %v2615
  %v2618 = vunpack.c.l.s4 1966171168
  %v2619 = vunpack.c.0.s8 %v2618
  %v2620 = vlaneseq
  %v2621 = vshrl.u32 %v2620, 7
  %v2622 = vsub.s32 %v2619, %v2621
  %v2623 = vrot.slane %v2609, %v2622
  %vm2626 = vcmask 155648
  %2627 = vst.msk [vmem:[%s13] sm:$0x1] %vm2626, %v2616
  %2628 = vst.msk [vmem:[%s13 + $0x1] sm:$0x1] %vm2626, %v2623
  // Predicated region
  $region54: #{encoder_forward.1} parent=0 // pred_check
    _
  $region55: #{encoder_forward.1} parent=0 // pred_check_branch
    %2630 = sbr.rel (0) target = $region57
  $region56: #{encoder_forward.1} parent=0 // pred_region
    _
  $region57: #{encoder_forward.1} parent=0 // pred_fallthru
    _
  // Predicated region
  $region58: #{encoder_forward.1} parent=0 // pred_check
    _
  $region59: #{encoder_forward.1} parent=0 // pred_check_branch
    %2632 = sbr.rel (0) target = $region61
  $region60: #{encoder_forward.1} parent=0 // pred_region
    _
  $region61: #{encoder_forward.1} parent=0 // pred_fallthru
    _

</llo_original>
